<compile_context>
chip_gen: v5e
topology: v5e:2x2
jax: 0.10.0
libtpu: 0.0.40
codegen_flags: <defaults>
</compile_context>

<pallas_src>
import functools

import numpy as np
import jax
import jax.numpy as jnp
from jax import lax
from jax.experimental import pallas as pl
from jax.experimental.pallas import tpu as pltpu

EPS = 1e-5
MXU_DTYPE = jnp.bfloat16      # operands right at the MXU; everything else f32
NEG_BIG = -1e30               # stands in for -inf in the max-pool gutters


def _geometry(N, H, W):
    """Internal flat layout geometry.

    Per image: H*W real pixels followed by GUT zero "gutter" elements (whole
    rows), and MARGIN zeros at both ends of the whole buffer.
      - GUT is a multiple of W (so a flat column-within-row iota is globally
        consistent) and >= 2*W + 2 (so a +-2-row shifted read from one image
        can never reach the next image's real pixels).
      - If cheaply possible, GUT also makes the per-image stride SI a multiple
        of 128 so the per-image block copies are lane-aligned.
    """
    HW = H * W
    gut = 4 * W
    for g in range(4 * W, 4 * W + 129, W):
        if (HW + g) % 128 == 0:
            gut = g
            break
    SI = HW + gut
    NPR = N * SI
    MARGIN = ((2 * W + 2 + 127) // 128) * 128
    LEN = NPR + 2 * MARGIN
    assert gut % W == 0 and gut >= 2 * W + 2
    assert MARGIN >= 2 * W + 2
    return HW, gut, SI, NPR, MARGIN, LEN


def _inception_kernel(x_ref, wred_ref, gred_ref, bred_ref,
                      w3f_ref, g3_ref, b3_ref,
                      w5f_ref, g5_ref, b5_ref,
                      wpp_ref, gp_ref, bp_ref,
                      o_ref,
                      hpad_ref, im3_ref, im5_ref, xpool_ref,
                      *, N, W, HW, GUT, SI, NPR, MARGIN, LEN,
                      Cin, C1, C3re, C3, C5re, C5, Cp):
    f32 = jnp.float32
    CH = C3re + C5re
    inv_nhw = 1.0 / (N * HW)

    # ---- masks generated in-kernel from iota (nothing shipped from HBM) ----
    pos = lax.broadcasted_iota(jnp.int32, (1, NPR), 1).astype(f32)

    def _mod(p, k):
        # exact integer mod via float floor: p < 2^23 and (p+0.5)/k is never
        # within rounding error of an integer; avoids integer div/rem on VPU.
        return p - jnp.floor((p + 0.5) * (1.0 / k)) * k

    col = _mod(pos, W)                       # column within the width-W row
    valid = _mod(pos, SI) < (HW - 0.5)       # real pixel vs inter-image gutter

    def _colmask(dw):
        # the in-row neighbour at lane offset dw exists (no wrap across rows)
        if dw == 0:
            return None
        return col < (W - dw - 0.5) if dw > 0 else col > (-dw - 0.5)

    def _bn_relu(acc, gamma, beta):
        # training-mode BatchNorm2d (biased batch stats over the NHW real
        # positions; `acc` is exactly 0 on gutter columns) + ReLU, all in f32.
        mean = jnp.sum(acc, axis=1, keepdims=True) * inv_nhw
        ex2 = jnp.sum(acc * acc, axis=1, keepdims=True) * inv_nhw
        var = jnp.maximum(ex2 - mean * mean, 0.0)     # clamp single-pass var
        y = (acc - mean) * (lax.rsqrt(var + EPS) * gamma) + beta
        return jnp.maximum(y, 0.0)

    # ---- Stage 1: every 1x1 conv that reads x, as a single MXU matmul ------
    # Operand: per-image contiguous (Cin, HW) slabs separated by zero gutters.
    # Conv bias dropped on purpose: BN batch-mean subtraction cancels it.
    zgut = jnp.zeros((Cin, GUT), f32)
    xin = jnp.concatenate([p for n in range(N) for p in (x_ref[n], zgut)],
                          axis=1)                              # (Cin, NPR)
    red = jnp.dot(wred_ref[...], xin.astype(MXU_DTYPE),
                  preferred_element_type=f32)                  # [h3 | h5 | 1x1]
    red = _bn_relu(red, gred_ref[...], bred_ref[...])

    for n in range(N):          # branch1x1 -> output channels [0, C1)
        o_ref[n, 0:C1, :] = red[CH:CH + C1, n * SI:n * SI + HW]

    # ---- Stage 2: stage h = [h3 | h5] into the margin-padded scratch -------
    # Only the two margin strips are cleared; the interior is written exactly
    # once (gutter columns arrive as zeros via the `valid` select).
    hpad_ref[:, 0:MARGIN] = jnp.zeros((CH, MARGIN), f32)
    hpad_ref[:, MARGIN + NPR:LEN] = jnp.zeros((CH, MARGIN), f32)
    hpad_ref[:, MARGIN:MARGIN + NPR] = jnp.where(valid, red[0:CH, :], 0.0)

    def _tap(c0, c1, dh, dw):
        # (dh, dw)-shifted window of hpad rows [c0, c1); row shifts are free
        # (gutter layout), column wraps handled by a cheap select; cast to
        # bf16 only for the MXU operand.
        off = MARGIN + dh * W + dw
        s = hpad_ref[c0:c1, off:off + NPR]
        m = _colmask(dw)
        if m is not None:
            s = jnp.where(m, s, 0.0)
        return s.astype(MXU_DTYPE)

    # ---- 3x3 branch: one im2col matmul, K = 9 * C3re ------------------------
    t = 0
    for dh in (-1, 0, 1):
        for dw in (-1, 0, 1):
            im3_ref[t * C3re:(t + 1) * C3re, :] = _tap(0, C3re, dh, dw)
            t += 1
    acc3 = jnp.dot(w3f_ref[...], im3_ref[...], preferred_element_type=f32)
    acc3 = jnp.where(valid, acc3, 0.0)       # zero gutters -> unbiased stats
    y3 = _bn_relu(acc3, g3_ref[...], b3_ref[...])
    for n in range(N):
        o_ref[n, C1:C1 + C3, :] = y3[:, n * SI:n * SI + HW]

    # ---- 5x5 branch: one im2col matmul, K = 25 * C5re -----------------------
    t = 0
    for dh in range(-2, 3):
        for dw in range(-2, 3):
            im5_ref[t * C5re:(t + 1) * C5re, :] = _tap(C3re, CH, dh, dw)
            t += 1
    acc5 = jnp.dot(w5f_ref[...], im5_ref[...], preferred_element_type=f32)
    acc5 = jnp.where(valid, acc5, 0.0)
    y5 = _bn_relu(acc5, g5_ref[...], b5_ref[...])
    for n in range(N):
        o_ref[n, C1 + C3:C1 + C3 + C5, :] = y5[:, n * SI:n * SI + HW]

    # ---- pool branch: 3x3/s1/p1 max-pool (-inf padding) + 1x1 conv ----------
    # x staged with very-negative gutters; only the pad strips are filled.
    negm = jnp.full((Cin, MARGIN), NEG_BIG, f32)
    xpool_ref[:, 0:MARGIN] = negm
    xpool_ref[:, MARGIN + NPR:LEN] = negm
    for n in range(N):
        xpool_ref[:, MARGIN + n * SI:MARGIN + n * SI + HW] = x_ref[n]
        xpool_ref[:, MARGIN + n * SI + HW:MARGIN + (n + 1) * SI] = (
            jnp.full((Cin, GUT), NEG_BIG, f32))

    pooled = None
    for dh in (-1, 0, 1):
        for dw in (-1, 0, 1):
            off = MARGIN + dh * W + dw
            r = xpool_ref[:, off:off + NPR]
            m = _colmask(dw)
            if m is not None:
                r = jnp.where(m, r, NEG_BIG)
            pooled = r if pooled is None else jnp.maximum(pooled, r)
    pooled = jnp.where(valid, pooled, 0.0)   # finite + zero on gutter columns

    accp = jnp.dot(wpp_ref[...], pooled.astype(MXU_DTYPE),
                   preferred_element_type=f32)
    yp = _bn_relu(accp, gp_ref[...], bp_ref[...])
    for n in range(N):
        o_ref[n, C1 + C3 + C5:C1 + C3 + C5 + Cp, :] = \
            yp[:, n * SI:n * SI + HW]


@jax.jit
def inception_v1_forward(x_nchw, params):
    """_InceptionV1.forward.  Input/output are NCHW (PyTorch convention)."""
    N, Cin, H, W = x_nchw.shape
    HW, GUT, SI, NPR, MARGIN, LEN = _geometry(N, H, W)

    w1, _, g1, be1 = params["b1x1"]        # bias unused: cancels against BN
    w3r, _, g3r, be3r = params["b3x3_re"]
    w3, _, g3, be3 = params["b3x3"]        # (C3, C3re, 3, 3)
    w5r, _, g5r, be5r = params["b5x5_re"]
    w5, _, g5, be5 = params["b5x5"]        # (C5, C5re, 5, 5)
    wp, _, gp, bep = params["bpool"]
    C1, C3re, C3 = w1.shape[0], w3r.shape[0], w3.shape[0]
    C5re, C5, Cp = w5r.shape[0], w5.shape[0], wp.shape[0]
    CH, Ctot = C3re + C5re, C1 + C3 + C5 + Cp

    # Fused 1x1 weight for everything that reads x: rows [3x3-re | 5x5-re | 1x1]
    wred = jnp.concatenate(
        [w3r[:, :, 0, 0], w5r[:, :, 0, 0], w1[:, :, 0, 0]],
        axis=0).astype(MXU_DTYPE)
    gred = jnp.concatenate([g3r, g5r, g1])[:, None]
    bred = jnp.concatenate([be3r, be5r, be1])[:, None]

    # im2col weights: column block t = kh*K + kw holds w[:, :, kh, kw]
    w3f = jnp.transpose(w3, (0, 2, 3, 1)).reshape(C3, 9 * C3re).astype(MXU_DTYPE)
    w5f = jnp.transpose(w5, (0, 2, 3, 1)).reshape(C5, 25 * C5re).astype(MXU_DTYPE)
    wpp = wp[:, :, 0, 0].astype(MXU_DTYPE)

    kernel = functools.partial(
        _inception_kernel, N=N, W=W, HW=HW, GUT=GUT, SI=SI, NPR=NPR,
        MARGIN=MARGIN, LEN=LEN, Cin=Cin, C1=C1, C3re=C3re, C3=C3,
        C5re=C5re, C5=C5, Cp=Cp)
    vmem = pl.BlockSpec(memory_space=pltpu.MemorySpace.VMEM)

    out3 = pl.pallas_call(
        kernel,
        out_shape=jax.ShapeDtypeStruct((N, Ctot, HW), jnp.float32),
        in_specs=[vmem] * 13,
        out_specs=vmem,
        scratch_shapes=[
            pltpu.VMEM((CH, LEN), jnp.float32),          # zero-guttered [h3|h5]
            pltpu.VMEM((9 * C3re, NPR), MXU_DTYPE),      # im2col operand, 3x3
            pltpu.VMEM((25 * C5re, NPR), MXU_DTYPE),     # im2col operand, 5x5
            pltpu.VMEM((Cin, LEN), jnp.float32),         # "-inf"-guttered x
        ],
        compiler_params=pltpu.CompilerParams(
            vmem_limit_bytes=32 * 1024 * 1024),
    )(x_nchw.reshape(N, Cin, HW),                        # free reshape of NCHW
      wred, gred, bred,
      w3f, g3[:, None], be3[:, None],
      w5f, g5[:, None], be5[:, None],
      wpp, gp[:, None], bep[:, None])

    # (N, Ctot, H*W) is already NCHW up to a free reshape — no transpose.
    return out3.reshape(N, Ctot, H, W)


# ----------------------------- parameter init ------------------------------

def _init_basic_conv(key, cin, cout, k):
    k_w, k_b, k_g, k_bt = jax.random.split(key, 4)
    fan_in = cin * k * k
    w = jax.random.normal(k_w, (cout, cin, k, k), jnp.float32) / np.sqrt(fan_in)
    b = 0.1 * jax.random.normal(k_b, (cout,), jnp.float32)
    gamma = 1.0 + 0.1 * jax.random.normal(k_g, (cout,), jnp.float32)
    beta = 0.1 * jax.random.normal(k_bt, (cout,), jnp.float32)
    return (w, b, gamma, beta)


def init_inception_params(key, in_ch, c1, c3re, c3, c5re, c5, cpool):
    keys = jax.random.split(key, 6)
    return {
        "b1x1":    _init_basic_conv(keys[0], in_ch, c1,    1),
        "b3x3_re": _init_basic_conv(keys[1], in_ch, c3re,  1),
        "b3x3":    _init_basic_conv(keys[2], c3re,  c3,    3),
        "b5x5_re": _init_basic_conv(keys[3], in_ch, c5re,  1),
        "b5x5":    _init_basic_conv(keys[4], c5re,  c5,    5),
        "bpool":   _init_basic_conv(keys[5], in_ch, cpool, 1),
    }


# --------------------------- pure-JAX reference ----------------------------

def _ref_basic_conv(x, w, b, gamma, beta, pad):
    y = lax.conv_general_dilated(
        x, w, (1, 1), [(pad, pad), (pad, pad)],
        dimension_numbers=("NCHW", "OIHW", "NCHW"))
    y = y + b[None, :, None, None]
    mean = y.mean(axis=(0, 2, 3), keepdims=True)
    var = ((y - mean) ** 2).mean(axis=(0, 2, 3), keepdims=True)
    y = (y - mean) / jnp.sqrt(var + EPS) * gamma[None, :, None, None] \
        + beta[None, :, None, None]
    return jnp.maximum(y, 0.0)


def _ref_forward(x, p):
    o1 = _ref_basic_conv(x, *p["b1x1"], pad=0)
    h = _ref_basic_conv(x, *p["b3x3_re"], pad=0)
    o2 = _ref_basic_conv(h, *p["b3x3"], pad=1)
    h = _ref_basic_conv(x, *p["b5x5_re"], pad=0)
    o3 = _ref_basic_conv(h, *p["b5x5"], pad=2)
    xp = jnp.pad(x, ((0, 0), (0, 0), (1, 1), (1, 1)),
                 constant_values=-jnp.inf)
    xpool = lax.reduce_window(xp, -jnp.inf, lax.max, (1, 1, 3, 3),
                              (1, 1, 1, 1), "VALID")
    o4 = _ref_basic_conv(xpool, *p["bpool"], pad=0)
    return jnp.concatenate([o1, o2, o3, o4], axis=1)


if __name__ == "__main__":
    key = jax.random.PRNGKey(0)
    kx, kp = jax.random.split(key)

    # Small shapes: batch=2, in_channels=4, spatial=16x16 (NCHW like PyTorch).
    N, C, H, W = 2, 4, 16, 16
    x = jax.random.normal(kx, (N, C, H, W), jnp.float32)

    # _InceptionV1(4, out_ch1x1=8, out_ch3x3re=4, out_ch3x3=8,
    #                 out_ch5x5re=4, out_ch5x5=8, pool_proj=8) -> 32 channels.
    params = init_inception_params(kp, C, 8, 4, 8, 4, 8, 8)

    out = jax.block_until_ready(inception_v1_forward(x, params))
    assert out.shape == (N, 32, H, W), out.shape

    ref = jax.block_until_ready(_ref_forward(x, params))
    # bf16 MXU operands (f32 accumulation / BN) vs. an all-f32 reference:
    # tolerance sized for bf16 input rounding; real bugs are O(1) errors.
    tol = 3e-2 if MXU_DTYPE == jnp.bfloat16 else 2e-3
    np.testing.assert_allclose(np.asarray(out), np.asarray(ref),
                               rtol=tol, atol=tol)

    print("KERNEL_OK")
</pallas_src>

<mosaic_0001>
module attributes {stable_mosaic.version = 11 : i64} {
  func.func @_inception_kernel(%arg0: memref<2x4x256xf32, #tpu.memory_space<vmem>>, %arg1: memref<16x4xbf16, #tpu.memory_space<vmem>>, %arg2: memref<16x1xf32, #tpu.memory_space<vmem>>, %arg3: memref<16x1xf32, #tpu.memory_space<vmem>>, %arg4: memref<8x36xbf16, #tpu.memory_space<vmem>>, %arg5: memref<8x1xf32, #tpu.memory_space<vmem>>, %arg6: memref<8x1xf32, #tpu.memory_space<vmem>>, %arg7: memref<8x100xbf16, #tpu.memory_space<vmem>>, %arg8: memref<8x1xf32, #tpu.memory_space<vmem>>, %arg9: memref<8x1xf32, #tpu.memory_space<vmem>>, %arg10: memref<8x4xbf16, #tpu.memory_space<vmem>>, %arg11: memref<8x1xf32, #tpu.memory_space<vmem>>, %arg12: memref<8x1xf32, #tpu.memory_space<vmem>>, %arg13: memref<2x32x256xf32, #tpu.memory_space<vmem>>, %arg14: memref<8x1024xf32, #tpu.memory_space<vmem>>, %arg15: memref<36x768xbf16, #tpu.memory_space<vmem>>, %arg16: memref<100x768xbf16, #tpu.memory_space<vmem>>, %arg17: memref<4x1024xf32, #tpu.memory_space<vmem>>) attributes {dimension_semantics = [], scalar_prefetch = 0 : i64, scratch_operands = 4 : i64, tpu.core_type = #tpu.core_type<tc>} {
    %0 = tpu.iota {dimensions = array<i32: 1>} : vector<1x768xi32>
    %1 = arith.sitofp %0 : vector<1x768xi32> to vector<1x768xf32>
    %cst = arith.constant 5.000000e-01 : f32
    %2 = vector.broadcast %cst : f32 to vector<1x768xf32>
    %3 = arith.addf %1, %2 : vector<1x768xf32>
    %cst_0 = arith.constant 6.250000e-02 : f32
    %4 = vector.broadcast %cst_0 : f32 to vector<1x768xf32>
    %5 = arith.mulf %3, %4 : vector<1x768xf32>
    %6 = math.floor %5 : vector<1x768xf32>
    %cst_1 = arith.constant 1.600000e+01 : f32
    %7 = vector.broadcast %cst_1 : f32 to vector<1x768xf32>
    %8 = arith.mulf %6, %7 : vector<1x768xf32>
    %9 = arith.subf %1, %8 : vector<1x768xf32>
    %cst_2 = arith.constant 5.000000e-01 : f32
    %10 = vector.broadcast %cst_2 : f32 to vector<1x768xf32>
    %11 = arith.addf %1, %10 : vector<1x768xf32>
    %cst_3 = arith.constant 0.00260416674 : f32
    %12 = vector.broadcast %cst_3 : f32 to vector<1x768xf32>
    %13 = arith.mulf %11, %12 : vector<1x768xf32>
    %14 = math.floor %13 : vector<1x768xf32>
    %cst_4 = arith.constant 3.840000e+02 : f32
    %15 = vector.broadcast %cst_4 : f32 to vector<1x768xf32>
    %16 = arith.mulf %14, %15 : vector<1x768xf32>
    %17 = arith.subf %1, %16 : vector<1x768xf32>
    %cst_5 = arith.constant 2.555000e+02 : f32
    %18 = vector.broadcast %cst_5 : f32 to vector<1x768xf32>
    %19 = arith.cmpf olt, %17, %18 : vector<1x768xf32>
    %cst_6 = arith.constant 0.000000e+00 : f32
    %20 = vector.broadcast %cst_6 : f32 to vector<4x128xf32>
    %c0 = arith.constant 0 : index
    %c0_7 = arith.constant 0 : index
    %c0_8 = arith.constant 0 : index
    %21 = vector.load %arg0[%c0, %c0_7, %c0_8] : memref<2x4x256xf32, #tpu.memory_space<vmem>>, vector<1x4x256xf32>
    %22 = vector.shape_cast %21 : vector<1x4x256xf32> to vector<4x256xf32>
    %c1 = arith.constant 1 : index
    %c0_9 = arith.constant 0 : index
    %c0_10 = arith.constant 0 : index
    %23 = vector.load %arg0[%c1, %c0_9, %c0_10] : memref<2x4x256xf32, #tpu.memory_space<vmem>>, vector<1x4x256xf32>
    %24 = vector.shape_cast %23 : vector<1x4x256xf32> to vector<4x256xf32>
    %25 = tpu.concatenate %22, %20, %24, %20 in 1 : vector<4x256xf32>, vector<4x128xf32>, vector<4x256xf32>, vector<4x128xf32> -> vector<4x768xf32>
    %c0_11 = arith.constant 0 : index
    %c0_12 = arith.constant 0 : index
    %26 = vector.load %arg1[%c0_11, %c0_12] : memref<16x4xbf16, #tpu.memory_space<vmem>>, vector<16x4xbf16>
    %27 = arith.truncf %25 : vector<4x768xf32> to vector<4x768xbf16>
    %cst_13 = arith.constant dense<0.000000e+00> : vector<16x768xf32>
    %28 = tpu.matmul %26, %27, %cst_13 {dimension_numbers = #tpu.dot_dimension_numbers<[1], [0], [0], [1], [0, 0, 1, 1], [], []>} : vector<16x4xbf16>, vector<4x768xbf16>, vector<16x768xf32> -> vector<16x768xf32>
    %c0_14 = arith.constant 0 : index
    %c0_15 = arith.constant 0 : index
    %29 = vector.load %arg2[%c0_14, %c0_15] : memref<16x1xf32, #tpu.memory_space<vmem>>, vector<16x1xf32>
    %c0_16 = arith.constant 0 : index
    %c0_17 = arith.constant 0 : index
    %30 = vector.load %arg3[%c0_16, %c0_17] : memref<16x1xf32, #tpu.memory_space<vmem>>, vector<16x1xf32>
    %cst_18 = arith.constant dense<0.000000e+00> : vector<16xf32>
    %31 = vector.multi_reduction <add>, %28, %cst_18 [1] : vector<16x768xf32> to vector<16xf32>
    %32 = vector.shape_cast %31 : vector<16xf32> to vector<16x1xf32>
    %cst_19 = arith.constant 0.001953125 : f32
    %33 = vector.broadcast %cst_19 : f32 to vector<16x1xf32>
    %34 = arith.mulf %32, %33 : vector<16x1xf32>
    %35 = arith.mulf %28, %28 : vector<16x768xf32>
    %cst_20 = arith.constant dense<0.000000e+00> : vector<16xf32>
    %36 = vector.multi_reduction <add>, %35, %cst_20 [1] : vector<16x768xf32> to vector<16xf32>
    %37 = vector.shape_cast %36 : vector<16xf32> to vector<16x1xf32>
    %cst_21 = arith.constant 0.001953125 : f32
    %38 = vector.broadcast %cst_21 : f32 to vector<16x1xf32>
    %39 = arith.mulf %37, %38 : vector<16x1xf32>
    %40 = arith.mulf %34, %34 : vector<16x1xf32>
    %41 = arith.subf %39, %40 : vector<16x1xf32>
    %cst_22 = arith.constant 0.000000e+00 : f32
    %42 = vector.broadcast %cst_22 : f32 to vector<16x1xf32>
    %43 = arith.maximumf %41, %42 : vector<16x1xf32>
    %44 = vector.broadcast %34 : vector<16x1xf32> to vector<16x768xf32>
    %45 = arith.subf %28, %44 : vector<16x768xf32>
    %cst_23 = arith.constant 9.99999974E-6 : f32
    %46 = vector.broadcast %cst_23 : f32 to vector<16x1xf32>
    %47 = arith.addf %43, %46 : vector<16x1xf32>
    %48 = math.rsqrt %47 : vector<16x1xf32>
    %49 = arith.mulf %48, %29 : vector<16x1xf32>
    %50 = vector.broadcast %49 : vector<16x1xf32> to vector<16x768xf32>
    %51 = arith.mulf %45, %50 : vector<16x768xf32>
    %52 = vector.broadcast %30 : vector<16x1xf32> to vector<16x768xf32>
    %53 = arith.addf %51, %52 : vector<16x768xf32>
    %cst_24 = arith.constant 0.000000e+00 : f32
    %54 = vector.broadcast %cst_24 : f32 to vector<16x768xf32>
    %55 = arith.maximumf %53, %54 : vector<16x768xf32>
    %56 = vector.extract_strided_slice %55 {offsets = [8, 0], sizes = [8, 256], strides = [1, 1]} : vector<16x768xf32> to vector<8x256xf32>
    %c0_25 = arith.constant 0 : index
    %c0_26 = arith.constant 0 : index
    %c0_27 = arith.constant 0 : index
    %57 = vector.load %arg13[%c0_25, %c0_26, %c0_27] : memref<2x32x256xf32, #tpu.memory_space<vmem>>, vector<1x8x256xf32>
    %58 = vector.shape_cast %57 : vector<1x8x256xf32> to vector<8x256xf32>
    %59 = vector.shape_cast %56 : vector<8x256xf32> to vector<1x8x256xf32>
    tpu.vector_store %arg13[%c0_25, %c0_26, %c0_27], %59 {strides = array<i32>} : memref<2x32x256xf32, #tpu.memory_space<vmem>>, vector<1x8x256xf32>,
    %60 = vector.extract_strided_slice %55 {offsets = [8, 384], sizes = [8, 256], strides = [1, 1]} : vector<16x768xf32> to vector<8x256xf32>
    %c1_28 = arith.constant 1 : index
    %c0_29 = arith.constant 0 : index
    %c0_30 = arith.constant 0 : index
    %61 = vector.load %arg13[%c1_28, %c0_29, %c0_30] : memref<2x32x256xf32, #tpu.memory_space<vmem>>, vector<1x8x256xf32>
    %62 = vector.shape_cast %61 : vector<1x8x256xf32> to vector<8x256xf32>
    %63 = vector.shape_cast %60 : vector<8x256xf32> to vector<1x8x256xf32>
    tpu.vector_store %arg13[%c1_28, %c0_29, %c0_30], %63 {strides = array<i32>} : memref<2x32x256xf32, #tpu.memory_space<vmem>>, vector<1x8x256xf32>,
    %cst_31 = arith.constant 0.000000e+00 : f32
    %64 = vector.broadcast %cst_31 : f32 to vector<8x128xf32>
    %c0_32 = arith.constant 0 : index
    %c0_33 = arith.constant 0 : index
    %65 = vector.load %arg14[%c0_32, %c0_33] : memref<8x1024xf32, #tpu.memory_space<vmem>>, vector<8x128xf32>
    tpu.vector_store %arg14[%c0_32, %c0_33], %64 {strides = array<i32>} : memref<8x1024xf32, #tpu.memory_space<vmem>>, vector<8x128xf32>,
    %cst_34 = arith.constant 0.000000e+00 : f32
    %66 = vector.broadcast %cst_34 : f32 to vector<8x128xf32>
    %c0_35 = arith.constant 0 : index
    %c896 = arith.constant 896 : index
    %67 = vector.load %arg14[%c0_35, %c896] : memref<8x1024xf32, #tpu.memory_space<vmem>>, vector<8x128xf32>
    tpu.vector_store %arg14[%c0_35, %c896], %66 {strides = array<i32>} : memref<8x1024xf32, #tpu.memory_space<vmem>>, vector<8x128xf32>,
    %68 = vector.extract_strided_slice %55 {offsets = [0, 0], sizes = [8, 768], strides = [1, 1]} : vector<16x768xf32> to vector<8x768xf32>
    %cst_36 = arith.constant 0.000000e+00 : f32
    %69 = vector.shape_cast %19 : vector<1x768xi1> to vector<1x768xi1>
    %70 = vector.broadcast %69 : vector<1x768xi1> to vector<8x768xi1>
    %71 = vector.broadcast %cst_36 : f32 to vector<8x768xf32>
    %72 = arith.select %70, %68, %71 : vector<8x768xi1>, vector<8x768xf32>
    %c0_37 = arith.constant 0 : index
    %c128 = arith.constant 128 : index
    %73 = vector.load %arg14[%c0_37, %c128] : memref<8x1024xf32, #tpu.memory_space<vmem>>, vector<8x768xf32>
    tpu.vector_store %arg14[%c0_37, %c128], %72 {strides = array<i32>} : memref<8x1024xf32, #tpu.memory_space<vmem>>, vector<8x768xf32>,
    %c0_38 = arith.constant 0 : index
    %c111 = arith.constant 111 : index
    %74 = vector.load %arg14[%c0_38, %c111] : memref<8x1024xf32, #tpu.memory_space<vmem>>, vector<4x768xf32>
    %cst_39 = arith.constant 5.000000e-01 : f32
    %75 = vector.broadcast %cst_39 : f32 to vector<1x768xf32>
    %76 = arith.cmpf ogt, %9, %75 : vector<1x768xf32>
    %cst_40 = arith.constant 0.000000e+00 : f32
    %77 = vector.shape_cast %76 : vector<1x768xi1> to vector<1x768xi1>
    %78 = vector.broadcast %77 : vector<1x768xi1> to vector<4x768xi1>
    %79 = vector.broadcast %cst_40 : f32 to vector<4x768xf32>
    %80 = arith.select %78, %74, %79 : vector<4x768xi1>, vector<4x768xf32>
    %81 = arith.truncf %80 : vector<4x768xf32> to vector<4x768xbf16>
    %c0_41 = arith.constant 0 : index
    %c0_42 = arith.constant 0 : index
    %82 = vector.load %arg15[%c0_41, %c0_42] : memref<36x768xbf16, #tpu.memory_space<vmem>>, vector<4x768xbf16>
    tpu.vector_store %arg15[%c0_41, %c0_42], %81 {strides = array<i32>} : memref<36x768xbf16, #tpu.memory_space<vmem>>, vector<4x768xbf16>,
    %c0_43 = arith.constant 0 : index
    %c112 = arith.constant 112 : index
    %83 = vector.load %arg14[%c0_43, %c112] : memref<8x1024xf32, #tpu.memory_space<vmem>>, vector<4x768xf32>
    %84 = arith.truncf %83 : vector<4x768xf32> to vector<4x768xbf16>
    %c4 = arith.constant 4 : index
    %c0_44 = arith.constant 0 : index
    %85 = vector.load %arg15[%c4, %c0_44] : memref<36x768xbf16, #tpu.memory_space<vmem>>, vector<4x768xbf16>
    tpu.vector_store %arg15[%c4, %c0_44], %84 {strides = array<i32>} : memref<36x768xbf16, #tpu.memory_space<vmem>>, vector<4x768xbf16>,
    %c0_45 = arith.constant 0 : index
    %c113 = arith.constant 113 : index
    %86 = vector.load %arg14[%c0_45, %c113] : memref<8x1024xf32, #tpu.memory_space<vmem>>, vector<4x768xf32>
    %cst_46 = arith.constant 1.450000e+01 : f32
    %87 = vector.broadcast %cst_46 : f32 to vector<1x768xf32>
    %88 = arith.cmpf olt, %9, %87 : vector<1x768xf32>
    %cst_47 = arith.constant 0.000000e+00 : f32
    %89 = vector.shape_cast %88 : vector<1x768xi1> to vector<1x768xi1>
    %90 = vector.broadcast %89 : vector<1x768xi1> to vector<4x768xi1>
    %91 = vector.broadcast %cst_47 : f32 to vector<4x768xf32>
    %92 = arith.select %90, %86, %91 : vector<4x768xi1>, vector<4x768xf32>
    %93 = arith.truncf %92 : vector<4x768xf32> to vector<4x768xbf16>
    %c8 = arith.constant 8 : index
    %c0_48 = arith.constant 0 : index
    %94 = vector.load %arg15[%c8, %c0_48] : memref<36x768xbf16, #tpu.memory_space<vmem>>, vector<4x768xbf16>
    tpu.vector_store %arg15[%c8, %c0_48], %93 {strides = array<i32>} : memref<36x768xbf16, #tpu.memory_space<vmem>>, vector<4x768xbf16>,
    %c0_49 = arith.constant 0 : index
    %c127 = arith.constant 127 : index
    %95 = vector.load %arg14[%c0_49, %c127] : memref<8x1024xf32, #tpu.memory_space<vmem>>, vector<4x768xf32>
    %cst_50 = arith.constant 5.000000e-01 : f32
    %96 = vector.broadcast %cst_50 : f32 to vector<1x768xf32>
    %97 = arith.cmpf ogt, %9, %96 : vector<1x768xf32>
    %cst_51 = arith.constant 0.000000e+00 : f32
    %98 = vector.shape_cast %97 : vector<1x768xi1> to vector<1x768xi1>
    %99 = vector.broadcast %98 : vector<1x768xi1> to vector<4x768xi1>
    %100 = vector.broadcast %cst_51 : f32 to vector<4x768xf32>
    %101 = arith.select %99, %95, %100 : vector<4x768xi1>, vector<4x768xf32>
    %102 = arith.truncf %101 : vector<4x768xf32> to vector<4x768xbf16>
    %c12 = arith.constant 12 : index
    %c0_52 = arith.constant 0 : index
    %103 = vector.load %arg15[%c12, %c0_52] : memref<36x768xbf16, #tpu.memory_space<vmem>>, vector<4x768xbf16>
    tpu.vector_store %arg15[%c12, %c0_52], %102 {strides = array<i32>} : memref<36x768xbf16, #tpu.memory_space<vmem>>, vector<4x768xbf16>,
    %c0_53 = arith.constant 0 : index
    %c128_54 = arith.constant 128 : index
    %104 = vector.load %arg14[%c0_53, %c128_54] : memref<8x1024xf32, #tpu.memory_space<vmem>>, vector<4x768xf32>
    %105 = arith.truncf %104 : vector<4x768xf32> to vector<4x768xbf16>
    %c16 = arith.constant 16 : index
    %c0_55 = arith.constant 0 : index
    %106 = vector.load %arg15[%c16, %c0_55] : memref<36x768xbf16, #tpu.memory_space<vmem>>, vector<4x768xbf16>
    tpu.vector_store %arg15[%c16, %c0_55], %105 {strides = array<i32>} : memref<36x768xbf16, #tpu.memory_space<vmem>>, vector<4x768xbf16>,
    %c0_56 = arith.constant 0 : index
    %c129 = arith.constant 129 : index
    %107 = vector.load %arg14[%c0_56, %c129] : memref<8x1024xf32, #tpu.memory_space<vmem>>, vector<4x768xf32>
    %cst_57 = arith.constant 1.450000e+01 : f32
    %108 = vector.broadcast %cst_57 : f32 to vector<1x768xf32>
    %109 = arith.cmpf olt, %9, %108 : vector<1x768xf32>
    %cst_58 = arith.constant 0.000000e+00 : f32
    %110 = vector.shape_cast %109 : vector<1x768xi1> to vector<1x768xi1>
    %111 = vector.broadcast %110 : vector<1x768xi1> to vector<4x768xi1>
    %112 = vector.broadcast %cst_58 : f32 to vector<4x768xf32>
    %113 = arith.select %111, %107, %112 : vector<4x768xi1>, vector<4x768xf32>
    %114 = arith.truncf %113 : vector<4x768xf32> to vector<4x768xbf16>
    %c20 = arith.constant 20 : index
    %c0_59 = arith.constant 0 : index
    %115 = vector.load %arg15[%c20, %c0_59] : memref<36x768xbf16, #tpu.memory_space<vmem>>, vector<4x768xbf16>
    tpu.vector_store %arg15[%c20, %c0_59], %114 {strides = array<i32>} : memref<36x768xbf16, #tpu.memory_space<vmem>>, vector<4x768xbf16>,
    %c0_60 = arith.constant 0 : index
    %c143 = arith.constant 143 : index
    %116 = vector.load %arg14[%c0_60, %c143] : memref<8x1024xf32, #tpu.memory_space<vmem>>, vector<4x768xf32>
    %cst_61 = arith.constant 5.000000e-01 : f32
    %117 = vector.broadcast %cst_61 : f32 to vector<1x768xf32>
    %118 = arith.cmpf ogt, %9, %117 : vector<1x768xf32>
    %cst_62 = arith.constant 0.000000e+00 : f32
    %119 = vector.shape_cast %118 : vector<1x768xi1> to vector<1x768xi1>
    %120 = vector.broadcast %119 : vector<1x768xi1> to vector<4x768xi1>
    %121 = vector.broadcast %cst_62 : f32 to vector<4x768xf32>
    %122 = arith.select %120, %116, %121 : vector<4x768xi1>, vector<4x768xf32>
    %123 = arith.truncf %122 : vector<4x768xf32> to vector<4x768xbf16>
    %c24 = arith.constant 24 : index
    %c0_63 = arith.constant 0 : index
    %124 = vector.load %arg15[%c24, %c0_63] : memref<36x768xbf16, #tpu.memory_space<vmem>>, vector<4x768xbf16>
    tpu.vector_store %arg15[%c24, %c0_63], %123 {strides = array<i32>} : memref<36x768xbf16, #tpu.memory_space<vmem>>, vector<4x768xbf16>,
    %c0_64 = arith.constant 0 : index
    %c144 = arith.constant 144 : index
    %125 = vector.load %arg14[%c0_64, %c144] : memref<8x1024xf32, #tpu.memory_space<vmem>>, vector<4x768xf32>
    %126 = arith.truncf %125 : vector<4x768xf32> to vector<4x768xbf16>
    %c28 = arith.constant 28 : index
    %c0_65 = arith.constant 0 : index
    %127 = vector.load %arg15[%c28, %c0_65] : memref<36x768xbf16, #tpu.memory_space<vmem>>, vector<4x768xbf16>
    tpu.vector_store %arg15[%c28, %c0_65], %126 {strides = array<i32>} : memref<36x768xbf16, #tpu.memory_space<vmem>>, vector<4x768xbf16>,
    %c0_66 = arith.constant 0 : index
    %c145 = arith.constant 145 : index
    %128 = vector.load %arg14[%c0_66, %c145] : memref<8x1024xf32, #tpu.memory_space<vmem>>, vector<4x768xf32>
    %cst_67 = arith.constant 1.450000e+01 : f32
    %129 = vector.broadcast %cst_67 : f32 to vector<1x768xf32>
    %130 = arith.cmpf olt, %9, %129 : vector<1x768xf32>
    %cst_68 = arith.constant 0.000000e+00 : f32
    %131 = vector.shape_cast %130 : vector<1x768xi1> to vector<1x768xi1>
    %132 = vector.broadcast %131 : vector<1x768xi1> to vector<4x768xi1>
    %133 = vector.broadcast %cst_68 : f32 to vector<4x768xf32>
    %134 = arith.select %132, %128, %133 : vector<4x768xi1>, vector<4x768xf32>
    %135 = arith.truncf %134 : vector<4x768xf32> to vector<4x768xbf16>
    %c32 = arith.constant 32 : index
    %c0_69 = arith.constant 0 : index
    %136 = vector.load %arg15[%c32, %c0_69] : memref<36x768xbf16, #tpu.memory_space<vmem>>, vector<4x768xbf16>
    tpu.vector_store %arg15[%c32, %c0_69], %135 {strides = array<i32>} : memref<36x768xbf16, #tpu.memory_space<vmem>>, vector<4x768xbf16>,
    %c0_70 = arith.constant 0 : index
    %c0_71 = arith.constant 0 : index
    %137 = vector.load %arg4[%c0_70, %c0_71] : memref<8x36xbf16, #tpu.memory_space<vmem>>, vector<8x36xbf16>
    %c0_72 = arith.constant 0 : index
    %c0_73 = arith.constant 0 : index
    %138 = vector.load %arg15[%c0_72, %c0_73] : memref<36x768xbf16, #tpu.memory_space<vmem>>, vector<36x768xbf16>
    %cst_74 = arith.constant dense<0.000000e+00> : vector<8x768xf32>
    %139 = tpu.matmul %137, %138, %cst_74 {dimension_numbers = #tpu.dot_dimension_numbers<[1], [0], [0], [1], [0, 0, 1, 1], [], []>} : vector<8x36xbf16>, vector<36x768xbf16>, vector<8x768xf32> -> vector<8x768xf32>
    %cst_75 = arith.constant 0.000000e+00 : f32
    %140 = vector.shape_cast %19 : vector<1x768xi1> to vector<1x768xi1>
    %141 = vector.broadcast %140 : vector<1x768xi1> to vector<8x768xi1>
    %142 = vector.broadcast %cst_75 : f32 to vector<8x768xf32>
    %143 = arith.select %141, %139, %142 : vector<8x768xi1>, vector<8x768xf32>
    %c0_76 = arith.constant 0 : index
    %c0_77 = arith.constant 0 : index
    %144 = vector.load %arg5[%c0_76, %c0_77] : memref<8x1xf32, #tpu.memory_space<vmem>>, vector<8x1xf32>
    %c0_78 = arith.constant 0 : index
    %c0_79 = arith.constant 0 : index
    %145 = vector.load %arg6[%c0_78, %c0_79] : memref<8x1xf32, #tpu.memory_space<vmem>>, vector<8x1xf32>
    %cst_80 = arith.constant dense<0.000000e+00> : vector<8xf32>
    %146 = vector.multi_reduction <add>, %143, %cst_80 [1] : vector<8x768xf32> to vector<8xf32>
    %147 = vector.shape_cast %146 : vector<8xf32> to vector<8x1xf32>
    %cst_81 = arith.constant 0.001953125 : f32
    %148 = vector.broadcast %cst_81 : f32 to vector<8x1xf32>
    %149 = arith.mulf %147, %148 : vector<8x1xf32>
    %150 = arith.mulf %143, %143 : vector<8x768xf32>
    %cst_82 = arith.constant dense<0.000000e+00> : vector<8xf32>
    %151 = vector.multi_reduction <add>, %150, %cst_82 [1] : vector<8x768xf32> to vector<8xf32>
    %152 = vector.shape_cast %151 : vector<8xf32> to vector<8x1xf32>
    %cst_83 = arith.constant 0.001953125 : f32
    %153 = vector.broadcast %cst_83 : f32 to vector<8x1xf32>
    %154 = arith.mulf %152, %153 : vector<8x1xf32>
    %155 = arith.mulf %149, %149 : vector<8x1xf32>
    %156 = arith.subf %154, %155 : vector<8x1xf32>
    %cst_84 = arith.constant 0.000000e+00 : f32
    %157 = vector.broadcast %cst_84 : f32 to vector<8x1xf32>
    %158 = arith.maximumf %156, %157 : vector<8x1xf32>
    %159 = vector.broadcast %149 : vector<8x1xf32> to vector<8x768xf32>
    %160 = arith.subf %143, %159 : vector<8x768xf32>
    %cst_85 = arith.constant 9.99999974E-6 : f32
    %161 = vector.broadcast %cst_85 : f32 to vector<8x1xf32>
    %162 = arith.addf %158, %161 : vector<8x1xf32>
    %163 = math.rsqrt %162 : vector<8x1xf32>
    %164 = arith.mulf %163, %144 : vector<8x1xf32>
    %165 = vector.broadcast %164 : vector<8x1xf32> to vector<8x768xf32>
    %166 = arith.mulf %160, %165 : vector<8x768xf32>
    %167 = vector.broadcast %145 : vector<8x1xf32> to vector<8x768xf32>
    %168 = arith.addf %166, %167 : vector<8x768xf32>
    %cst_86 = arith.constant 0.000000e+00 : f32
    %169 = vector.broadcast %cst_86 : f32 to vector<8x768xf32>
    %170 = arith.maximumf %168, %169 : vector<8x768xf32>
    %171 = vector.extract_strided_slice %170 {offsets = [0, 0], sizes = [8, 256], strides = [1, 1]} : vector<8x768xf32> to vector<8x256xf32>
    %c0_87 = arith.constant 0 : index
    %c8_88 = arith.constant 8 : index
    %c0_89 = arith.constant 0 : index
    %172 = vector.load %arg13[%c0_87, %c8_88, %c0_89] : memref<2x32x256xf32, #tpu.memory_space<vmem>>, vector<1x8x256xf32>
    %173 = vector.shape_cast %172 : vector<1x8x256xf32> to vector<8x256xf32>
    %174 = vector.shape_cast %171 : vector<8x256xf32> to vector<1x8x256xf32>
    tpu.vector_store %arg13[%c0_87, %c8_88, %c0_89], %174 {strides = array<i32>} : memref<2x32x256xf32, #tpu.memory_space<vmem>>, vector<1x8x256xf32>,
    %175 = vector.extract_strided_slice %170 {offsets = [0, 384], sizes = [8, 256], strides = [1, 1]} : vector<8x768xf32> to vector<8x256xf32>
    %c1_90 = arith.constant 1 : index
    %c8_91 = arith.constant 8 : index
    %c0_92 = arith.constant 0 : index
    %176 = vector.load %arg13[%c1_90, %c8_91, %c0_92] : memref<2x32x256xf32, #tpu.memory_space<vmem>>, vector<1x8x256xf32>
    %177 = vector.shape_cast %176 : vector<1x8x256xf32> to vector<8x256xf32>
    %178 = vector.shape_cast %175 : vector<8x256xf32> to vector<1x8x256xf32>
    tpu.vector_store %arg13[%c1_90, %c8_91, %c0_92], %178 {strides = array<i32>} : memref<2x32x256xf32, #tpu.memory_space<vmem>>, vector<1x8x256xf32>,
    %c4_93 = arith.constant 4 : index
    %c94 = arith.constant 94 : index
    %179 = vector.load %arg14[%c4_93, %c94] : memref<8x1024xf32, #tpu.memory_space<vmem>>, vector<4x768xf32>
    %cst_94 = arith.constant 1.500000e+00 : f32
    %180 = vector.broadcast %cst_94 : f32 to vector<1x768xf32>
    %181 = arith.cmpf ogt, %9, %180 : vector<1x768xf32>
    %cst_95 = arith.constant 0.000000e+00 : f32
    %182 = vector.shape_cast %181 : vector<1x768xi1> to vector<1x768xi1>
    %183 = vector.broadcast %182 : vector<1x768xi1> to vector<4x768xi1>
    %184 = vector.broadcast %cst_95 : f32 to vector<4x768xf32>
    %185 = arith.select %183, %179, %184 : vector<4x768xi1>, vector<4x768xf32>
    %186 = arith.truncf %185 : vector<4x768xf32> to vector<4x768xbf16>
    %c0_96 = arith.constant 0 : index
    %c0_97 = arith.constant 0 : index
    %187 = vector.load %arg16[%c0_96, %c0_97] : memref<100x768xbf16, #tpu.memory_space<vmem>>, vector<4x768xbf16>
    tpu.vector_store %arg16[%c0_96, %c0_97], %186 {strides = array<i32>} : memref<100x768xbf16, #tpu.memory_space<vmem>>, vector<4x768xbf16>,
    %c4_98 = arith.constant 4 : index
    %c95 = arith.constant 95 : index
    %188 = vector.load %arg14[%c4_98, %c95] : memref<8x1024xf32, #tpu.memory_space<vmem>>, vector<4x768xf32>
    %cst_99 = arith.constant 5.000000e-01 : f32
    %189 = vector.broadcast %cst_99 : f32 to vector<1x768xf32>
    %190 = arith.cmpf ogt, %9, %189 : vector<1x768xf32>
    %cst_100 = arith.constant 0.000000e+00 : f32
    %191 = vector.shape_cast %190 : vector<1x768xi1> to vector<1x768xi1>
    %192 = vector.broadcast %191 : vector<1x768xi1> to vector<4x768xi1>
    %193 = vector.broadcast %cst_100 : f32 to vector<4x768xf32>
    %194 = arith.select %192, %188, %193 : vector<4x768xi1>, vector<4x768xf32>
    %195 = arith.truncf %194 : vector<4x768xf32> to vector<4x768xbf16>
    %c4_101 = arith.constant 4 : index
    %c0_102 = arith.constant 0 : index
    %196 = vector.load %arg16[%c4_101, %c0_102] : memref<100x768xbf16, #tpu.memory_space<vmem>>, vector<4x768xbf16>
    tpu.vector_store %arg16[%c4_101, %c0_102], %195 {strides = array<i32>} : memref<100x768xbf16, #tpu.memory_space<vmem>>, vector<4x768xbf16>,
    %c4_103 = arith.constant 4 : index
    %c96 = arith.constant 96 : index
    %197 = vector.load %arg14[%c4_103, %c96] : memref<8x1024xf32, #tpu.memory_space<vmem>>, vector<4x768xf32>
    %198 = arith.truncf %197 : vector<4x768xf32> to vector<4x768xbf16>
    %c8_104 = arith.constant 8 : index
    %c0_105 = arith.constant 0 : index
    %199 = vector.load %arg16[%c8_104, %c0_105] : memref<100x768xbf16, #tpu.memory_space<vmem>>, vector<4x768xbf16>
    tpu.vector_store %arg16[%c8_104, %c0_105], %198 {strides = array<i32>} : memref<100x768xbf16, #tpu.memory_space<vmem>>, vector<4x768xbf16>,
    %c4_106 = arith.constant 4 : index
    %c97 = arith.constant 97 : index
    %200 = vector.load %arg14[%c4_106, %c97] : memref<8x1024xf32, #tpu.memory_space<vmem>>, vector<4x768xf32>
    %cst_107 = arith.constant 1.450000e+01 : f32
    %201 = vector.broadcast %cst_107 : f32 to vector<1x768xf32>
    %202 = arith.cmpf olt, %9, %201 : vector<1x768xf32>
    %cst_108 = arith.constant 0.000000e+00 : f32
    %203 = vector.shape_cast %202 : vector<1x768xi1> to vector<1x768xi1>
    %204 = vector.broadcast %203 : vector<1x768xi1> to vector<4x768xi1>
    %205 = vector.broadcast %cst_108 : f32 to vector<4x768xf32>
    %206 = arith.select %204, %200, %205 : vector<4x768xi1>, vector<4x768xf32>
    %207 = arith.truncf %206 : vector<4x768xf32> to vector<4x768xbf16>
    %c12_109 = arith.constant 12 : index
    %c0_110 = arith.constant 0 : index
    %208 = vector.load %arg16[%c12_109, %c0_110] : memref<100x768xbf16, #tpu.memory_space<vmem>>, vector<4x768xbf16>
    tpu.vector_store %arg16[%c12_109, %c0_110], %207 {strides = array<i32>} : memref<100x768xbf16, #tpu.memory_space<vmem>>, vector<4x768xbf16>,
    %c4_111 = arith.constant 4 : index
    %c98 = arith.constant 98 : index
    %209 = vector.load %arg14[%c4_111, %c98] : memref<8x1024xf32, #tpu.memory_space<vmem>>, vector<4x768xf32>
    %cst_112 = arith.constant 1.350000e+01 : f32
    %210 = vector.broadcast %cst_112 : f32 to vector<1x768xf32>
    %211 = arith.cmpf olt, %9, %210 : vector<1x768xf32>
    %cst_113 = arith.constant 0.000000e+00 : f32
    %212 = vector.shape_cast %211 : vector<1x768xi1> to vector<1x768xi1>
    %213 = vector.broadcast %212 : vector<1x768xi1> to vector<4x768xi1>
    %214 = vector.broadcast %cst_113 : f32 to vector<4x768xf32>
    %215 = arith.select %213, %209, %214 : vector<4x768xi1>, vector<4x768xf32>
    %216 = arith.truncf %215 : vector<4x768xf32> to vector<4x768xbf16>
    %c16_114 = arith.constant 16 : index
    %c0_115 = arith.constant 0 : index
    %217 = vector.load %arg16[%c16_114, %c0_115] : memref<100x768xbf16, #tpu.memory_space<vmem>>, vector<4x768xbf16>
    tpu.vector_store %arg16[%c16_114, %c0_115], %216 {strides = array<i32>} : memref<100x768xbf16, #tpu.memory_space<vmem>>, vector<4x768xbf16>,
    %c4_116 = arith.constant 4 : index
    %c110 = arith.constant 110 : index
    %218 = vector.load %arg14[%c4_116, %c110] : memref<8x1024xf32, #tpu.memory_space<vmem>>, vector<4x768xf32>
    %cst_117 = arith.constant 1.500000e+00 : f32
    %219 = vector.broadcast %cst_117 : f32 to vector<1x768xf32>
    %220 = arith.cmpf ogt, %9, %219 : vector<1x768xf32>
    %cst_118 = arith.constant 0.000000e+00 : f32
    %221 = vector.shape_cast %220 : vector<1x768xi1> to vector<1x768xi1>
    %222 = vector.broadcast %221 : vector<1x768xi1> to vector<4x768xi1>
    %223 = vector.broadcast %cst_118 : f32 to vector<4x768xf32>
    %224 = arith.select %222, %218, %223 : vector<4x768xi1>, vector<4x768xf32>
    %225 = arith.truncf %224 : vector<4x768xf32> to vector<4x768xbf16>
    %c20_119 = arith.constant 20 : index
    %c0_120 = arith.constant 0 : index
    %226 = vector.load %arg16[%c20_119, %c0_120] : memref<100x768xbf16, #tpu.memory_space<vmem>>, vector<4x768xbf16>
    tpu.vector_store %arg16[%c20_119, %c0_120], %225 {strides = array<i32>} : memref<100x768xbf16, #tpu.memory_space<vmem>>, vector<4x768xbf16>,
    %c4_121 = arith.constant 4 : index
    %c111_122 = arith.constant 111 : index
    %227 = vector.load %arg14[%c4_121, %c111_122] : memref<8x1024xf32, #tpu.memory_space<vmem>>, vector<4x768xf32>
    %cst_123 = arith.constant 5.000000e-01 : f32
    %228 = vector.broadcast %cst_123 : f32 to vector<1x768xf32>
    %229 = arith.cmpf ogt, %9, %228 : vector<1x768xf32>
    %cst_124 = arith.constant 0.000000e+00 : f32
    %230 = vector.shape_cast %229 : vector<1x768xi1> to vector<1x768xi1>
    %231 = vector.broadcast %230 : vector<1x768xi1> to vector<4x768xi1>
    %232 = vector.broadcast %cst_124 : f32 to vector<4x768xf32>
    %233 = arith.select %231, %227, %232 : vector<4x768xi1>, vector<4x768xf32>
    %234 = arith.truncf %233 : vector<4x768xf32> to vector<4x768xbf16>
    %c24_125 = arith.constant 24 : index
    %c0_126 = arith.constant 0 : index
    %235 = vector.load %arg16[%c24_125, %c0_126] : memref<100x768xbf16, #tpu.memory_space<vmem>>, vector<4x768xbf16>
    tpu.vector_store %arg16[%c24_125, %c0_126], %234 {strides = array<i32>} : memref<100x768xbf16, #tpu.memory_space<vmem>>, vector<4x768xbf16>,
    %c4_127 = arith.constant 4 : index
    %c112_128 = arith.constant 112 : index
    %236 = vector.load %arg14[%c4_127, %c112_128] : memref<8x1024xf32, #tpu.memory_space<vmem>>, vector<4x768xf32>
    %237 = arith.truncf %236 : vector<4x768xf32> to vector<4x768xbf16>
    %c28_129 = arith.constant 28 : index
    %c0_130 = arith.constant 0 : index
    %238 = vector.load %arg16[%c28_129, %c0_130] : memref<100x768xbf16, #tpu.memory_space<vmem>>, vector<4x768xbf16>
    tpu.vector_store %arg16[%c28_129, %c0_130], %237 {strides = array<i32>} : memref<100x768xbf16, #tpu.memory_space<vmem>>, vector<4x768xbf16>,
    %c4_131 = arith.constant 4 : index
    %c113_132 = arith.constant 113 : index
    %239 = vector.load %arg14[%c4_131, %c113_132] : memref<8x1024xf32, #tpu.memory_space<vmem>>, vector<4x768xf32>
    %cst_133 = arith.constant 1.450000e+01 : f32
    %240 = vector.broadcast %cst_133 : f32 to vector<1x768xf32>
    %241 = arith.cmpf olt, %9, %240 : vector<1x768xf32>
    %cst_134 = arith.constant 0.000000e+00 : f32
    %242 = vector.shape_cast %241 : vector<1x768xi1> to vector<1x768xi1>
    %243 = vector.broadcast %242 : vector<1x768xi1> to vector<4x768xi1>
    %244 = vector.broadcast %cst_134 : f32 to vector<4x768xf32>
    %245 = arith.select %243, %239, %244 : vector<4x768xi1>, vector<4x768xf32>
    %246 = arith.truncf %245 : vector<4x768xf32> to vector<4x768xbf16>
    %c32_135 = arith.constant 32 : index
    %c0_136 = arith.constant 0 : index
    %247 = vector.load %arg16[%c32_135, %c0_136] : memref<100x768xbf16, #tpu.memory_space<vmem>>, vector<4x768xbf16>
    tpu.vector_store %arg16[%c32_135, %c0_136], %246 {strides = array<i32>} : memref<100x768xbf16, #tpu.memory_space<vmem>>, vector<4x768xbf16>,
    %c4_137 = arith.constant 4 : index
    %c114 = arith.constant 114 : index
    %248 = vector.load %arg14[%c4_137, %c114] : memref<8x1024xf32, #tpu.memory_space<vmem>>, vector<4x768xf32>
    %cst_138 = arith.constant 1.350000e+01 : f32
    %249 = vector.broadcast %cst_138 : f32 to vector<1x768xf32>
    %250 = arith.cmpf olt, %9, %249 : vector<1x768xf32>
    %cst_139 = arith.constant 0.000000e+00 : f32
    %251 = vector.shape_cast %250 : vector<1x768xi1> to vector<1x768xi1>
    %252 = vector.broadcast %251 : vector<1x768xi1> to vector<4x768xi1>
    %253 = vector.broadcast %cst_139 : f32 to vector<4x768xf32>
    %254 = arith.select %252, %248, %253 : vector<4x768xi1>, vector<4x768xf32>
    %255 = arith.truncf %254 : vector<4x768xf32> to vector<4x768xbf16>
    %c36 = arith.constant 36 : index
    %c0_140 = arith.constant 0 : index
    %256 = vector.load %arg16[%c36, %c0_140] : memref<100x768xbf16, #tpu.memory_space<vmem>>, vector<4x768xbf16>
    tpu.vector_store %arg16[%c36, %c0_140], %255 {strides = array<i32>} : memref<100x768xbf16, #tpu.memory_space<vmem>>, vector<4x768xbf16>,
    %c4_141 = arith.constant 4 : index
    %c126 = arith.constant 126 : index
    %257 = vector.load %arg14[%c4_141, %c126] : memref<8x1024xf32, #tpu.memory_space<vmem>>, vector<4x768xf32>
    %cst_142 = arith.constant 1.500000e+00 : f32
    %258 = vector.broadcast %cst_142 : f32 to vector<1x768xf32>
    %259 = arith.cmpf ogt, %9, %258 : vector<1x768xf32>
    %cst_143 = arith.constant 0.000000e+00 : f32
    %260 = vector.shape_cast %259 : vector<1x768xi1> to vector<1x768xi1>
    %261 = vector.broadcast %260 : vector<1x768xi1> to vector<4x768xi1>
    %262 = vector.broadcast %cst_143 : f32 to vector<4x768xf32>
    %263 = arith.select %261, %257, %262 : vector<4x768xi1>, vector<4x768xf32>
    %264 = arith.truncf %263 : vector<4x768xf32> to vector<4x768xbf16>
    %c40 = arith.constant 40 : index
    %c0_144 = arith.constant 0 : index
    %265 = vector.load %arg16[%c40, %c0_144] : memref<100x768xbf16, #tpu.memory_space<vmem>>, vector<4x768xbf16>
    tpu.vector_store %arg16[%c40, %c0_144], %264 {strides = array<i32>} : memref<100x768xbf16, #tpu.memory_space<vmem>>, vector<4x768xbf16>,
    %c4_145 = arith.constant 4 : index
    %c127_146 = arith.constant 127 : index
    %266 = vector.load %arg14[%c4_145, %c127_146] : memref<8x1024xf32, #tpu.memory_space<vmem>>, vector<4x768xf32>
    %cst_147 = arith.constant 5.000000e-01 : f32
    %267 = vector.broadcast %cst_147 : f32 to vector<1x768xf32>
    %268 = arith.cmpf ogt, %9, %267 : vector<1x768xf32>
    %cst_148 = arith.constant 0.000000e+00 : f32
    %269 = vector.shape_cast %268 : vector<1x768xi1> to vector<1x768xi1>
    %270 = vector.broadcast %269 : vector<1x768xi1> to vector<4x768xi1>
    %271 = vector.broadcast %cst_148 : f32 to vector<4x768xf32>
    %272 = arith.select %270, %266, %271 : vector<4x768xi1>, vector<4x768xf32>
    %273 = arith.truncf %272 : vector<4x768xf32> to vector<4x768xbf16>
    %c44 = arith.constant 44 : index
    %c0_149 = arith.constant 0 : index
    %274 = vector.load %arg16[%c44, %c0_149] : memref<100x768xbf16, #tpu.memory_space<vmem>>, vector<4x768xbf16>
    tpu.vector_store %arg16[%c44, %c0_149], %273 {strides = array<i32>} : memref<100x768xbf16, #tpu.memory_space<vmem>>, vector<4x768xbf16>,
    %c4_150 = arith.constant 4 : index
    %c128_151 = arith.constant 128 : index
    %275 = vector.load %arg14[%c4_150, %c128_151] : memref<8x1024xf32, #tpu.memory_space<vmem>>, vector<4x768xf32>
    %276 = arith.truncf %275 : vector<4x768xf32> to vector<4x768xbf16>
    %c48 = arith.constant 48 : index
    %c0_152 = arith.constant 0 : index
    %277 = vector.load %arg16[%c48, %c0_152] : memref<100x768xbf16, #tpu.memory_space<vmem>>, vector<4x768xbf16>
    tpu.vector_store %arg16[%c48, %c0_152], %276 {strides = array<i32>} : memref<100x768xbf16, #tpu.memory_space<vmem>>, vector<4x768xbf16>,
    %c4_153 = arith.constant 4 : index
    %c129_154 = arith.constant 129 : index
    %278 = vector.load %arg14[%c4_153, %c129_154] : memref<8x1024xf32, #tpu.memory_space<vmem>>, vector<4x768xf32>
    %cst_155 = arith.constant 1.450000e+01 : f32
    %279 = vector.broadcast %cst_155 : f32 to vector<1x768xf32>
    %280 = arith.cmpf olt, %9, %279 : vector<1x768xf32>
    %cst_156 = arith.constant 0.000000e+00 : f32
    %281 = vector.shape_cast %280 : vector<1x768xi1> to vector<1x768xi1>
    %282 = vector.broadcast %281 : vector<1x768xi1> to vector<4x768xi1>
    %283 = vector.broadcast %cst_156 : f32 to vector<4x768xf32>
    %284 = arith.select %282, %278, %283 : vector<4x768xi1>, vector<4x768xf32>
    %285 = arith.truncf %284 : vector<4x768xf32> to vector<4x768xbf16>
    %c52 = arith.constant 52 : index
    %c0_157 = arith.constant 0 : index
    %286 = vector.load %arg16[%c52, %c0_157] : memref<100x768xbf16, #tpu.memory_space<vmem>>, vector<4x768xbf16>
    tpu.vector_store %arg16[%c52, %c0_157], %285 {strides = array<i32>} : memref<100x768xbf16, #tpu.memory_space<vmem>>, vector<4x768xbf16>,
    %c4_158 = arith.constant 4 : index
    %c130 = arith.constant 130 : index
    %287 = vector.load %arg14[%c4_158, %c130] : memref<8x1024xf32, #tpu.memory_space<vmem>>, vector<4x768xf32>
    %cst_159 = arith.constant 1.350000e+01 : f32
    %288 = vector.broadcast %cst_159 : f32 to vector<1x768xf32>
    %289 = arith.cmpf olt, %9, %288 : vector<1x768xf32>
    %cst_160 = arith.constant 0.000000e+00 : f32
    %290 = vector.shape_cast %289 : vector<1x768xi1> to vector<1x768xi1>
    %291 = vector.broadcast %290 : vector<1x768xi1> to vector<4x768xi1>
    %292 = vector.broadcast %cst_160 : f32 to vector<4x768xf32>
    %293 = arith.select %291, %287, %292 : vector<4x768xi1>, vector<4x768xf32>
    %294 = arith.truncf %293 : vector<4x768xf32> to vector<4x768xbf16>
    %c56 = arith.constant 56 : index
    %c0_161 = arith.constant 0 : index
    %295 = vector.load %arg16[%c56, %c0_161] : memref<100x768xbf16, #tpu.memory_space<vmem>>, vector<4x768xbf16>
    tpu.vector_store %arg16[%c56, %c0_161], %294 {strides = array<i32>} : memref<100x768xbf16, #tpu.memory_space<vmem>>, vector<4x768xbf16>,
    %c4_162 = arith.constant 4 : index
    %c142 = arith.constant 142 : index
    %296 = vector.load %arg14[%c4_162, %c142] : memref<8x1024xf32, #tpu.memory_space<vmem>>, vector<4x768xf32>
    %cst_163 = arith.constant 1.500000e+00 : f32
    %297 = vector.broadcast %cst_163 : f32 to vector<1x768xf32>
    %298 = arith.cmpf ogt, %9, %297 : vector<1x768xf32>
    %cst_164 = arith.constant 0.000000e+00 : f32
    %299 = vector.shape_cast %298 : vector<1x768xi1> to vector<1x768xi1>
    %300 = vector.broadcast %299 : vector<1x768xi1> to vector<4x768xi1>
    %301 = vector.broadcast %cst_164 : f32 to vector<4x768xf32>
    %302 = arith.select %300, %296, %301 : vector<4x768xi1>, vector<4x768xf32>
    %303 = arith.truncf %302 : vector<4x768xf32> to vector<4x768xbf16>
    %c60 = arith.constant 60 : index
    %c0_165 = arith.constant 0 : index
    %304 = vector.load %arg16[%c60, %c0_165] : memref<100x768xbf16, #tpu.memory_space<vmem>>, vector<4x768xbf16>
    tpu.vector_store %arg16[%c60, %c0_165], %303 {strides = array<i32>} : memref<100x768xbf16, #tpu.memory_space<vmem>>, vector<4x768xbf16>,
    %c4_166 = arith.constant 4 : index
    %c143_167 = arith.constant 143 : index
    %305 = vector.load %arg14[%c4_166, %c143_167] : memref<8x1024xf32, #tpu.memory_space<vmem>>, vector<4x768xf32>
    %cst_168 = arith.constant 5.000000e-01 : f32
    %306 = vector.broadcast %cst_168 : f32 to vector<1x768xf32>
    %307 = arith.cmpf ogt, %9, %306 : vector<1x768xf32>
    %cst_169 = arith.constant 0.000000e+00 : f32
    %308 = vector.shape_cast %307 : vector<1x768xi1> to vector<1x768xi1>
    %309 = vector.broadcast %308 : vector<1x768xi1> to vector<4x768xi1>
    %310 = vector.broadcast %cst_169 : f32 to vector<4x768xf32>
    %311 = arith.select %309, %305, %310 : vector<4x768xi1>, vector<4x768xf32>
    %312 = arith.truncf %311 : vector<4x768xf32> to vector<4x768xbf16>
    %c64 = arith.constant 64 : index
    %c0_170 = arith.constant 0 : index
    %313 = vector.load %arg16[%c64, %c0_170] : memref<100x768xbf16, #tpu.memory_space<vmem>>, vector<4x768xbf16>
    tpu.vector_store %arg16[%c64, %c0_170], %312 {strides = array<i32>} : memref<100x768xbf16, #tpu.memory_space<vmem>>, vector<4x768xbf16>,
    %c4_171 = arith.constant 4 : index
    %c144_172 = arith.constant 144 : index
    %314 = vector.load %arg14[%c4_171, %c144_172] : memref<8x1024xf32, #tpu.memory_space<vmem>>, vector<4x768xf32>
    %315 = arith.truncf %314 : vector<4x768xf32> to vector<4x768xbf16>
    %c68 = arith.constant 68 : index
    %c0_173 = arith.constant 0 : index
    %316 = vector.load %arg16[%c68, %c0_173] : memref<100x768xbf16, #tpu.memory_space<vmem>>, vector<4x768xbf16>
    tpu.vector_store %arg16[%c68, %c0_173], %315 {strides = array<i32>} : memref<100x768xbf16, #tpu.memory_space<vmem>>, vector<4x768xbf16>,
    %c4_174 = arith.constant 4 : index
    %c145_175 = arith.constant 145 : index
    %317 = vector.load %arg14[%c4_174, %c145_175] : memref<8x1024xf32, #tpu.memory_space<vmem>>, vector<4x768xf32>
    %cst_176 = arith.constant 1.450000e+01 : f32
    %318 = vector.broadcast %cst_176 : f32 to vector<1x768xf32>
    %319 = arith.cmpf olt, %9, %318 : vector<1x768xf32>
    %cst_177 = arith.constant 0.000000e+00 : f32
    %320 = vector.shape_cast %319 : vector<1x768xi1> to vector<1x768xi1>
    %321 = vector.broadcast %320 : vector<1x768xi1> to vector<4x768xi1>
    %322 = vector.broadcast %cst_177 : f32 to vector<4x768xf32>
    %323 = arith.select %321, %317, %322 : vector<4x768xi1>, vector<4x768xf32>
    %324 = arith.truncf %323 : vector<4x768xf32> to vector<4x768xbf16>
    %c72 = arith.constant 72 : index
    %c0_178 = arith.constant 0 : index
    %325 = vector.load %arg16[%c72, %c0_178] : memref<100x768xbf16, #tpu.memory_space<vmem>>, vector<4x768xbf16>
    tpu.vector_store %arg16[%c72, %c0_178], %324 {strides = array<i32>} : memref<100x768xbf16, #tpu.memory_space<vmem>>, vector<4x768xbf16>,
    %c4_179 = arith.constant 4 : index
    %c146 = arith.constant 146 : index
    %326 = vector.load %arg14[%c4_179, %c146] : memref<8x1024xf32, #tpu.memory_space<vmem>>, vector<4x768xf32>
    %cst_180 = arith.constant 1.350000e+01 : f32
    %327 = vector.broadcast %cst_180 : f32 to vector<1x768xf32>
    %328 = arith.cmpf olt, %9, %327 : vector<1x768xf32>
    %cst_181 = arith.constant 0.000000e+00 : f32
    %329 = vector.shape_cast %328 : vector<1x768xi1> to vector<1x768xi1>
    %330 = vector.broadcast %329 : vector<1x768xi1> to vector<4x768xi1>
    %331 = vector.broadcast %cst_181 : f32 to vector<4x768xf32>
    %332 = arith.select %330, %326, %331 : vector<4x768xi1>, vector<4x768xf32>
    %333 = arith.truncf %332 : vector<4x768xf32> to vector<4x768xbf16>
    %c76 = arith.constant 76 : index
    %c0_182 = arith.constant 0 : index
    %334 = vector.load %arg16[%c76, %c0_182] : memref<100x768xbf16, #tpu.memory_space<vmem>>, vector<4x768xbf16>
    tpu.vector_store %arg16[%c76, %c0_182], %333 {strides = array<i32>} : memref<100x768xbf16, #tpu.memory_space<vmem>>, vector<4x768xbf16>,
    %c4_183 = arith.constant 4 : index
    %c158 = arith.constant 158 : index
    %335 = vector.load %arg14[%c4_183, %c158] : memref<8x1024xf32, #tpu.memory_space<vmem>>, vector<4x768xf32>
    %cst_184 = arith.constant 1.500000e+00 : f32
    %336 = vector.broadcast %cst_184 : f32 to vector<1x768xf32>
    %337 = arith.cmpf ogt, %9, %336 : vector<1x768xf32>
    %cst_185 = arith.constant 0.000000e+00 : f32
    %338 = vector.shape_cast %337 : vector<1x768xi1> to vector<1x768xi1>
    %339 = vector.broadcast %338 : vector<1x768xi1> to vector<4x768xi1>
    %340 = vector.broadcast %cst_185 : f32 to vector<4x768xf32>
    %341 = arith.select %339, %335, %340 : vector<4x768xi1>, vector<4x768xf32>
    %342 = arith.truncf %341 : vector<4x768xf32> to vector<4x768xbf16>
    %c80 = arith.constant 80 : index
    %c0_186 = arith.constant 0 : index
    %343 = vector.load %arg16[%c80, %c0_186] : memref<100x768xbf16, #tpu.memory_space<vmem>>, vector<4x768xbf16>
    tpu.vector_store %arg16[%c80, %c0_186], %342 {strides = array<i32>} : memref<100x768xbf16, #tpu.memory_space<vmem>>, vector<4x768xbf16>,
    %c4_187 = arith.constant 4 : index
    %c159 = arith.constant 159 : index
    %344 = vector.load %arg14[%c4_187, %c159] : memref<8x1024xf32, #tpu.memory_space<vmem>>, vector<4x768xf32>
    %cst_188 = arith.constant 5.000000e-01 : f32
    %345 = vector.broadcast %cst_188 : f32 to vector<1x768xf32>
    %346 = arith.cmpf ogt, %9, %345 : vector<1x768xf32>
    %cst_189 = arith.constant 0.000000e+00 : f32
    %347 = vector.shape_cast %346 : vector<1x768xi1> to vector<1x768xi1>
    %348 = vector.broadcast %347 : vector<1x768xi1> to vector<4x768xi1>
    %349 = vector.broadcast %cst_189 : f32 to vector<4x768xf32>
    %350 = arith.select %348, %344, %349 : vector<4x768xi1>, vector<4x768xf32>
    %351 = arith.truncf %350 : vector<4x768xf32> to vector<4x768xbf16>
    %c84 = arith.constant 84 : index
    %c0_190 = arith.constant 0 : index
    %352 = vector.load %arg16[%c84, %c0_190] : memref<100x768xbf16, #tpu.memory_space<vmem>>, vector<4x768xbf16>
    tpu.vector_store %arg16[%c84, %c0_190], %351 {strides = array<i32>} : memref<100x768xbf16, #tpu.memory_space<vmem>>, vector<4x768xbf16>,
    %c4_191 = arith.constant 4 : index
    %c160 = arith.constant 160 : index
    %353 = vector.load %arg14[%c4_191, %c160] : memref<8x1024xf32, #tpu.memory_space<vmem>>, vector<4x768xf32>
    %354 = arith.truncf %353 : vector<4x768xf32> to vector<4x768xbf16>
    %c88 = arith.constant 88 : index
    %c0_192 = arith.constant 0 : index
    %355 = vector.load %arg16[%c88, %c0_192] : memref<100x768xbf16, #tpu.memory_space<vmem>>, vector<4x768xbf16>
    tpu.vector_store %arg16[%c88, %c0_192], %354 {strides = array<i32>} : memref<100x768xbf16, #tpu.memory_space<vmem>>, vector<4x768xbf16>,
    %c4_193 = arith.constant 4 : index
    %c161 = arith.constant 161 : index
    %356 = vector.load %arg14[%c4_193, %c161] : memref<8x1024xf32, #tpu.memory_space<vmem>>, vector<4x768xf32>
    %cst_194 = arith.constant 1.450000e+01 : f32
    %357 = vector.broadcast %cst_194 : f32 to vector<1x768xf32>
    %358 = arith.cmpf olt, %9, %357 : vector<1x768xf32>
    %cst_195 = arith.constant 0.000000e+00 : f32
    %359 = vector.shape_cast %358 : vector<1x768xi1> to vector<1x768xi1>
    %360 = vector.broadcast %359 : vector<1x768xi1> to vector<4x768xi1>
    %361 = vector.broadcast %cst_195 : f32 to vector<4x768xf32>
    %362 = arith.select %360, %356, %361 : vector<4x768xi1>, vector<4x768xf32>
    %363 = arith.truncf %362 : vector<4x768xf32> to vector<4x768xbf16>
    %c92 = arith.constant 92 : index
    %c0_196 = arith.constant 0 : index
    %364 = vector.load %arg16[%c92, %c0_196] : memref<100x768xbf16, #tpu.memory_space<vmem>>, vector<4x768xbf16>
    tpu.vector_store %arg16[%c92, %c0_196], %363 {strides = array<i32>} : memref<100x768xbf16, #tpu.memory_space<vmem>>, vector<4x768xbf16>,
    %c4_197 = arith.constant 4 : index
    %c162 = arith.constant 162 : index
    %365 = vector.load %arg14[%c4_197, %c162] : memref<8x1024xf32, #tpu.memory_space<vmem>>, vector<4x768xf32>
    %cst_198 = arith.constant 1.350000e+01 : f32
    %366 = vector.broadcast %cst_198 : f32 to vector<1x768xf32>
    %367 = arith.cmpf olt, %9, %366 : vector<1x768xf32>
    %cst_199 = arith.constant 0.000000e+00 : f32
    %368 = vector.shape_cast %367 : vector<1x768xi1> to vector<1x768xi1>
    %369 = vector.broadcast %368 : vector<1x768xi1> to vector<4x768xi1>
    %370 = vector.broadcast %cst_199 : f32 to vector<4x768xf32>
    %371 = arith.select %369, %365, %370 : vector<4x768xi1>, vector<4x768xf32>
    %372 = arith.truncf %371 : vector<4x768xf32> to vector<4x768xbf16>
    %c96_200 = arith.constant 96 : index
    %c0_201 = arith.constant 0 : index
    %373 = vector.load %arg16[%c96_200, %c0_201] : memref<100x768xbf16, #tpu.memory_space<vmem>>, vector<4x768xbf16>
    tpu.vector_store %arg16[%c96_200, %c0_201], %372 {strides = array<i32>} : memref<100x768xbf16, #tpu.memory_space<vmem>>, vector<4x768xbf16>,
    %c0_202 = arith.constant 0 : index
    %c0_203 = arith.constant 0 : index
    %374 = vector.load %arg7[%c0_202, %c0_203] : memref<8x100xbf16, #tpu.memory_space<vmem>>, vector<8x100xbf16>
    %c0_204 = arith.constant 0 : index
    %c0_205 = arith.constant 0 : index
    %375 = vector.load %arg16[%c0_204, %c0_205] : memref<100x768xbf16, #tpu.memory_space<vmem>>, vector<100x768xbf16>
    %cst_206 = arith.constant dense<0.000000e+00> : vector<8x768xf32>
    %376 = tpu.matmul %374, %375, %cst_206 {dimension_numbers = #tpu.dot_dimension_numbers<[1], [0], [0], [1], [0, 0, 1, 1], [], []>} : vector<8x100xbf16>, vector<100x768xbf16>, vector<8x768xf32> -> vector<8x768xf32>
    %cst_207 = arith.constant 0.000000e+00 : f32
    %377 = vector.shape_cast %19 : vector<1x768xi1> to vector<1x768xi1>
    %378 = vector.broadcast %377 : vector<1x768xi1> to vector<8x768xi1>
    %379 = vector.broadcast %cst_207 : f32 to vector<8x768xf32>
    %380 = arith.select %378, %376, %379 : vector<8x768xi1>, vector<8x768xf32>
    %c0_208 = arith.constant 0 : index
    %c0_209 = arith.constant 0 : index
    %381 = vector.load %arg8[%c0_208, %c0_209] : memref<8x1xf32, #tpu.memory_space<vmem>>, vector<8x1xf32>
    %c0_210 = arith.constant 0 : index
    %c0_211 = arith.constant 0 : index
    %382 = vector.load %arg9[%c0_210, %c0_211] : memref<8x1xf32, #tpu.memory_space<vmem>>, vector<8x1xf32>
    %cst_212 = arith.constant dense<0.000000e+00> : vector<8xf32>
    %383 = vector.multi_reduction <add>, %380, %cst_212 [1] : vector<8x768xf32> to vector<8xf32>
    %384 = vector.shape_cast %383 : vector<8xf32> to vector<8x1xf32>
    %cst_213 = arith.constant 0.001953125 : f32
    %385 = vector.broadcast %cst_213 : f32 to vector<8x1xf32>
    %386 = arith.mulf %384, %385 : vector<8x1xf32>
    %387 = arith.mulf %380, %380 : vector<8x768xf32>
    %cst_214 = arith.constant dense<0.000000e+00> : vector<8xf32>
    %388 = vector.multi_reduction <add>, %387, %cst_214 [1] : vector<8x768xf32> to vector<8xf32>
    %389 = vector.shape_cast %388 : vector<8xf32> to vector<8x1xf32>
    %cst_215 = arith.constant 0.001953125 : f32
    %390 = vector.broadcast %cst_215 : f32 to vector<8x1xf32>
    %391 = arith.mulf %389, %390 : vector<8x1xf32>
    %392 = arith.mulf %386, %386 : vector<8x1xf32>
    %393 = arith.subf %391, %392 : vector<8x1xf32>
    %cst_216 = arith.constant 0.000000e+00 : f32
    %394 = vector.broadcast %cst_216 : f32 to vector<8x1xf32>
    %395 = arith.maximumf %393, %394 : vector<8x1xf32>
    %396 = vector.broadcast %386 : vector<8x1xf32> to vector<8x768xf32>
    %397 = arith.subf %380, %396 : vector<8x768xf32>
    %cst_217 = arith.constant 9.99999974E-6 : f32
    %398 = vector.broadcast %cst_217 : f32 to vector<8x1xf32>
    %399 = arith.addf %395, %398 : vector<8x1xf32>
    %400 = math.rsqrt %399 : vector<8x1xf32>
    %401 = arith.mulf %400, %381 : vector<8x1xf32>
    %402 = vector.broadcast %401 : vector<8x1xf32> to vector<8x768xf32>
    %403 = arith.mulf %397, %402 : vector<8x768xf32>
    %404 = vector.broadcast %382 : vector<8x1xf32> to vector<8x768xf32>
    %405 = arith.addf %403, %404 : vector<8x768xf32>
    %cst_218 = arith.constant 0.000000e+00 : f32
    %406 = vector.broadcast %cst_218 : f32 to vector<8x768xf32>
    %407 = arith.maximumf %405, %406 : vector<8x768xf32>
    %408 = vector.extract_strided_slice %407 {offsets = [0, 0], sizes = [8, 256], strides = [1, 1]} : vector<8x768xf32> to vector<8x256xf32>
    %c0_219 = arith.constant 0 : index
    %c16_220 = arith.constant 16 : index
    %c0_221 = arith.constant 0 : index
    %409 = vector.load %arg13[%c0_219, %c16_220, %c0_221] : memref<2x32x256xf32, #tpu.memory_space<vmem>>, vector<1x8x256xf32>
    %410 = vector.shape_cast %409 : vector<1x8x256xf32> to vector<8x256xf32>
    %411 = vector.shape_cast %408 : vector<8x256xf32> to vector<1x8x256xf32>
    tpu.vector_store %arg13[%c0_219, %c16_220, %c0_221], %411 {strides = array<i32>} : memref<2x32x256xf32, #tpu.memory_space<vmem>>, vector<1x8x256xf32>,
    %412 = vector.extract_strided_slice %407 {offsets = [0, 384], sizes = [8, 256], strides = [1, 1]} : vector<8x768xf32> to vector<8x256xf32>
    %c1_222 = arith.constant 1 : index
    %c16_223 = arith.constant 16 : index
    %c0_224 = arith.constant 0 : index
    %413 = vector.load %arg13[%c1_222, %c16_223, %c0_224] : memref<2x32x256xf32, #tpu.memory_space<vmem>>, vector<1x8x256xf32>
    %414 = vector.shape_cast %413 : vector<1x8x256xf32> to vector<8x256xf32>
    %415 = vector.shape_cast %412 : vector<8x256xf32> to vector<1x8x256xf32>
    tpu.vector_store %arg13[%c1_222, %c16_223, %c0_224], %415 {strides = array<i32>} : memref<2x32x256xf32, #tpu.memory_space<vmem>>, vector<1x8x256xf32>,
    %cst_225 = arith.constant -1.000000e+30 : f32
    %416 = vector.broadcast %cst_225 : f32 to vector<4x128xf32>
    %c0_226 = arith.constant 0 : index
    %c0_227 = arith.constant 0 : index
    %417 = vector.load %arg17[%c0_226, %c0_227] : memref<4x1024xf32, #tpu.memory_space<vmem>>, vector<4x128xf32>
    tpu.vector_store %arg17[%c0_226, %c0_227], %416 {strides = array<i32>} : memref<4x1024xf32, #tpu.memory_space<vmem>>, vector<4x128xf32>,
    %c0_228 = arith.constant 0 : index
    %c896_229 = arith.constant 896 : index
    %418 = vector.load %arg17[%c0_228, %c896_229] : memref<4x1024xf32, #tpu.memory_space<vmem>>, vector<4x128xf32>
    tpu.vector_store %arg17[%c0_228, %c896_229], %416 {strides = array<i32>} : memref<4x1024xf32, #tpu.memory_space<vmem>>, vector<4x128xf32>,
    %c0_230 = arith.constant 0 : index
    %c0_231 = arith.constant 0 : index
    %c0_232 = arith.constant 0 : index
    %419 = vector.load %arg0[%c0_230, %c0_231, %c0_232] : memref<2x4x256xf32, #tpu.memory_space<vmem>>, vector<1x4x256xf32>
    %420 = vector.shape_cast %419 : vector<1x4x256xf32> to vector<4x256xf32>
    %c0_233 = arith.constant 0 : index
    %c128_234 = arith.constant 128 : index
    %421 = vector.load %arg17[%c0_233, %c128_234] : memref<4x1024xf32, #tpu.memory_space<vmem>>, vector<4x256xf32>
    tpu.vector_store %arg17[%c0_233, %c128_234], %420 {strides = array<i32>} : memref<4x1024xf32, #tpu.memory_space<vmem>>, vector<4x256xf32>,
    %cst_235 = arith.constant -1.000000e+30 : f32
    %422 = vector.broadcast %cst_235 : f32 to vector<4x128xf32>
    %c0_236 = arith.constant 0 : index
    %c384 = arith.constant 384 : index
    %423 = vector.load %arg17[%c0_236, %c384] : memref<4x1024xf32, #tpu.memory_space<vmem>>, vector<4x128xf32>
    tpu.vector_store %arg17[%c0_236, %c384], %422 {strides = array<i32>} : memref<4x1024xf32, #tpu.memory_space<vmem>>, vector<4x128xf32>,
    %c1_237 = arith.constant 1 : index
    %c0_238 = arith.constant 0 : index
    %c0_239 = arith.constant 0 : index
    %424 = vector.load %arg0[%c1_237, %c0_238, %c0_239] : memref<2x4x256xf32, #tpu.memory_space<vmem>>, vector<1x4x256xf32>
    %425 = vector.shape_cast %424 : vector<1x4x256xf32> to vector<4x256xf32>
    %c0_240 = arith.constant 0 : index
    %c512 = arith.constant 512 : index
    %426 = vector.load %arg17[%c0_240, %c512] : memref<4x1024xf32, #tpu.memory_space<vmem>>, vector<4x256xf32>
    tpu.vector_store %arg17[%c0_240, %c512], %425 {strides = array<i32>} : memref<4x1024xf32, #tpu.memory_space<vmem>>, vector<4x256xf32>,
    %cst_241 = arith.constant -1.000000e+30 : f32
    %427 = vector.broadcast %cst_241 : f32 to vector<4x128xf32>
    %c0_242 = arith.constant 0 : index
    %c768 = arith.constant 768 : index
    %428 = vector.load %arg17[%c0_242, %c768] : memref<4x1024xf32, #tpu.memory_space<vmem>>, vector<4x128xf32>
    tpu.vector_store %arg17[%c0_242, %c768], %427 {strides = array<i32>} : memref<4x1024xf32, #tpu.memory_space<vmem>>, vector<4x128xf32>,
    %c0_243 = arith.constant 0 : index
    %c111_244 = arith.constant 111 : index
    %429 = vector.load %arg17[%c0_243, %c111_244] : memref<4x1024xf32, #tpu.memory_space<vmem>>, vector<4x768xf32>
    %cst_245 = arith.constant 5.000000e-01 : f32
    %430 = vector.broadcast %cst_245 : f32 to vector<1x768xf32>
    %431 = arith.cmpf ogt, %9, %430 : vector<1x768xf32>
    %cst_246 = arith.constant -1.000000e+30 : f32
    %432 = vector.shape_cast %431 : vector<1x768xi1> to vector<1x768xi1>
    %433 = vector.broadcast %432 : vector<1x768xi1> to vector<4x768xi1>
    %434 = vector.broadcast %cst_246 : f32 to vector<4x768xf32>
    %435 = arith.select %433, %429, %434 : vector<4x768xi1>, vector<4x768xf32>
    %c0_247 = arith.constant 0 : index
    %c112_248 = arith.constant 112 : index
    %436 = vector.load %arg17[%c0_247, %c112_248] : memref<4x1024xf32, #tpu.memory_space<vmem>>, vector<4x768xf32>
    %437 = arith.maximumf %435, %436 : vector<4x768xf32>
    %c0_249 = arith.constant 0 : index
    %c113_250 = arith.constant 113 : index
    %438 = vector.load %arg17[%c0_249, %c113_250] : memref<4x1024xf32, #tpu.memory_space<vmem>>, vector<4x768xf32>
    %cst_251 = arith.constant 1.450000e+01 : f32
    %439 = vector.broadcast %cst_251 : f32 to vector<1x768xf32>
    %440 = arith.cmpf olt, %9, %439 : vector<1x768xf32>
    %cst_252 = arith.constant -1.000000e+30 : f32
    %441 = vector.shape_cast %440 : vector<1x768xi1> to vector<1x768xi1>
    %442 = vector.broadcast %441 : vector<1x768xi1> to vector<4x768xi1>
    %443 = vector.broadcast %cst_252 : f32 to vector<4x768xf32>
    %444 = arith.select %442, %438, %443 : vector<4x768xi1>, vector<4x768xf32>
    %445 = arith.maximumf %437, %444 : vector<4x768xf32>
    %c0_253 = arith.constant 0 : index
    %c127_254 = arith.constant 127 : index
    %446 = vector.load %arg17[%c0_253, %c127_254] : memref<4x1024xf32, #tpu.memory_space<vmem>>, vector<4x768xf32>
    %cst_255 = arith.constant 5.000000e-01 : f32
    %447 = vector.broadcast %cst_255 : f32 to vector<1x768xf32>
    %448 = arith.cmpf ogt, %9, %447 : vector<1x768xf32>
    %cst_256 = arith.constant -1.000000e+30 : f32
    %449 = vector.shape_cast %448 : vector<1x768xi1> to vector<1x768xi1>
    %450 = vector.broadcast %449 : vector<1x768xi1> to vector<4x768xi1>
    %451 = vector.broadcast %cst_256 : f32 to vector<4x768xf32>
    %452 = arith.select %450, %446, %451 : vector<4x768xi1>, vector<4x768xf32>
    %453 = arith.maximumf %445, %452 : vector<4x768xf32>
    %c0_257 = arith.constant 0 : index
    %c128_258 = arith.constant 128 : index
    %454 = vector.load %arg17[%c0_257, %c128_258] : memref<4x1024xf32, #tpu.memory_space<vmem>>, vector<4x768xf32>
    %455 = arith.maximumf %453, %454 : vector<4x768xf32>
    %c0_259 = arith.constant 0 : index
    %c129_260 = arith.constant 129 : index
    %456 = vector.load %arg17[%c0_259, %c129_260] : memref<4x1024xf32, #tpu.memory_space<vmem>>, vector<4x768xf32>
    %cst_261 = arith.constant 1.450000e+01 : f32
    %457 = vector.broadcast %cst_261 : f32 to vector<1x768xf32>
    %458 = arith.cmpf olt, %9, %457 : vector<1x768xf32>
    %cst_262 = arith.constant -1.000000e+30 : f32
    %459 = vector.shape_cast %458 : vector<1x768xi1> to vector<1x768xi1>
    %460 = vector.broadcast %459 : vector<1x768xi1> to vector<4x768xi1>
    %461 = vector.broadcast %cst_262 : f32 to vector<4x768xf32>
    %462 = arith.select %460, %456, %461 : vector<4x768xi1>, vector<4x768xf32>
    %463 = arith.maximumf %455, %462 : vector<4x768xf32>
    %c0_263 = arith.constant 0 : index
    %c143_264 = arith.constant 143 : index
    %464 = vector.load %arg17[%c0_263, %c143_264] : memref<4x1024xf32, #tpu.memory_space<vmem>>, vector<4x768xf32>
    %cst_265 = arith.constant 5.000000e-01 : f32
    %465 = vector.broadcast %cst_265 : f32 to vector<1x768xf32>
    %466 = arith.cmpf ogt, %9, %465 : vector<1x768xf32>
    %cst_266 = arith.constant -1.000000e+30 : f32
    %467 = vector.shape_cast %466 : vector<1x768xi1> to vector<1x768xi1>
    %468 = vector.broadcast %467 : vector<1x768xi1> to vector<4x768xi1>
    %469 = vector.broadcast %cst_266 : f32 to vector<4x768xf32>
    %470 = arith.select %468, %464, %469 : vector<4x768xi1>, vector<4x768xf32>
    %471 = arith.maximumf %463, %470 : vector<4x768xf32>
    %c0_267 = arith.constant 0 : index
    %c144_268 = arith.constant 144 : index
    %472 = vector.load %arg17[%c0_267, %c144_268] : memref<4x1024xf32, #tpu.memory_space<vmem>>, vector<4x768xf32>
    %473 = arith.maximumf %471, %472 : vector<4x768xf32>
    %c0_269 = arith.constant 0 : index
    %c145_270 = arith.constant 145 : index
    %474 = vector.load %arg17[%c0_269, %c145_270] : memref<4x1024xf32, #tpu.memory_space<vmem>>, vector<4x768xf32>
    %cst_271 = arith.constant 1.450000e+01 : f32
    %475 = vector.broadcast %cst_271 : f32 to vector<1x768xf32>
    %476 = arith.cmpf olt, %9, %475 : vector<1x768xf32>
    %cst_272 = arith.constant -1.000000e+30 : f32
    %477 = vector.shape_cast %476 : vector<1x768xi1> to vector<1x768xi1>
    %478 = vector.broadcast %477 : vector<1x768xi1> to vector<4x768xi1>
    %479 = vector.broadcast %cst_272 : f32 to vector<4x768xf32>
    %480 = arith.select %478, %474, %479 : vector<4x768xi1>, vector<4x768xf32>
    %481 = arith.maximumf %473, %480 : vector<4x768xf32>
    %cst_273 = arith.constant 0.000000e+00 : f32
    %482 = vector.shape_cast %19 : vector<1x768xi1> to vector<1x768xi1>
    %483 = vector.broadcast %482 : vector<1x768xi1> to vector<4x768xi1>
    %484 = vector.broadcast %cst_273 : f32 to vector<4x768xf32>
    %485 = arith.select %483, %481, %484 : vector<4x768xi1>, vector<4x768xf32>
    %c0_274 = arith.constant 0 : index
    %c0_275 = arith.constant 0 : index
    %486 = vector.load %arg10[%c0_274, %c0_275] : memref<8x4xbf16, #tpu.memory_space<vmem>>, vector<8x4xbf16>
    %487 = arith.truncf %485 : vector<4x768xf32> to vector<4x768xbf16>
    %cst_276 = arith.constant dense<0.000000e+00> : vector<8x768xf32>
    %488 = tpu.matmul %486, %487, %cst_276 {dimension_numbers = #tpu.dot_dimension_numbers<[1], [0], [0], [1], [0, 0, 1, 1], [], []>} : vector<8x4xbf16>, vector<4x768xbf16>, vector<8x768xf32> -> vector<8x768xf32>
    %c0_277 = arith.constant 0 : index
    %c0_278 = arith.constant 0 : index
    %489 = vector.load %arg11[%c0_277, %c0_278] : memref<8x1xf32, #tpu.memory_space<vmem>>, vector<8x1xf32>
    %c0_279 = arith.constant 0 : index
    %c0_280 = arith.constant 0 : index
    %490 = vector.load %arg12[%c0_279, %c0_280] : memref<8x1xf32, #tpu.memory_space<vmem>>, vector<8x1xf32>
    %cst_281 = arith.constant dense<0.000000e+00> : vector<8xf32>
    %491 = vector.multi_reduction <add>, %488, %cst_281 [1] : vector<8x768xf32> to vector<8xf32>
    %492 = vector.shape_cast %491 : vector<8xf32> to vector<8x1xf32>
    %cst_282 = arith.constant 0.001953125 : f32
    %493 = vector.broadcast %cst_282 : f32 to vector<8x1xf32>
    %494 = arith.mulf %492, %493 : vector<8x1xf32>
    %495 = arith.mulf %488, %488 : vector<8x768xf32>
    %cst_283 = arith.constant dense<0.000000e+00> : vector<8xf32>
    %496 = vector.multi_reduction <add>, %495, %cst_283 [1] : vector<8x768xf32> to vector<8xf32>
    %497 = vector.shape_cast %496 : vector<8xf32> to vector<8x1xf32>
    %cst_284 = arith.constant 0.001953125 : f32
    %498 = vector.broadcast %cst_284 : f32 to vector<8x1xf32>
    %499 = arith.mulf %497, %498 : vector<8x1xf32>
    %500 = arith.mulf %494, %494 : vector<8x1xf32>
    %501 = arith.subf %499, %500 : vector<8x1xf32>
    %cst_285 = arith.constant 0.000000e+00 : f32
    %502 = vector.broadcast %cst_285 : f32 to vector<8x1xf32>
    %503 = arith.maximumf %501, %502 : vector<8x1xf32>
    %504 = vector.broadcast %494 : vector<8x1xf32> to vector<8x768xf32>
    %505 = arith.subf %488, %504 : vector<8x768xf32>
    %cst_286 = arith.constant 9.99999974E-6 : f32
    %506 = vector.broadcast %cst_286 : f32 to vector<8x1xf32>
    %507 = arith.addf %503, %506 : vector<8x1xf32>
    %508 = math.rsqrt %507 : vector<8x1xf32>
    %509 = arith.mulf %508, %489 : vector<8x1xf32>
    %510 = vector.broadcast %509 : vector<8x1xf32> to vector<8x768xf32>
    %511 = arith.mulf %505, %510 : vector<8x768xf32>
    %512 = vector.broadcast %490 : vector<8x1xf32> to vector<8x768xf32>
    %513 = arith.addf %511, %512 : vector<8x768xf32>
    %cst_287 = arith.constant 0.000000e+00 : f32
    %514 = vector.broadcast %cst_287 : f32 to vector<8x768xf32>
    %515 = arith.maximumf %513, %514 : vector<8x768xf32>
    %516 = vector.extract_strided_slice %515 {offsets = [0, 0], sizes = [8, 256], strides = [1, 1]} : vector<8x768xf32> to vector<8x256xf32>
    %c0_288 = arith.constant 0 : index
    %c24_289 = arith.constant 24 : index
    %c0_290 = arith.constant 0 : index
    %517 = vector.load %arg13[%c0_288, %c24_289, %c0_290] : memref<2x32x256xf32, #tpu.memory_space<vmem>>, vector<1x8x256xf32>
    %518 = vector.shape_cast %517 : vector<1x8x256xf32> to vector<8x256xf32>
    %519 = vector.shape_cast %516 : vector<8x256xf32> to vector<1x8x256xf32>
    tpu.vector_store %arg13[%c0_288, %c24_289, %c0_290], %519 {strides = array<i32>} : memref<2x32x256xf32, #tpu.memory_space<vmem>>, vector<1x8x256xf32>,
    %520 = vector.extract_strided_slice %515 {offsets = [0, 384], sizes = [8, 256], strides = [1, 1]} : vector<8x768xf32> to vector<8x256xf32>
    %c1_291 = arith.constant 1 : index
    %c24_292 = arith.constant 24 : index
    %c0_293 = arith.constant 0 : index
    %521 = vector.load %arg13[%c1_291, %c24_292, %c0_293] : memref<2x32x256xf32, #tpu.memory_space<vmem>>, vector<1x8x256xf32>
    %522 = vector.shape_cast %521 : vector<1x8x256xf32> to vector<8x256xf32>
    %523 = vector.shape_cast %520 : vector<8x256xf32> to vector<1x8x256xf32>
    tpu.vector_store %arg13[%c1_291, %c24_292, %c0_293], %523 {strides = array<i32>} : memref<2x32x256xf32, #tpu.memory_space<vmem>>, vector<1x8x256xf32>,
    return
  }
}

</mosaic_0001>

<llo_original>
// kernel: inception_v1_forward.1
$region0: #{inception_v1_forward.1}
  #allocation0 [shape = 'u32[]', space=smem, size = 0x4, offset = 0x4, fixed_abs, tag = 'smem constant byte address 0x4 - core index']
  #allocation1 [shape = 'u32[72,128]{1,0:T(1,128)}', space=vmem, size = 0x9000, scoped, tag = 'internal scratch']
  #allocation2 [shape = 'f32[8,1024]{1,0:T(8,128)}', space=vmem, size = 0x8000, scoped, tag = 'scratch operand']
  #allocation3 [shape = 'bf16[36,768]{1,0:T(8,128)(2,1)}', space=vmem, size = 0xf000, scoped, tag = 'scratch operand']
  #allocation4 [shape = 'bf16[100,768]{1,0:T(8,128)(2,1)}', space=vmem, size = 0x27000, scoped, tag = 'scratch operand']
  #allocation5 [shape = 'f32[4,1024]{1,0:T(4,128)}', space=vmem, size = 0x4000, scoped, tag = 'scratch operand']
  %s0 = inlined_call_operand.vmem [shape: f32[2,4,256], index: 0, kind: input, shape index: {}]
  %s1 = inlined_call_operand.vmem [shape: bf16[16,4], index: 1, kind: input, shape index: {}]
  %s2 = inlined_call_operand.vmem [shape: f32[16,1], index: 2, kind: input, shape index: {}]
  %s3 = inlined_call_operand.vmem [shape: f32[16,1], index: 3, kind: input, shape index: {}]
  %s4 = inlined_call_operand.vmem [shape: bf16[8,36], index: 4, kind: input, shape index: {}]
  %s5 = inlined_call_operand.vmem [shape: f32[8,1], index: 5, kind: input, shape index: {}]
  %s6 = inlined_call_operand.vmem [shape: f32[8,1], index: 6, kind: input, shape index: {}]
  %s7 = inlined_call_operand.vmem [shape: bf16[8,100], index: 7, kind: input, shape index: {}]
  %s8 = inlined_call_operand.vmem [shape: f32[8,1], index: 8, kind: input, shape index: {}]
  %s9 = inlined_call_operand.vmem [shape: f32[8,1], index: 9, kind: input, shape index: {}]
  %s10 = inlined_call_operand.vmem [shape: bf16[8,4], index: 10, kind: input, shape index: {}]
  %s11 = inlined_call_operand.vmem [shape: f32[8,1], index: 11, kind: input, shape index: {}]
  %s12 = inlined_call_operand.vmem [shape: f32[8,1], index: 12, kind: input, shape index: {}]
  %s13 = inlined_call_operand.vmem [shape: f32[2,32,256], index: 13, kind: output, shape index: {}]
  %s14 = sld [smem:[#allocation0]]
  $region62: #{inception_v1_forward.1} parent=0
    _
  %s16 = ssub.s32 1, %s14
  %s17 = scalar_select 0, %s16, %s14
  // Predicated region
  $region2: #{inception_v1_forward.1} parent=0 // pred_check
    _
  $region3: #{inception_v1_forward.1} parent=0 // pred_check_branch
    %19 = sbr.rel (0) target = $region5
  $region4: #{inception_v1_forward.1} parent=0 // pred_region
    _
  $region5: #{inception_v1_forward.1} parent=0 // pred_fallthru
    _
  // Predicated region
  $region6: #{inception_v1_forward.1} parent=0 // pred_check
    _
  $region7: #{inception_v1_forward.1} parent=0 // pred_check_branch
    %21 = sbr.rel (0) target = $region9
  $region8: #{inception_v1_forward.1} parent=0 // pred_region
    _
  $region9: #{inception_v1_forward.1} parent=0 // pred_fallthru
    _
  // Predicated region
  $region10: #{inception_v1_forward.1} parent=0 // pred_check
    _
  $region11: #{inception_v1_forward.1} parent=0 // pred_check_branch
    %23 = sbr.rel (0) target = $region13
  $region12: #{inception_v1_forward.1} parent=0 // pred_region
    _
  $region13: #{inception_v1_forward.1} parent=0 // pred_fallthru
    _
  // Predicated region
  $region14: #{inception_v1_forward.1} parent=0 // pred_check
    _
  $region15: #{inception_v1_forward.1} parent=0 // pred_check_branch
    %25 = sbr.rel (0) target = $region17
  $region16: #{inception_v1_forward.1} parent=0 // pred_region
    _
  $region17: #{inception_v1_forward.1} parent=0 // pred_fallthru
    _
  // Predicated region
  $region18: #{inception_v1_forward.1} parent=0 // pred_check
    _
  $region19: #{inception_v1_forward.1} parent=0 // pred_check_branch
    %27 = sbr.rel (0) target = $region21
  $region20: #{inception_v1_forward.1} parent=0 // pred_region
    _
  $region21: #{inception_v1_forward.1} parent=0 // pred_fallthru
    _
  // Predicated region
  $region22: #{inception_v1_forward.1} parent=0 // pred_check
    _
  $region23: #{inception_v1_forward.1} parent=0 // pred_check_branch
    %29 = sbr.rel (0) target = $region25
  $region24: #{inception_v1_forward.1} parent=0 // pred_region
    _
  $region25: #{inception_v1_forward.1} parent=0 // pred_fallthru
    _
  // Predicated region
  $region26: #{inception_v1_forward.1} parent=0 // pred_check
    _
  $region27: #{inception_v1_forward.1} parent=0 // pred_check_branch
    %31 = sbr.rel (0) target = $region29
  $region28: #{inception_v1_forward.1} parent=0 // pred_region
    _
  $region29: #{inception_v1_forward.1} parent=0 // pred_fallthru
    _
  // Predicated region
  $region30: #{inception_v1_forward.1} parent=0 // pred_check
    _
  $region31: #{inception_v1_forward.1} parent=0 // pred_check_branch
    %33 = sbr.rel (0) target = $region33
  $region32: #{inception_v1_forward.1} parent=0 // pred_region
    _
  $region33: #{inception_v1_forward.1} parent=0 // pred_fallthru
    _
  // Predicated region
  $region34: #{inception_v1_forward.1} parent=0 // pred_check
    _
  $region35: #{inception_v1_forward.1} parent=0 // pred_check_branch
    %35 = sbr.rel (0) target = $region37
  $region36: #{inception_v1_forward.1} parent=0 // pred_region
    _
  $region37: #{inception_v1_forward.1} parent=0 // pred_fallthru
    _
  // Predicated region
  $region38: #{inception_v1_forward.1} parent=0 // pred_check
    _
  $region39: #{inception_v1_forward.1} parent=0 // pred_check_branch
    %37 = sbr.rel (0) target = $region41
  $region40: #{inception_v1_forward.1} parent=0 // pred_region
    _
  $region41: #{inception_v1_forward.1} parent=0 // pred_fallthru
    _
  // Predicated region
  $region42: #{inception_v1_forward.1} parent=0 // pred_check
    _
  $region43: #{inception_v1_forward.1} parent=0 // pred_check_branch
    %39 = sbr.rel (0) target = $region45
  $region44: #{inception_v1_forward.1} parent=0 // pred_region
    _
  $region45: #{inception_v1_forward.1} parent=0 // pred_fallthru
    _
  // Predicated region
  $region46: #{inception_v1_forward.1} parent=0 // pred_check
    _
  $region47: #{inception_v1_forward.1} parent=0 // pred_check_branch
    %41 = sbr.rel (0) target = $region49
  $region48: #{inception_v1_forward.1} parent=0 // pred_region
    _
  $region49: #{inception_v1_forward.1} parent=0 // pred_fallthru
    _
  // Predicated region
  $region50: #{inception_v1_forward.1} parent=0 // pred_check
    _
  $region51: #{inception_v1_forward.1} parent=0 // pred_check_branch
    %43 = sbr.rel (0) target = $region53
  $region52: #{inception_v1_forward.1} parent=0 // pred_region
    _
  $region53: #{inception_v1_forward.1} parent=0 // pred_fallthru
    _
  %v45 = vlaneseq
  %v46 = vand.u32 %v45, 127
  %v47 = vadd.s32 %v46, 128
  %v48 = vadd.s32 %v46, 256
  %v49 = vadd.s32 %v46, 384
  %v50 = vadd.s32 %v46, 512
  %v51 = vadd.s32 %v46, 640
  %v52 = vcvt.s32.f32 %v46
  %v53 = vcvt.s32.f32 %v47
  %v54 = vcvt.s32.f32 %v48
  %v55 = vcvt.s32.f32 %v49
  %v56 = vcvt.s32.f32 %v50
  %v57 = vcvt.s32.f32 %v51
  %v58 = vadd.f32 %v52, 0.5
  %v59 = vadd.f32 %v53, 0.5
  %v60 = vadd.f32 %v54, 0.5
  %v61 = vadd.f32 %v55, 0.5
  %v62 = vadd.f32 %v56, 0.5
  %v63 = vadd.f32 %v57, 0.5
  %v64 = vmul.f32 %v58, 0.0625
  %v65 = vmul.f32 %v59, 0.0625
  %v66 = vmul.f32 %v60, 0.0625
  %v67 = vmul.f32 %v61, 0.0625
  %v68 = vmul.f32 %v62, 0.0625
  %v69 = vmul.f32 %v63, 0.0625
  %v70 = vfloor.f32 %v64
  %v71 = vfloor.f32 %v65
  %v72 = vfloor.f32 %v66
  %v73 = vfloor.f32 %v67
  %v74 = vfloor.f32 %v68
  %v75 = vfloor.f32 %v69
  %v76 = vmul.f32 %v70, 16.0
  %v77 = vmul.f32 %v71, 16.0
  %v78 = vmul.f32 %v72, 16.0
  %v79 = vmul.f32 %v73, 16.0
  %v80 = vmul.f32 %v74, 16.0
  %v81 = vmul.f32 %v75, 16.0
  %v82 = vsub.f32 %v52, %v76
  %v83 = vsub.f32 %v53, %v77
  %v84 = vsub.f32 %v54, %v78
  %v85 = vsub.f32 %v55, %v79
  %v86 = vsub.f32 %v56, %v80
  %v87 = vsub.f32 %v57, %v81
  %v88 = vmul.f32 %v58, 0.0026041667
  %v89 = vmul.f32 %v59, 0.0026041667
  %v90 = vmul.f32 %v60, 0.0026041667
  %v91 = vmul.f32 %v61, 0.0026041667
  %v92 = vmul.f32 %v62, 0.0026041667
  %v93 = vmul.f32 %v63, 0.0026041667
  %v94 = vfloor.f32 %v88
  %v95 = vfloor.f32 %v89
  %v96 = vfloor.f32 %v90
  %v97 = vfloor.f32 %v91
  %v98 = vfloor.f32 %v92
  %v99 = vfloor.f32 %v93
  %v100 = vmul.f32 %v94, 384.0
  %v101 = vmul.f32 %v95, 384.0
  %v102 = vmul.f32 %v96, 384.0
  %v103 = vmul.f32 %v97, 384.0
  %v104 = vmul.f32 %v98, 384.0
  %v105 = vmul.f32 %v99, 384.0
  %v106 = vsub.f32 %v52, %v100
  %v107 = vsub.f32 %v53, %v101
  %v108 = vsub.f32 %v54, %v102
  %v109 = vsub.f32 %v55, %v103
  %v110 = vsub.f32 %v56, %v104
  %v111 = vsub.f32 %v57, %v105
  %vm112 = vcmp.lt.f32.partialorder %v106, 255.5
  %vm113 = vcmp.lt.f32.partialorder %v107, 255.5
  %vm114 = vcmp.lt.f32.partialorder %v108, 255.5
  %vm115 = vcmp.lt.f32.partialorder %v109, 255.5
  %vm116 = vcmp.lt.f32.partialorder %v110, 255.5
  %vm117 = vcmp.lt.f32.partialorder %v111, 255.5
  %v118 = vld [vmem:[%s0] sm:$0xff]
  %s119 = scalar_lea.vmem %s0, 8
  %v120 = vld [vmem:[%s119] sm:$0xff]
  %122 = vst [vmem:[#allocation1] ss:$2 sm:$0xff] %v118
  %v123 = vld.sshfl [vmem:[#allocation1] sm:$0xff pattern:$0x75316420]
  %v124 = vld.sshfl [vmem:[#allocation1 + $0x8] sm:$0xff pattern:$0x75316420]
  %128 = vst [vmem:[#allocation1] ss:$2 sm:$0xff] %v120
  %v129 = vld.sshfl [vmem:[#allocation1] sm:$0xff pattern:$0x75316420]
  %v130 = vld.sshfl [vmem:[#allocation1 + $0x8] sm:$0xff pattern:$0x75316420]
  %v133 = vld [vmem:[%s1] sm:$0xf]
  %v134 = vld [vmem:[%s1 + $0x4] sm:$0xf]
  %v135 = vpack.c.bf16 %v123, %v123
  %v136 = vpack.c.bf16 %v124, %v124
  %v137 = vpack.c.bf16 0.0, 0.0
  %v138 = vpack.c.bf16 %v129, %v129
  %v139 = vpack.c.bf16 %v130, %v130
  %v142 = vunpack.c.l.b16 %v133
  %v143 = vunpack.c.l.b16 %v134
  %v144 = vpack.c.b16 %v143, %v142
  %vm145 = vcmask 31744
  %v147 = vsel %vm145, %v144, 0
  %vm149 = vcmask 1041408
  %v151 = vsel %vm149, %v135, 0
  %v154 = vsel %vm149, %v136, 0
  %v157 = vsel %vm149, %v137, 0
  %v160 = vsel %vm149, %v138, 0
  %v163 = vsel %vm149, %v139, 0
  %165 = vmatpush.bf16.msra.mxu0 0
  %166 = vmatpush.bf16.msra.mxu0 0
  %167 = vmatpush.bf16.msra.mxu0 0
  %168 = vmatpush.bf16.msra.mxu0 0
  %169 = vmatpush.bf16.msra.mxu0 0
  %170 = vmatpush.bf16.msra.mxu0 0
  %171 = vmatpush.bf16.msra.mxu0 0
  %172 = vmatpush.bf16.msra.mxu0 %v151
  %173 = vmatmul.bf16.gmra.mxu0 %v147
  %v174 = vpop.f32.mrf.mxu0
  %v175 = vadd.f32 0.0, %v174
  %v176 = vpop.f32.mrf.mxu0
  %v177 = vadd.f32 0.0, %v176
  %178 = vdwg.mxu0
  %179 = vmatpush.bf16.msra.mxu0 0
  %180 = vmatpush.bf16.msra.mxu0 0
  %181 = vmatpush.bf16.msra.mxu0 0
  %182 = vmatpush.bf16.msra.mxu0 0
  %183 = vmatpush.bf16.msra.mxu0 0
  %184 = vmatpush.bf16.msra.mxu0 0
  %185 = vmatpush.bf16.msra.mxu0 0
  %186 = vmatpush.bf16.msra.mxu0 %v154
  %187 = vmatmul.bf16.gmra.mxu0 %v147
  %v188 = vpop.f32.mrf.mxu0
  %v189 = vadd.f32 0.0, %v188
  %v190 = vpop.f32.mrf.mxu0
  %v191 = vadd.f32 0.0, %v190
  %192 = vdwg.mxu0
  %193 = vmatpush.bf16.msra.mxu0 0
  %194 = vmatpush.bf16.msra.mxu0 0
  %195 = vmatpush.bf16.msra.mxu0 0
  %196 = vmatpush.bf16.msra.mxu0 0
  %197 = vmatpush.bf16.msra.mxu0 0
  %198 = vmatpush.bf16.msra.mxu0 0
  %199 = vmatpush.bf16.msra.mxu0 0
  %200 = vmatpush.bf16.msra.mxu0 %v157
  %201 = vmatmul.bf16.gmra.mxu0 %v147
  %v202 = vpop.f32.mrf.mxu0
  %v203 = vadd.f32 0.0, %v202
  %v204 = vpop.f32.mrf.mxu0
  %v205 = vadd.f32 0.0, %v204
  %206 = vdwg.mxu0
  %207 = vmatpush.bf16.msra.mxu0 0
  %208 = vmatpush.bf16.msra.mxu0 0
  %209 = vmatpush.bf16.msra.mxu0 0
  %210 = vmatpush.bf16.msra.mxu0 0
  %211 = vmatpush.bf16.msra.mxu0 0
  %212 = vmatpush.bf16.msra.mxu0 0
  %213 = vmatpush.bf16.msra.mxu0 0
  %214 = vmatpush.bf16.msra.mxu0 %v160
  %215 = vmatmul.bf16.gmra.mxu0 %v147
  %v216 = vpop.f32.mrf.mxu0
  %v217 = vadd.f32 0.0, %v216
  %v218 = vpop.f32.mrf.mxu0
  %v219 = vadd.f32 0.0, %v218
  %220 = vdwg.mxu0
  %221 = vmatpush.bf16.msra.mxu0 0
  %222 = vmatpush.bf16.msra.mxu0 0
  %223 = vmatpush.bf16.msra.mxu0 0
  %224 = vmatpush.bf16.msra.mxu0 0
  %225 = vmatpush.bf16.msra.mxu0 0
  %226 = vmatpush.bf16.msra.mxu0 0
  %227 = vmatpush.bf16.msra.mxu0 0
  %228 = vmatpush.bf16.msra.mxu0 %v163
  %229 = vmatmul.bf16.gmra.mxu0 %v147
  %v230 = vpop.f32.mrf.mxu0
  %v231 = vadd.f32 0.0, %v230
  %v232 = vpop.f32.mrf.mxu0
  %v233 = vadd.f32 0.0, %v232
  %234 = vdwg.mxu0
  %v235 = vld [vmem:[%s2] sm:$0xff]
  %v236 = vld [vmem:[%s2 + $0x8] sm:$0xff]
  %v237 = vld [vmem:[%s3] sm:$0xff]
  %v238 = vld [vmem:[%s3 + $0x8] sm:$0xff]
  %v239 = vadd.f32 %v175, %v189
  %v240 = vadd.f32 %v239, %v203
  %v241 = vadd.f32 %v240, %v217
  %v242 = vadd.f32 %v241, %v231
  %v243 = vadd.f32 %v242, %v203
  %244 = vadd.xlane.f32.xlu0 %v243
  %v245 = vpop.xlane.xlu0 %244
  %v246 = vadd.f32 %v177, %v191
  %v247 = vadd.f32 %v246, %v205
  %v248 = vadd.f32 %v247, %v219
  %v249 = vadd.f32 %v248, %v233
  %v250 = vadd.f32 %v249, %v205
  %251 = vadd.xlane.f32.xlu0 %v250
  %v252 = vpop.xlane.xlu0 %251
  %v253 = vmul.f32 %v245, 0.001953125
  %v254 = vmul.f32 %v252, 0.001953125
  %v255 = vmul.f32 %v175, %v175
  %v256 = vmul.f32 %v189, %v189
  %v257 = vmul.f32 %v203, %v203
  %v258 = vmul.f32 %v217, %v217
  %v259 = vmul.f32 %v231, %v231
  %v260 = vmul.f32 %v177, %v177
  %v261 = vmul.f32 %v191, %v191
  %v262 = vmul.f32 %v205, %v205
  %v263 = vmul.f32 %v219, %v219
  %v264 = vmul.f32 %v233, %v233
  %v265 = vadd.f32 %v255, %v256
  %v266 = vadd.f32 %v265, %v257
  %v267 = vadd.f32 %v266, %v258
  %v268 = vadd.f32 %v267, %v259
  %v269 = vadd.f32 %v268, %v257
  %270 = vadd.xlane.f32.xlu0 %v269
  %v271 = vpop.xlane.xlu0 %270
  %v272 = vadd.f32 %v260, %v261
  %v273 = vadd.f32 %v272, %v262
  %v274 = vadd.f32 %v273, %v263
  %v275 = vadd.f32 %v274, %v264
  %v276 = vadd.f32 %v275, %v262
  %277 = vadd.xlane.f32.xlu0 %v276
  %v278 = vpop.xlane.xlu0 %277
  %v279 = vmul.f32 %v271, 0.001953125
  %v280 = vmul.f32 %v278, 0.001953125
  %v281 = vmul.f32 %v253, %v253
  %v282 = vmul.f32 %v254, %v254
  %v283 = vsub.f32 %v279, %v281
  %v284 = vsub.f32 %v280, %v282
  %v285 = vmax.f32 %v283, 0.0
  %v286 = vmax.f32 %v284, 0.0
  %v287 = vsub.f32 %v175, %v253
  %v288 = vsub.f32 %v189, %v253
  %v289 = vsub.f32 %v203, %v253
  %v290 = vsub.f32 %v217, %v253
  %v291 = vsub.f32 %v231, %v253
  %v292 = vsub.f32 %v177, %v254
  %v293 = vsub.f32 %v191, %v254
  %v294 = vsub.f32 %v219, %v254
  %v295 = vsub.f32 %v233, %v254
  %v296 = vadd.f32 %v285, 1e-05
  %v297 = vadd.f32 %v286, 1e-05
  %v298 = vrsqrt.pop %v296
  %v299 = vmul.f32 %v298, %v296
  %v300 = vmul.f32 %v299, %v298
  %v301 = vmul.f32 0.5, %v300
  %v302 = vsub.f32 1.5, %v301
  %v303 = vmul.f32 %v298, %v302
  %vm304 = vweird.f32 %v296
  %vm305 = vweird.f32 %v298
  %vm306 = vmor %vm304, %vm305
  %v307 = vsel %vm306, %v298, %v303
  %v308 = vrsqrt.pop %v297
  %v309 = vmul.f32 %v308, %v297
  %v310 = vmul.f32 %v309, %v308
  %v311 = vmul.f32 0.5, %v310
  %v312 = vsub.f32 1.5, %v311
  %v313 = vmul.f32 %v308, %v312
  %vm314 = vweird.f32 %v297
  %vm315 = vweird.f32 %v308
  %vm316 = vmor %vm314, %vm315
  %v317 = vsel %vm316, %v308, %v313
  %v318 = vmul.f32 %v307, %v235
  %v319 = vmul.f32 %v317, %v236
  %321 = vset.pattern.permute.xlu0 0
  %322 = vperm.xlu0 %321, %v318
  %v323 = vpop.permute.xlu0 %322
  %326 = vset.pattern.permute.xlu0 0
  %327 = vperm.xlu0 %326, %v319
  %v328 = vpop.permute.xlu0 %327
  %v330 = vmul.f32 %v287, %v323
  %v331 = vmul.f32 %v288, %v323
  %v332 = vmul.f32 %v289, %v323
  %v333 = vmul.f32 %v290, %v323
  %v334 = vmul.f32 %v291, %v323
  %v335 = vmul.f32 %v292, %v328
  %v336 = vmul.f32 %v293, %v328
  %v337 = vmul.f32 %v294, %v328
  %v338 = vmul.f32 %v295, %v328
  %340 = vset.pattern.permute.xlu0 0
  %341 = vperm.xlu0 %340, %v237
  %v342 = vpop.permute.xlu0 %341
  %345 = vset.pattern.permute.xlu0 0
  %346 = vperm.xlu0 %345, %v238
  %v347 = vpop.permute.xlu0 %346
  %v349 = vadd.f32 %v330, %v342
  %v350 = vadd.f32 %v331, %v342
  %v351 = vadd.f32 %v332, %v342
  %v352 = vadd.f32 %v333, %v342
  %v353 = vadd.f32 %v334, %v342
  %v354 = vadd.f32 %v335, %v347
  %v355 = vadd.f32 %v336, %v347
  %v356 = vadd.f32 %v337, %v347
  %v357 = vadd.f32 %v338, %v347
  %v358 = vmax.f32 %v349, 0.0
  %v359 = vmax.f32 %v350, 0.0
  %v360 = vmax.f32 %v351, 0.0
  %v361 = vmax.f32 %v352, 0.0
  %v362 = vmax.f32 %v353, 0.0
  %v363 = vmax.f32 %v354, 0.0
  %v364 = vmax.f32 %v355, 0.0
  %v365 = vmax.f32 %v356, 0.0
  %v366 = vmax.f32 %v357, 0.0
  %367 = vst [vmem:[%s13] sm:$0xff] %v363
  %368 = vst [vmem:[%s13 + $0x8] sm:$0xff] %v364
  %s369 = scalar_lea.vmem %s13, 64
  %370 = vst [vmem:[%s369] sm:$0xff] %v365
  %371 = vst [vmem:[%s369 + $0x8] sm:$0xff] %v366
  %372 = vst [vmem:[#allocation2] sm:$0xff] 0.0
  %373 = vst [vmem:[#allocation2 + $0x38] sm:$0xff] 0.0
  %v374 = vsel %vm112, 1, 0
  %v375 = vsel %vm113, 1, 0
  %v376 = vsel %vm114, 1, 0
  %v377 = vsel %vm115, 1, 0
  %v378 = vsel %vm116, 1, 0
  %v379 = vsel %vm117, 1, 0
  %vm380 = vcmp.eq.s32.totalorder %v374, 1
  %vm381 = vcmp.eq.s32.totalorder %v375, 1
  %vm382 = vcmp.eq.s32.totalorder %v376, 1
  %vm383 = vcmp.eq.s32.totalorder %v377, 1
  %vm384 = vcmp.eq.s32.totalorder %v378, 1
  %vm385 = vcmp.eq.s32.totalorder %v379, 1
  %v386 = vsel %vm380, %v358, 0.0
  %v387 = vsel %vm381, %v359, 0.0
  %v388 = vsel %vm382, %v360, 0.0
  %v389 = vsel %vm383, %v361, 0.0
  %v390 = vsel %vm384, %v362, 0.0
  %v391 = vsel %vm385, %v360, 0.0
  %392 = vst [vmem:[#allocation2 + $0x8] sm:$0xff] %v386
  %393 = vst [vmem:[#allocation2 + $0x10] sm:$0xff] %v387
  %394 = vst [vmem:[#allocation2 + $0x18] sm:$0xff] %v388
  %395 = vst [vmem:[#allocation2 + $0x20] sm:$0xff] %v389
  %396 = vst [vmem:[#allocation2 + $0x28] sm:$0xff] %v390
  %397 = vst [vmem:[#allocation2 + $0x30] sm:$0xff] %v391
  %v398 = vld [vmem:[#allocation2] sm:$0xf]
  %v399 = vld [vmem:[#allocation2 + $0x8] sm:$0xf]
  %v400 = vld [vmem:[#allocation2 + $0x10] sm:$0xf]
  %v401 = vld [vmem:[#allocation2 + $0x18] sm:$0xf]
  %v402 = vld [vmem:[#allocation2 + $0x20] sm:$0xf]
  %v403 = vld [vmem:[#allocation2 + $0x28] sm:$0xf]
  %v404 = vld [vmem:[#allocation2 + $0x30] sm:$0xf]
  %vm405 = vcmp.gt.f32.partialorder %v82, 0.5
  %vm406 = vcmp.gt.f32.partialorder %v83, 0.5
  %vm407 = vcmp.gt.f32.partialorder %v84, 0.5
  %vm408 = vcmp.gt.f32.partialorder %v85, 0.5
  %vm409 = vcmp.gt.f32.partialorder %v86, 0.5
  %vm410 = vcmp.gt.f32.partialorder %v87, 0.5
  %v411 = vsel %vm405, 1, 0
  %v412 = vsel %vm406, 1, 0
  %v413 = vsel %vm407, 1, 0
  %v414 = vsel %vm408, 1, 0
  %v415 = vsel %vm409, 1, 0
  %v416 = vsel %vm410, 1, 0
  %vm417 = vcmp.eq.s32.totalorder %v411, 1
  %vm418 = vcmp.eq.s32.totalorder %v412, 1
  %vm419 = vcmp.eq.s32.totalorder %v413, 1
  %vm420 = vcmp.eq.s32.totalorder %v414, 1
  %vm421 = vcmp.eq.s32.totalorder %v415, 1
  %vm422 = vcmp.eq.s32.totalorder %v416, 1
  %430 = vrot.lane.b32.xlu0 %v398, 17
  %v431 = vpop.permute.xlu0 %430
  %432 = vrot.lane.b32.xlu0 %v399, 17
  %v433 = vpop.permute.xlu0 %432
  %434 = vrot.lane.b32.xlu0 %v400, 17
  %v435 = vpop.permute.xlu0 %434
  %436 = vrot.lane.b32.xlu0 %v401, 17
  %v437 = vpop.permute.xlu0 %436
  %438 = vrot.lane.b32.xlu0 %v402, 17
  %v439 = vpop.permute.xlu0 %438
  %440 = vrot.lane.b32.xlu0 %v403, 17
  %v441 = vpop.permute.xlu0 %440
  %442 = vrot.lane.b32.xlu0 %v404, 17
  %v443 = vpop.permute.xlu0 %442
  %vm444 = vcmask 138240
  %v445 = vsel %vm444, %v431, %v433
  %v446 = vsel %vm444, %v433, %v435
  %v447 = vsel %vm444, %v435, %v437
  %v448 = vsel %vm444, %v437, %v439
  %v449 = vsel %vm444, %v439, %v441
  %v450 = vsel %vm444, %v441, %v443
  %v457 = vsel %vm417, %v445, 0.0
  %v458 = vsel %vm418, %v446, 0.0
  %v459 = vsel %vm419, %v447, 0.0
  %v460 = vsel %vm420, %v448, 0.0
  %v461 = vsel %vm421, %v449, 0.0
  %v462 = vsel %vm422, %v450, 0.0
  %v463 = vpack.c.bf16 %v458, %v457
  %v464 = vpack.c.bf16 %v460, %v459
  %v465 = vpack.c.bf16 %v462, %v461
  %466 = vst [vmem:[#allocation3] sm:$0x33] %v463
  %467 = vst [vmem:[#allocation3 + $0x8] sm:$0x33] %v464
  %468 = vst [vmem:[#allocation3 + $0x10] sm:$0x33] %v465
  %v469 = vld [vmem:[#allocation2] sm:$0xf]
  %v470 = vld [vmem:[#allocation2 + $0x8] sm:$0xf]
  %v471 = vld [vmem:[#allocation2 + $0x10] sm:$0xf]
  %v472 = vld [vmem:[#allocation2 + $0x18] sm:$0xf]
  %v473 = vld [vmem:[#allocation2 + $0x20] sm:$0xf]
  %v474 = vld [vmem:[#allocation2 + $0x28] sm:$0xf]
  %v475 = vld [vmem:[#allocation2 + $0x30] sm:$0xf]
  %v476 = vpack.c.bf16 %v470, %v469
  %v477 = vpack.c.bf16 %v472, %v471
  %v478 = vpack.c.bf16 %v474, %v473
  %v479 = vpack.c.bf16 %v475, %v475
  %v484 = vrot.slane %v476, 6
  %v485 = vrot.slane %v477, 6
  %v486 = vrot.slane %v478, 6
  %v487 = vrot.slane %v479, 6
  %488 = vrot.lane.b32.xlu0 %v484, 16
  %v489 = vpop.permute.xlu0 %488
  %490 = vrot.lane.b32.xlu0 %v485, 16
  %v491 = vpop.permute.xlu0 %490
  %492 = vrot.lane.b32.xlu0 %v486, 16
  %v493 = vpop.permute.xlu0 %492
  %494 = vrot.lane.b32.xlu0 %v487, 16
  %v495 = vpop.permute.xlu0 %494
  %v496 = vrot.slane %v489, 4
  %v497 = vrot.slane %v491, 4
  %v498 = vrot.slane %v493, 4
  %v499 = vrot.slane %v495, 4
  %vm500 = vcmask 1043456
  %v501 = vsel %vm500, %v496, %v497
  %vm502 = vcmask 130048
  %v503 = vsel %vm502, %v489, %v501
  %v504 = vsel %vm500, %v497, %v498
  %v505 = vsel %vm502, %v491, %v504
  %v506 = vsel %vm500, %v498, %v499
  %v507 = vsel %vm502, %v493, %v506
  %511 = vst [vmem:[#allocation3] sm:$0xcc] %v503
  %512 = vst [vmem:[#allocation3 + $0x8] sm:$0xcc] %v505
  %513 = vst [vmem:[#allocation3 + $0x10] sm:$0xcc] %v507
  %v514 = vld [vmem:[#allocation2] sm:$0xf]
  %v515 = vld [vmem:[#allocation2 + $0x8] sm:$0xf]
  %v516 = vld [vmem:[#allocation2 + $0x10] sm:$0xf]
  %v517 = vld [vmem:[#allocation2 + $0x18] sm:$0xf]
  %v518 = vld [vmem:[#allocation2 + $0x20] sm:$0xf]
  %v519 = vld [vmem:[#allocation2 + $0x28] sm:$0xf]
  %v520 = vld [vmem:[#allocation2 + $0x30] sm:$0xf]
  %vm521 = vcmp.lt.f32.partialorder %v82, 14.5
  %vm522 = vcmp.lt.f32.partialorder %v83, 14.5
  %vm523 = vcmp.lt.f32.partialorder %v84, 14.5
  %vm524 = vcmp.lt.f32.partialorder %v85, 14.5
  %vm525 = vcmp.lt.f32.partialorder %v86, 14.5
  %vm526 = vcmp.lt.f32.partialorder %v87, 14.5
  %v527 = vsel %vm521, 1, 0
  %v528 = vsel %vm522, 1, 0
  %v529 = vsel %vm523, 1, 0
  %v530 = vsel %vm524, 1, 0
  %v531 = vsel %vm525, 1, 0
  %v532 = vsel %vm526, 1, 0
  %vm533 = vcmp.eq.s32.totalorder %v527, 1
  %vm534 = vcmp.eq.s32.totalorder %v528, 1
  %vm535 = vcmp.eq.s32.totalorder %v529, 1
  %vm536 = vcmp.eq.s32.totalorder %v530, 1
  %vm537 = vcmp.eq.s32.totalorder %v531, 1
  %vm538 = vcmp.eq.s32.totalorder %v532, 1
  %546 = vrot.lane.b32.xlu0 %v514, 15
  %v547 = vpop.permute.xlu0 %546
  %548 = vrot.lane.b32.xlu0 %v515, 15
  %v549 = vpop.permute.xlu0 %548
  %550 = vrot.lane.b32.xlu0 %v516, 15
  %v551 = vpop.permute.xlu0 %550
  %552 = vrot.lane.b32.xlu0 %v517, 15
  %v553 = vpop.permute.xlu0 %552
  %554 = vrot.lane.b32.xlu0 %v518, 15
  %v555 = vpop.permute.xlu0 %554
  %556 = vrot.lane.b32.xlu0 %v519, 15
  %v557 = vpop.permute.xlu0 %556
  %558 = vrot.lane.b32.xlu0 %v520, 15
  %v559 = vpop.permute.xlu0 %558
  %vm560 = vcmask 121856
  %v561 = vsel %vm560, %v547, %v549
  %v562 = vsel %vm560, %v549, %v551
  %v563 = vsel %vm560, %v551, %v553
  %v564 = vsel %vm560, %v553, %v555
  %v565 = vsel %vm560, %v555, %v557
  %v566 = vsel %vm560, %v557, %v559
  %v573 = vsel %vm533, %v561, 0.0
  %v574 = vsel %vm534, %v562, 0.0
  %v575 = vsel %vm535, %v563, 0.0
  %v576 = vsel %vm536, %v564, 0.0
  %v577 = vsel %vm537, %v565, 0.0
  %v578 = vsel %vm538, %v566, 0.0
  %v579 = vpack.c.bf16 %v574, %v573
  %v580 = vpack.c.bf16 %v576, %v575
  %v581 = vpack.c.bf16 %v578, %v577
  %582 = vst [vmem:[#allocation3 + $0x18] sm:$0x33] %v579
  %583 = vst [vmem:[#allocation3 + $0x20] sm:$0x33] %v580
  %584 = vst [vmem:[#allocation3 + $0x28] sm:$0x33] %v581
  %v585 = vld [vmem:[#allocation2] sm:$0xf]
  %v586 = vld [vmem:[#allocation2 + $0x8] sm:$0xf]
  %v587 = vld [vmem:[#allocation2 + $0x10] sm:$0xf]
  %v588 = vld [vmem:[#allocation2 + $0x18] sm:$0xf]
  %v589 = vld [vmem:[#allocation2 + $0x20] sm:$0xf]
  %v590 = vld [vmem:[#allocation2 + $0x28] sm:$0xf]
  %v591 = vld [vmem:[#allocation2 + $0x30] sm:$0xf]
  %599 = vrot.lane.b32.xlu0 %v585, 1
  %v600 = vpop.permute.xlu0 %599
  %601 = vrot.lane.b32.xlu0 %v586, 1
  %v602 = vpop.permute.xlu0 %601
  %603 = vrot.lane.b32.xlu0 %v587, 1
  %v604 = vpop.permute.xlu0 %603
  %605 = vrot.lane.b32.xlu0 %v588, 1
  %v606 = vpop.permute.xlu0 %605
  %607 = vrot.lane.b32.xlu0 %v589, 1
  %v608 = vpop.permute.xlu0 %607
  %609 = vrot.lane.b32.xlu0 %v590, 1
  %v610 = vpop.permute.xlu0 %609
  %611 = vrot.lane.b32.xlu0 %v591, 1
  %v612 = vpop.permute.xlu0 %611
  %vm613 = vcmask 7168
  %v614 = vsel %vm613, %v600, %v602
  %v615 = vsel %vm613, %v602, %v604
  %v616 = vsel %vm613, %v604, %v606
  %v617 = vsel %vm613, %v606, %v608
  %v618 = vsel %vm613, %v608, %v610
  %v619 = vsel %vm613, %v610, %v612
  %v626 = vsel %vm417, %v614, 0.0
  %v627 = vsel %vm418, %v615, 0.0
  %v628 = vsel %vm419, %v616, 0.0
  %v629 = vsel %vm420, %v617, 0.0
  %v630 = vsel %vm421, %v618, 0.0
  %v631 = vsel %vm422, %v619, 0.0
  %v632 = vpack.c.bf16 %v627, %v626
  %v633 = vpack.c.bf16 %v629, %v628
  %v634 = vpack.c.bf16 %v631, %v630
  %v638 = vrot.slane %v632, 6
  %v639 = vrot.slane %v633, 6
  %v640 = vrot.slane %v634, 6
  %644 = vst [vmem:[#allocation3 + $0x18] sm:$0xcc] %v638
  %645 = vst [vmem:[#allocation3 + $0x20] sm:$0xcc] %v639
  %646 = vst [vmem:[#allocation3 + $0x28] sm:$0xcc] %v640
  %v647 = vld [vmem:[#allocation2 + $0x8] sm:$0xf]
  %v648 = vld [vmem:[#allocation2 + $0x10] sm:$0xf]
  %v649 = vld [vmem:[#allocation2 + $0x18] sm:$0xf]
  %v650 = vld [vmem:[#allocation2 + $0x20] sm:$0xf]
  %v651 = vld [vmem:[#allocation2 + $0x28] sm:$0xf]
  %v652 = vld [vmem:[#allocation2 + $0x30] sm:$0xf]
  %v653 = vpack.c.bf16 %v648, %v647
  %v654 = vpack.c.bf16 %v650, %v649
  %v655 = vpack.c.bf16 %v652, %v651
  %656 = vst [vmem:[#allocation3 + $0x30] sm:$0x33] %v653
  %657 = vst [vmem:[#allocation3 + $0x38] sm:$0x33] %v654
  %658 = vst [vmem:[#allocation3 + $0x40] sm:$0x33] %v655
  %v659 = vld [vmem:[#allocation2 + $0x8] sm:$0xf]
  %v660 = vld [vmem:[#allocation2 + $0x10] sm:$0xf]
  %v661 = vld [vmem:[#allocation2 + $0x18] sm:$0xf]
  %v662 = vld [vmem:[#allocation2 + $0x20] sm:$0xf]
  %v663 = vld [vmem:[#allocation2 + $0x28] sm:$0xf]
  %v664 = vld [vmem:[#allocation2 + $0x30] sm:$0xf]
  %v665 = vld [vmem:[#allocation2 + $0x38] sm:$0xf]
  %673 = vrot.lane.b32.xlu0 %v659, 127
  %v674 = vpop.permute.xlu0 %673
  %675 = vrot.lane.b32.xlu0 %v660, 127
  %v676 = vpop.permute.xlu0 %675
  %677 = vrot.lane.b32.xlu0 %v661, 127
  %v678 = vpop.permute.xlu0 %677
  %679 = vrot.lane.b32.xlu0 %v662, 127
  %v680 = vpop.permute.xlu0 %679
  %681 = vrot.lane.b32.xlu0 %v663, 127
  %v682 = vpop.permute.xlu0 %681
  %683 = vrot.lane.b32.xlu0 %v664, 127
  %v684 = vpop.permute.xlu0 %683
  %685 = vrot.lane.b32.xlu0 %v665, 127
  %v686 = vpop.permute.xlu0 %685
  %vm687 = vcmask 1039360
  %v688 = vsel %vm687, %v674, %v676
  %v689 = vsel %vm687, %v676, %v678
  %v690 = vsel %vm687, %v678, %v680
  %v691 = vsel %vm687, %v680, %v682
  %v692 = vsel %vm687, %v682, %v684
  %v693 = vsel %vm687, %v684, %v686
  %v700 = vsel %vm533, %v688, 0.0
  %v701 = vsel %vm534, %v689, 0.0
  %v702 = vsel %vm535, %v690, 0.0
  %v703 = vsel %vm536, %v691, 0.0
  %v704 = vsel %vm537, %v692, 0.0
  %v705 = vsel %vm538, %v693, 0.0
  %v706 = vpack.c.bf16 %v701, %v700
  %v707 = vpack.c.bf16 %v703, %v702
  %v708 = vpack.c.bf16 %v705, %v704
  %v712 = vrot.slane %v706, 6
  %v713 = vrot.slane %v707, 6
  %v714 = vrot.slane %v708, 6
  %718 = vst [vmem:[#allocation3 + $0x30] sm:$0xcc] %v712
  %719 = vst [vmem:[#allocation3 + $0x38] sm:$0xcc] %v713
  %720 = vst [vmem:[#allocation3 + $0x40] sm:$0xcc] %v714
  %v721 = vld [vmem:[#allocation2 + $0x8] sm:$0xf]
  %v722 = vld [vmem:[#allocation2 + $0x10] sm:$0xf]
  %v723 = vld [vmem:[#allocation2 + $0x18] sm:$0xf]
  %v724 = vld [vmem:[#allocation2 + $0x20] sm:$0xf]
  %v725 = vld [vmem:[#allocation2 + $0x28] sm:$0xf]
  %v726 = vld [vmem:[#allocation2 + $0x30] sm:$0xf]
  %v727 = vld [vmem:[#allocation2 + $0x38] sm:$0xf]
  %735 = vrot.lane.b32.xlu0 %v721, 113
  %v736 = vpop.permute.xlu0 %735
  %737 = vrot.lane.b32.xlu0 %v722, 113
  %v738 = vpop.permute.xlu0 %737
  %739 = vrot.lane.b32.xlu0 %v723, 113
  %v740 = vpop.permute.xlu0 %739
  %741 = vrot.lane.b32.xlu0 %v724, 113
  %v742 = vpop.permute.xlu0 %741
  %743 = vrot.lane.b32.xlu0 %v725, 113
  %v744 = vpop.permute.xlu0 %743
  %745 = vrot.lane.b32.xlu0 %v726, 113
  %v746 = vpop.permute.xlu0 %745
  %747 = vrot.lane.b32.xlu0 %v727, 113
  %v748 = vpop.permute.xlu0 %747
  %vm749 = vcmask 924672
  %v750 = vsel %vm749, %v736, %v738
  %v751 = vsel %vm749, %v738, %v740
  %v752 = vsel %vm749, %v740, %v742
  %v753 = vsel %vm749, %v742, %v744
  %v754 = vsel %vm749, %v744, %v746
  %v755 = vsel %vm749, %v746, %v748
  %v762 = vsel %vm417, %v750, 0.0
  %v763 = vsel %vm418, %v751, 0.0
  %v764 = vsel %vm419, %v752, 0.0
  %v765 = vsel %vm420, %v753, 0.0
  %v766 = vsel %vm421, %v754, 0.0
  %v767 = vsel %vm422, %v755, 0.0
  %v768 = vpack.c.bf16 %v763, %v762
  %v769 = vpack.c.bf16 %v765, %v764
  %v770 = vpack.c.bf16 %v767, %v766
  %771 = vst [vmem:[#allocation3 + $0x48] sm:$0x33] %v768
  %772 = vst [vmem:[#allocation3 + $0x50] sm:$0x33] %v769
  %773 = vst [vmem:[#allocation3 + $0x58] sm:$0x33] %v770
  %v774 = vld [vmem:[#allocation2 + $0x8] sm:$0xf]
  %v775 = vld [vmem:[#allocation2 + $0x10] sm:$0xf]
  %v776 = vld [vmem:[#allocation2 + $0x18] sm:$0xf]
  %v777 = vld [vmem:[#allocation2 + $0x20] sm:$0xf]
  %v778 = vld [vmem:[#allocation2 + $0x28] sm:$0xf]
  %v779 = vld [vmem:[#allocation2 + $0x30] sm:$0xf]
  %v780 = vld [vmem:[#allocation2 + $0x38] sm:$0xf]
  %v781 = vpack.c.bf16 %v775, %v774
  %v782 = vpack.c.bf16 %v777, %v776
  %v783 = vpack.c.bf16 %v779, %v778
  %v784 = vpack.c.bf16 %v780, %v780
  %v789 = vrot.slane %v781, 6
  %v790 = vrot.slane %v782, 6
  %v791 = vrot.slane %v783, 6
  %v792 = vrot.slane %v784, 6
  %793 = vrot.lane.b32.xlu0 %v789, 112
  %v794 = vpop.permute.xlu0 %793
  %795 = vrot.lane.b32.xlu0 %v790, 112
  %v796 = vpop.permute.xlu0 %795
  %797 = vrot.lane.b32.xlu0 %v791, 112
  %v798 = vpop.permute.xlu0 %797
  %799 = vrot.lane.b32.xlu0 %v792, 112
  %v800 = vpop.permute.xlu0 %799
  %v801 = vrot.slane %v794, 4
  %v802 = vrot.slane %v796, 4
  %v803 = vrot.slane %v798, 4
  %v804 = vrot.slane %v800, 4
  %v805 = vsel %vm500, %v801, %v802
  %vm806 = vcmask 916480
  %v807 = vsel %vm806, %v794, %v805
  %v808 = vsel %vm500, %v802, %v803
  %v809 = vsel %vm806, %v796, %v808
  %v810 = vsel %vm500, %v803, %v804
  %v811 = vsel %vm806, %v798, %v810
  %815 = vst [vmem:[#allocation3 + $0x48] sm:$0xcc] %v807
  %816 = vst [vmem:[#allocation3 + $0x50] sm:$0xcc] %v809
  %817 = vst [vmem:[#allocation3 + $0x58] sm:$0xcc] %v811
  %v818 = vld [vmem:[#allocation2 + $0x8] sm:$0xf]
  %v819 = vld [vmem:[#allocation2 + $0x10] sm:$0xf]
  %v820 = vld [vmem:[#allocation2 + $0x18] sm:$0xf]
  %v821 = vld [vmem:[#allocation2 + $0x20] sm:$0xf]
  %v822 = vld [vmem:[#allocation2 + $0x28] sm:$0xf]
  %v823 = vld [vmem:[#allocation2 + $0x30] sm:$0xf]
  %v824 = vld [vmem:[#allocation2 + $0x38] sm:$0xf]
  %832 = vrot.lane.b32.xlu0 %v818, 111
  %v833 = vpop.permute.xlu0 %832
  %834 = vrot.lane.b32.xlu0 %v819, 111
  %v835 = vpop.permute.xlu0 %834
  %836 = vrot.lane.b32.xlu0 %v820, 111
  %v837 = vpop.permute.xlu0 %836
  %838 = vrot.lane.b32.xlu0 %v821, 111
  %v839 = vpop.permute.xlu0 %838
  %840 = vrot.lane.b32.xlu0 %v822, 111
  %v841 = vpop.permute.xlu0 %840
  %842 = vrot.lane.b32.xlu0 %v823, 111
  %v843 = vpop.permute.xlu0 %842
  %844 = vrot.lane.b32.xlu0 %v824, 111
  %v845 = vpop.permute.xlu0 %844
  %vm846 = vcmask 908288
  %v847 = vsel %vm846, %v833, %v835
  %v848 = vsel %vm846, %v835, %v837
  %v849 = vsel %vm846, %v837, %v839
  %v850 = vsel %vm846, %v839, %v841
  %v851 = vsel %vm846, %v841, %v843
  %v852 = vsel %vm846, %v843, %v845
  %v859 = vsel %vm533, %v847, 0.0
  %v860 = vsel %vm534, %v848, 0.0
  %v861 = vsel %vm535, %v849, 0.0
  %v862 = vsel %vm536, %v850, 0.0
  %v863 = vsel %vm537, %v851, 0.0
  %v864 = vsel %vm538, %v852, 0.0
  %v865 = vpack.c.bf16 %v860, %v859
  %v866 = vpack.c.bf16 %v862, %v861
  %v867 = vpack.c.bf16 %v864, %v863
  %868 = vst [vmem:[#allocation3 + $0x60] sm:$0x33] %v865
  %869 = vst [vmem:[#allocation3 + $0x68] sm:$0x33] %v866
  %870 = vst [vmem:[#allocation3 + $0x70] sm:$0x33] %v867
  %v871 = vld [vmem:[%s4] sm:$0xf]
  %v872 = vld [vmem:[#allocation3] sm:$0xff]
  %v873 = vld [vmem:[#allocation3 + $0x8] sm:$0xff]
  %v874 = vld [vmem:[#allocation3 + $0x10] sm:$0xff]
  %v875 = vld [vmem:[#allocation3 + $0x18] sm:$0xff]
  %v876 = vld [vmem:[#allocation3 + $0x20] sm:$0xff]
  %v877 = vld [vmem:[#allocation3 + $0x28] sm:$0xff]
  %v878 = vld [vmem:[#allocation3 + $0x30] sm:$0xff]
  %v879 = vld [vmem:[#allocation3 + $0x38] sm:$0xff]
  %v880 = vld [vmem:[#allocation3 + $0x40] sm:$0xff]
  %v881 = vld [vmem:[#allocation3 + $0x48] sm:$0xff]
  %v882 = vld [vmem:[#allocation3 + $0x50] sm:$0xff]
  %v883 = vld [vmem:[#allocation3 + $0x58] sm:$0xff]
  %v884 = vld [vmem:[#allocation3 + $0x60] sm:$0x33]
  %v885 = vld [vmem:[#allocation3 + $0x68] sm:$0x33]
  %v886 = vld [vmem:[#allocation3 + $0x70] sm:$0x33]
  %v902 = vunpack.c.l.b16 %v872
  %v903 = vunpack.c.h.b16 %v872
  %v904 = vunpack.c.l.b16 %v873
  %v905 = vunpack.c.h.b16 %v873
  %v906 = vunpack.c.l.b16 %v874
  %v907 = vunpack.c.h.b16 %v874
  %v908 = vunpack.c.l.b16 %v875
  %v909 = vunpack.c.h.b16 %v875
  %v910 = vunpack.c.l.b16 %v876
  %v911 = vunpack.c.h.b16 %v876
  %v912 = vunpack.c.l.b16 %v877
  %v913 = vunpack.c.h.b16 %v877
  %v914 = vunpack.c.l.b16 %v878
  %v915 = vunpack.c.h.b16 %v878
  %v916 = vunpack.c.l.b16 %v879
  %v917 = vunpack.c.h.b16 %v879
  %v918 = vunpack.c.l.b16 %v880
  %v919 = vunpack.c.h.b16 %v880
  %v920 = vunpack.c.l.b16 %v881
  %v921 = vunpack.c.h.b16 %v881
  %v922 = vunpack.c.l.b16 %v882
  %v923 = vunpack.c.h.b16 %v882
  %v924 = vunpack.c.l.b16 %v883
  %v925 = vunpack.c.h.b16 %v883
  %v926 = vunpack.c.l.b16 %v884
  %v927 = vunpack.c.h.b16 %v884
  %v928 = vunpack.c.l.b16 %v885
  %v929 = vunpack.c.h.b16 %v885
  %v930 = vunpack.c.l.b16 %v886
  %v931 = vunpack.c.h.b16 %v886
  %v932 = vpack.c.b16 %v908, %v902
  %v933 = vpack.c.b16 %v909, %v903
  %v934 = vpack.c.b16 %v910, %v904
  %v935 = vpack.c.b16 %v911, %v905
  %v936 = vpack.c.b16 %v912, %v906
  %v937 = vpack.c.b16 %v913, %v907
  %v938 = vpack.c.b16 %v920, %v914
  %v939 = vpack.c.b16 %v921, %v915
  %v940 = vpack.c.b16 %v922, %v916
  %v941 = vpack.c.b16 %v923, %v917
  %v942 = vpack.c.b16 %v924, %v918
  %v943 = vpack.c.b16 %v925, %v919
  %v944 = vpack.c.b16 %v926, %v926
  %v945 = vpack.c.b16 %v927, %v927
  %v946 = vpack.c.b16 %v928, %v928
  %v947 = vpack.c.b16 %v929, %v929
  %v948 = vpack.c.b16 %v930, %v930
  %v949 = vpack.c.b16 %v931, %v931
  %vm962 = vcmask 293888
  %v964 = vsel %vm962, %v871, 0
  %v967 = vsel %vm149, %v944, 0
  %v970 = vsel %vm149, %v945, 0
  %v973 = vsel %vm149, %v946, 0
  %v976 = vsel %vm149, %v947, 0
  %v979 = vsel %vm149, %v948, 0
  %v982 = vsel %vm149, %v949, 0
  %984 = vmatpush.bf16.msra.mxu0 0
  %985 = vmatpush.bf16.msra.mxu0 0
  %986 = vmatpush.bf16.msra.mxu0 0
  %987 = vmatpush.bf16.msra.mxu0 0
  %988 = vmatpush.bf16.msra.mxu0 0
  %989 = vmatpush.bf16.msra.mxu0 %v967
  %990 = vmatpush.bf16.msra.mxu0 %v938
  %991 = vmatpush.bf16.msra.mxu0 %v932
  %992 = vmatmul.bf16.gmra.mxu0 %v964
  %v993 = vpop.f32.mrf.mxu0
  %v994 = vadd.f32 0.0, %v993
  %v995 = vpop.f32.mrf.mxu0
  %996 = vdwg.mxu0
  %997 = vmatpush.bf16.msra.mxu0 0
  %998 = vmatpush.bf16.msra.mxu0 0
  %999 = vmatpush.bf16.msra.mxu0 0
  %1000 = vmatpush.bf16.msra.mxu0 0
  %1001 = vmatpush.bf16.msra.mxu0 0
  %1002 = vmatpush.bf16.msra.mxu0 %v970
  %1003 = vmatpush.bf16.msra.mxu0 %v939
  %1004 = vmatpush.bf16.msra.mxu0 %v933
  %1005 = vmatmul.bf16.gmra.mxu0 %v964
  %v1006 = vpop.f32.mrf.mxu0
  %v1007 = vadd.f32 0.0, %v1006
  %v1008 = vpop.f32.mrf.mxu0
  %1009 = vdwg.mxu0
  %1010 = vmatpush.bf16.msra.mxu0 0
  %1011 = vmatpush.bf16.msra.mxu0 0
  %1012 = vmatpush.bf16.msra.mxu0 0
  %1013 = vmatpush.bf16.msra.mxu0 0
  %1014 = vmatpush.bf16.msra.mxu0 0
  %1015 = vmatpush.bf16.msra.mxu0 %v973
  %1016 = vmatpush.bf16.msra.mxu0 %v940
  %1017 = vmatpush.bf16.msra.mxu0 %v934
  %1018 = vmatmul.bf16.gmra.mxu0 %v964
  %v1019 = vpop.f32.mrf.mxu0
  %v1020 = vadd.f32 0.0, %v1019
  %v1021 = vpop.f32.mrf.mxu0
  %1022 = vdwg.mxu0
  %1023 = vmatpush.bf16.msra.mxu0 0
  %1024 = vmatpush.bf16.msra.mxu0 0
  %1025 = vmatpush.bf16.msra.mxu0 0
  %1026 = vmatpush.bf16.msra.mxu0 0
  %1027 = vmatpush.bf16.msra.mxu0 0
  %1028 = vmatpush.bf16.msra.mxu0 %v976
  %1029 = vmatpush.bf16.msra.mxu0 %v941
  %1030 = vmatpush.bf16.msra.mxu0 %v935
  %1031 = vmatmul.bf16.gmra.mxu0 %v964
  %v1032 = vpop.f32.mrf.mxu0
  %v1033 = vadd.f32 0.0, %v1032
  %v1034 = vpop.f32.mrf.mxu0
  %1035 = vdwg.mxu0
  %1036 = vmatpush.bf16.msra.mxu0 0
  %1037 = vmatpush.bf16.msra.mxu0 0
  %1038 = vmatpush.bf16.msra.mxu0 0
  %1039 = vmatpush.bf16.msra.mxu0 0
  %1040 = vmatpush.bf16.msra.mxu0 0
  %1041 = vmatpush.bf16.msra.mxu0 %v979
  %1042 = vmatpush.bf16.msra.mxu0 %v942
  %1043 = vmatpush.bf16.msra.mxu0 %v936
  %1044 = vmatmul.bf16.gmra.mxu0 %v964
  %v1045 = vpop.f32.mrf.mxu0
  %v1046 = vadd.f32 0.0, %v1045
  %v1047 = vpop.f32.mrf.mxu0
  %1048 = vdwg.mxu0
  %1049 = vmatpush.bf16.msra.mxu0 0
  %1050 = vmatpush.bf16.msra.mxu0 0
  %1051 = vmatpush.bf16.msra.mxu0 0
  %1052 = vmatpush.bf16.msra.mxu0 0
  %1053 = vmatpush.bf16.msra.mxu0 0
  %1054 = vmatpush.bf16.msra.mxu0 %v982
  %1055 = vmatpush.bf16.msra.mxu0 %v943
  %1056 = vmatpush.bf16.msra.mxu0 %v937
  %1057 = vmatmul.bf16.gmra.mxu0 %v964
  %v1058 = vpop.f32.mrf.mxu0
  %v1059 = vadd.f32 0.0, %v1058
  %v1060 = vpop.f32.mrf.mxu0
  %1061 = vdwg.mxu0
  %v1062 = vsel %vm380, %v994, 0.0
  %v1063 = vsel %vm381, %v1007, 0.0
  %v1064 = vsel %vm382, %v1020, 0.0
  %v1065 = vsel %vm383, %v1033, 0.0
  %v1066 = vsel %vm384, %v1046, 0.0
  %v1067 = vsel %vm385, %v1059, 0.0
  %v1068 = vld [vmem:[%s5] sm:$0xff]
  %v1069 = vld [vmem:[%s6] sm:$0xff]
  %v1070 = vadd.f32 %v1062, %v1063
  %v1071 = vadd.f32 %v1070, %v1064
  %v1072 = vadd.f32 %v1071, %v1065
  %v1073 = vadd.f32 %v1072, %v1066
  %v1074 = vadd.f32 %v1073, %v1067
  %1075 = vadd.xlane.f32.xlu0 %v1074
  %v1076 = vpop.xlane.xlu0 %1075
  %v1077 = vmul.f32 %v1076, 0.001953125
  %v1078 = vmul.f32 %v1062, %v1062
  %v1079 = vmul.f32 %v1063, %v1063
  %v1080 = vmul.f32 %v1064, %v1064
  %v1081 = vmul.f32 %v1065, %v1065
  %v1082 = vmul.f32 %v1066, %v1066
  %v1083 = vmul.f32 %v1067, %v1067
  %v1084 = vadd.f32 %v1078, %v1079
  %v1085 = vadd.f32 %v1084, %v1080
  %v1086 = vadd.f32 %v1085, %v1081
  %v1087 = vadd.f32 %v1086, %v1082
  %v1088 = vadd.f32 %v1087, %v1083
  %1089 = vadd.xlane.f32.xlu0 %v1088
  %v1090 = vpop.xlane.xlu0 %1089
  %v1091 = vmul.f32 %v1090, 0.001953125
  %v1092 = vmul.f32 %v1077, %v1077
  %v1093 = vsub.f32 %v1091, %v1092
  %v1094 = vmax.f32 %v1093, 0.0
  %v1095 = vsub.f32 %v1062, %v1077
  %v1096 = vsub.f32 %v1063, %v1077
  %v1097 = vsub.f32 %v1065, %v1077
  %v1098 = vsub.f32 %v1066, %v1077
  %v1099 = vadd.f32 %v1094, 1e-05
  %v1100 = vrsqrt.pop %v1099
  %v1101 = vmul.f32 %v1100, %v1099
  %v1102 = vmul.f32 %v1101, %v1100
  %v1103 = vmul.f32 0.5, %v1102
  %v1104 = vsub.f32 1.5, %v1103
  %v1105 = vmul.f32 %v1100, %v1104
  %vm1106 = vweird.f32 %v1099
  %vm1107 = vweird.f32 %v1100
  %vm1108 = vmor %vm1106, %vm1107
  %v1109 = vsel %vm1108, %v1100, %v1105
  %v1110 = vmul.f32 %v1109, %v1068
  %1112 = vset.pattern.permute.xlu0 0
  %1113 = vperm.xlu0 %1112, %v1110
  %v1114 = vpop.permute.xlu0 %1113
  %v1116 = vmul.f32 %v1095, %v1114
  %v1117 = vmul.f32 %v1096, %v1114
  %v1118 = vmul.f32 %v1097, %v1114
  %v1119 = vmul.f32 %v1098, %v1114
  %1121 = vset.pattern.permute.xlu0 0
  %1122 = vperm.xlu0 %1121, %v1069
  %v1123 = vpop.permute.xlu0 %1122
  %v1125 = vadd.f32 %v1116, %v1123
  %v1126 = vadd.f32 %v1117, %v1123
  %v1127 = vadd.f32 %v1118, %v1123
  %v1128 = vadd.f32 %v1119, %v1123
  %v1129 = vmax.f32 %v1125, 0.0
  %v1130 = vmax.f32 %v1126, 0.0
  %v1131 = vmax.f32 %v1127, 0.0
  %v1132 = vmax.f32 %v1128, 0.0
  %1133 = vst [vmem:[%s13 + $0x10] sm:$0xff] %v1129
  %1134 = vst [vmem:[%s13 + $0x18] sm:$0xff] %v1130
  %1135 = vst [vmem:[%s369 + $0x10] sm:$0xff] %v1131
  %1136 = vst [vmem:[%s369 + $0x18] sm:$0xff] %v1132
  %v1137 = vld [vmem:[#allocation2] sm:$0xf0]
  %v1138 = vld [vmem:[#allocation2 + $0x8] sm:$0xf0]
  %v1139 = vld [vmem:[#allocation2 + $0x10] sm:$0xf0]
  %v1140 = vld [vmem:[#allocation2 + $0x18] sm:$0xf0]
  %v1141 = vld [vmem:[#allocation2 + $0x20] sm:$0xf0]
  %v1142 = vld [vmem:[#allocation2 + $0x28] sm:$0xf0]
  %v1143 = vld [vmem:[#allocation2 + $0x30] sm:$0xf0]
  %vm1144 = vcmp.gt.f32.partialorder %v82, 1.5
  %vm1145 = vcmp.gt.f32.partialorder %v83, 1.5
  %vm1146 = vcmp.gt.f32.partialorder %v84, 1.5
  %vm1147 = vcmp.gt.f32.partialorder %v85, 1.5
  %vm1148 = vcmp.gt.f32.partialorder %v86, 1.5
  %vm1149 = vcmp.gt.f32.partialorder %v87, 1.5
  %v1150 = vsel %vm1144, 1, 0
  %v1151 = vsel %vm1145, 1, 0
  %v1152 = vsel %vm1146, 1, 0
  %v1153 = vsel %vm1147, 1, 0
  %v1154 = vsel %vm1148, 1, 0
  %v1155 = vsel %vm1149, 1, 0
  %vm1156 = vcmp.eq.s32.totalorder %v1150, 1
  %vm1157 = vcmp.eq.s32.totalorder %v1151, 1
  %vm1158 = vcmp.eq.s32.totalorder %v1152, 1
  %vm1159 = vcmp.eq.s32.totalorder %v1153, 1
  %vm1160 = vcmp.eq.s32.totalorder %v1154, 1
  %vm1161 = vcmp.eq.s32.totalorder %v1155, 1
  %v1169 = vrot.slane %v1137, 4
  %v1170 = vrot.slane %v1138, 4
  %v1171 = vrot.slane %v1139, 4
  %v1172 = vrot.slane %v1140, 4
  %v1173 = vrot.slane %v1141, 4
  %v1174 = vrot.slane %v1142, 4
  %v1175 = vrot.slane %v1143, 4
  %1176 = vrot.lane.b32.xlu0 %v1169, 34
  %v1177 = vpop.permute.xlu0 %1176
  %1178 = vrot.lane.b32.xlu0 %v1170, 34
  %v1179 = vpop.permute.xlu0 %1178
  %1180 = vrot.lane.b32.xlu0 %v1171, 34
  %v1181 = vpop.permute.xlu0 %1180
  %1182 = vrot.lane.b32.xlu0 %v1172, 34
  %v1183 = vpop.permute.xlu0 %1182
  %1184 = vrot.lane.b32.xlu0 %v1173, 34
  %v1185 = vpop.permute.xlu0 %1184
  %1186 = vrot.lane.b32.xlu0 %v1174, 34
  %v1187 = vpop.permute.xlu0 %1186
  %1188 = vrot.lane.b32.xlu0 %v1175, 34
  %v1189 = vpop.permute.xlu0 %1188
  %vm1190 = vcmask 277504
  %v1191 = vsel %vm1190, %v1177, %v1179
  %v1192 = vsel %vm1190, %v1179, %v1181
  %v1193 = vsel %vm1190, %v1181, %v1183
  %v1194 = vsel %vm1190, %v1183, %v1185
  %v1195 = vsel %vm1190, %v1185, %v1187
  %v1196 = vsel %vm1190, %v1187, %v1189
  %v1203 = vsel %vm1156, %v1191, 0.0
  %v1204 = vsel %vm1157, %v1192, 0.0
  %v1205 = vsel %vm1158, %v1193, 0.0
  %v1206 = vsel %vm1159, %v1194, 0.0
  %v1207 = vsel %vm1160, %v1195, 0.0
  %v1208 = vsel %vm1161, %v1196, 0.0
  %v1209 = vpack.c.bf16 %v1204, %v1203
  %v1210 = vpack.c.bf16 %v1206, %v1205
  %v1211 = vpack.c.bf16 %v1208, %v1207
  %1212 = vst [vmem:[#allocation4] sm:$0x33] %v1209
  %1213 = vst [vmem:[#allocation4 + $0x8] sm:$0x33] %v1210
  %1214 = vst [vmem:[#allocation4 + $0x10] sm:$0x33] %v1211
  %v1215 = vld [vmem:[#allocation2] sm:$0xf0]
  %v1216 = vld [vmem:[#allocation2 + $0x8] sm:$0xf0]
  %v1217 = vld [vmem:[#allocation2 + $0x10] sm:$0xf0]
  %v1218 = vld [vmem:[#allocation2 + $0x18] sm:$0xf0]
  %v1219 = vld [vmem:[#allocation2 + $0x20] sm:$0xf0]
  %v1220 = vld [vmem:[#allocation2 + $0x28] sm:$0xf0]
  %v1221 = vld [vmem:[#allocation2 + $0x30] sm:$0xf0]
  %v1229 = vrot.slane %v1215, 4
  %v1230 = vrot.slane %v1216, 4
  %v1231 = vrot.slane %v1217, 4
  %v1232 = vrot.slane %v1218, 4
  %v1233 = vrot.slane %v1219, 4
  %v1234 = vrot.slane %v1220, 4
  %v1235 = vrot.slane %v1221, 4
  %1236 = vrot.lane.b32.xlu0 %v1229, 33
  %v1237 = vpop.permute.xlu0 %1236
  %1238 = vrot.lane.b32.xlu0 %v1230, 33
  %v1239 = vpop.permute.xlu0 %1238
  %1240 = vrot.lane.b32.xlu0 %v1231, 33
  %v1241 = vpop.permute.xlu0 %1240
  %1242 = vrot.lane.b32.xlu0 %v1232, 33
  %v1243 = vpop.permute.xlu0 %1242
  %1244 = vrot.lane.b32.xlu0 %v1233, 33
  %v1245 = vpop.permute.xlu0 %1244
  %1246 = vrot.lane.b32.xlu0 %v1234, 33
  %v1247 = vpop.permute.xlu0 %1246
  %1248 = vrot.lane.b32.xlu0 %v1235, 33
  %v1249 = vpop.permute.xlu0 %1248
  %vm1250 = vcmask 269312
  %v1251 = vsel %vm1250, %v1237, %v1239
  %v1252 = vsel %vm1250, %v1239, %v1241
  %v1253 = vsel %vm1250, %v1241, %v1243
  %v1254 = vsel %vm1250, %v1243, %v1245
  %v1255 = vsel %vm1250, %v1245, %v1247
  %v1256 = vsel %vm1250, %v1247, %v1249
  %v1263 = vsel %vm417, %v1251, 0.0
  %v1264 = vsel %vm418, %v1252, 0.0
  %v1265 = vsel %vm419, %v1253, 0.0
  %v1266 = vsel %vm420, %v1254, 0.0
  %v1267 = vsel %vm421, %v1255, 0.0
  %v1268 = vsel %vm422, %v1256, 0.0
  %v1269 = vpack.c.bf16 %v1264, %v1263
  %v1270 = vpack.c.bf16 %v1266, %v1265
  %v1271 = vpack.c.bf16 %v1268, %v1267
  %v1275 = vrot.slane %v1269, 6
  %v1276 = vrot.slane %v1270, 6
  %v1277 = vrot.slane %v1271, 6
  %1281 = vst [vmem:[#allocation4] sm:$0xcc] %v1275
  %1282 = vst [vmem:[#allocation4 + $0x8] sm:$0xcc] %v1276
  %1283 = vst [vmem:[#allocation4 + $0x10] sm:$0xcc] %v1277
  %v1284 = vld [vmem:[#allocation2] sm:$0xf0]
  %v1285 = vld [vmem:[#allocation2 + $0x8] sm:$0xf0]
  %v1286 = vld [vmem:[#allocation2 + $0x10] sm:$0xf0]
  %v1287 = vld [vmem:[#allocation2 + $0x18] sm:$0xf0]
  %v1288 = vld [vmem:[#allocation2 + $0x20] sm:$0xf0]
  %v1289 = vld [vmem:[#allocation2 + $0x28] sm:$0xf0]
  %v1290 = vld [vmem:[#allocation2 + $0x30] sm:$0xf0]
  %v1291 = vpack.c.bf16 %v1285, %v1284
  %v1292 = vpack.c.bf16 %v1287, %v1286
  %v1293 = vpack.c.bf16 %v1289, %v1288
  %v1294 = vpack.c.bf16 %v1290, %v1290
  %v1299 = vrot.slane %v1291, 6
  %v1300 = vrot.slane %v1299, 4
  %v1301 = vrot.slane %v1292, 6
  %v1302 = vrot.slane %v1301, 4
  %v1303 = vrot.slane %v1293, 6
  %v1304 = vrot.slane %v1303, 4
  %v1305 = vrot.slane %v1294, 6
  %v1306 = vrot.slane %v1305, 4
  %1307 = vrot.lane.b32.xlu0 %v1300, 32
  %v1308 = vpop.permute.xlu0 %1307
  %1309 = vrot.lane.b32.xlu0 %v1302, 32
  %v1310 = vpop.permute.xlu0 %1309
  %1311 = vrot.lane.b32.xlu0 %v1304, 32
  %v1312 = vpop.permute.xlu0 %1311
  %1313 = vrot.lane.b32.xlu0 %v1306, 32
  %v1314 = vpop.permute.xlu0 %1313
  %v1315 = vrot.slane %v1308, 4
  %v1316 = vrot.slane %v1310, 4
  %v1317 = vrot.slane %v1312, 4
  %v1318 = vrot.slane %v1314, 4
  %v1319 = vsel %vm500, %v1315, %v1316
  %vm1320 = vcmask 261120
  %v1321 = vsel %vm1320, %v1308, %v1319
  %v1322 = vsel %vm500, %v1316, %v1317
  %v1323 = vsel %vm1320, %v1310, %v1322
  %v1324 = vsel %vm500, %v1317, %v1318
  %v1325 = vsel %vm1320, %v1312, %v1324
  %1329 = vst [vmem:[#allocation4 + $0x18] sm:$0x33] %v1321
  %1330 = vst [vmem:[#allocation4 + $0x20] sm:$0x33] %v1323
  %1331 = vst [vmem:[#allocation4 + $0x28] sm:$0x33] %v1325
  %v1332 = vld [vmem:[#allocation2] sm:$0xf0]
  %v1333 = vld [vmem:[#allocation2 + $0x8] sm:$0xf0]
  %v1334 = vld [vmem:[#allocation2 + $0x10] sm:$0xf0]
  %v1335 = vld [vmem:[#allocation2 + $0x18] sm:$0xf0]
  %v1336 = vld [vmem:[#allocation2 + $0x20] sm:$0xf0]
  %v1337 = vld [vmem:[#allocation2 + $0x28] sm:$0xf0]
  %v1338 = vld [vmem:[#allocation2 + $0x30] sm:$0xf0]
  %v1346 = vrot.slane %v1332, 4
  %v1347 = vrot.slane %v1333, 4
  %v1348 = vrot.slane %v1334, 4
  %v1349 = vrot.slane %v1335, 4
  %v1350 = vrot.slane %v1336, 4
  %v1351 = vrot.slane %v1337, 4
  %v1352 = vrot.slane %v1338, 4
  %1353 = vrot.lane.b32.xlu0 %v1346, 31
  %v1354 = vpop.permute.xlu0 %1353
  %1355 = vrot.lane.b32.xlu0 %v1347, 31
  %v1356 = vpop.permute.xlu0 %1355
  %1357 = vrot.lane.b32.xlu0 %v1348, 31
  %v1358 = vpop.permute.xlu0 %1357
  %1359 = vrot.lane.b32.xlu0 %v1349, 31
  %v1360 = vpop.permute.xlu0 %1359
  %1361 = vrot.lane.b32.xlu0 %v1350, 31
  %v1362 = vpop.permute.xlu0 %1361
  %1363 = vrot.lane.b32.xlu0 %v1351, 31
  %v1364 = vpop.permute.xlu0 %1363
  %1365 = vrot.lane.b32.xlu0 %v1352, 31
  %v1366 = vpop.permute.xlu0 %1365
  %vm1367 = vcmask 252928
  %v1368 = vsel %vm1367, %v1354, %v1356
  %v1369 = vsel %vm1367, %v1356, %v1358
  %v1370 = vsel %vm1367, %v1358, %v1360
  %v1371 = vsel %vm1367, %v1360, %v1362
  %v1372 = vsel %vm1367, %v1362, %v1364
  %v1373 = vsel %vm1367, %v1364, %v1366
  %v1380 = vsel %vm533, %v1368, 0.0
  %v1381 = vsel %vm534, %v1369, 0.0
  %v1382 = vsel %vm535, %v1370, 0.0
  %v1383 = vsel %vm536, %v1371, 0.0
  %v1384 = vsel %vm537, %v1372, 0.0
  %v1385 = vsel %vm538, %v1373, 0.0
  %v1386 = vpack.c.bf16 %v1381, %v1380
  %v1387 = vpack.c.bf16 %v1383, %v1382
  %v1388 = vpack.c.bf16 %v1385, %v1384
  %v1392 = vrot.slane %v1386, 6
  %v1393 = vrot.slane %v1387, 6
  %v1394 = vrot.slane %v1388, 6
  %1398 = vst [vmem:[#allocation4 + $0x18] sm:$0xcc] %v1392
  %1399 = vst [vmem:[#allocation4 + $0x20] sm:$0xcc] %v1393
  %1400 = vst [vmem:[#allocation4 + $0x28] sm:$0xcc] %v1394
  %v1401 = vld [vmem:[#allocation2] sm:$0xf0]
  %v1402 = vld [vmem:[#allocation2 + $0x8] sm:$0xf0]
  %v1403 = vld [vmem:[#allocation2 + $0x10] sm:$0xf0]
  %v1404 = vld [vmem:[#allocation2 + $0x18] sm:$0xf0]
  %v1405 = vld [vmem:[#allocation2 + $0x20] sm:$0xf0]
  %v1406 = vld [vmem:[#allocation2 + $0x28] sm:$0xf0]
  %v1407 = vld [vmem:[#allocation2 + $0x30] sm:$0xf0]
  %vm1408 = vcmp.lt.f32.partialorder %v82, 13.5
  %vm1409 = vcmp.lt.f32.partialorder %v83, 13.5
  %vm1410 = vcmp.lt.f32.partialorder %v84, 13.5
  %vm1411 = vcmp.lt.f32.partialorder %v85, 13.5
  %vm1412 = vcmp.lt.f32.partialorder %v86, 13.5
  %vm1413 = vcmp.lt.f32.partialorder %v87, 13.5
  %v1414 = vsel %vm1408, 1, 0
  %v1415 = vsel %vm1409, 1, 0
  %v1416 = vsel %vm1410, 1, 0
  %v1417 = vsel %vm1411, 1, 0
  %v1418 = vsel %vm1412, 1, 0
  %v1419 = vsel %vm1413, 1, 0
  %vm1420 = vcmp.eq.s32.totalorder %v1414, 1
  %vm1421 = vcmp.eq.s32.totalorder %v1415, 1
  %vm1422 = vcmp.eq.s32.totalorder %v1416, 1
  %vm1423 = vcmp.eq.s32.totalorder %v1417, 1
  %vm1424 = vcmp.eq.s32.totalorder %v1418, 1
  %vm1425 = vcmp.eq.s32.totalorder %v1419, 1
  %v1433 = vrot.slane %v1401, 4
  %v1434 = vrot.slane %v1402, 4
  %v1435 = vrot.slane %v1403, 4
  %v1436 = vrot.slane %v1404, 4
  %v1437 = vrot.slane %v1405, 4
  %v1438 = vrot.slane %v1406, 4
  %v1439 = vrot.slane %v1407, 4
  %1440 = vrot.lane.b32.xlu0 %v1433, 30
  %v1441 = vpop.permute.xlu0 %1440
  %1442 = vrot.lane.b32.xlu0 %v1434, 30
  %v1443 = vpop.permute.xlu0 %1442
  %1444 = vrot.lane.b32.xlu0 %v1435, 30
  %v1445 = vpop.permute.xlu0 %1444
  %1446 = vrot.lane.b32.xlu0 %v1436, 30
  %v1447 = vpop.permute.xlu0 %1446
  %1448 = vrot.lane.b32.xlu0 %v1437, 30
  %v1449 = vpop.permute.xlu0 %1448
  %1450 = vrot.lane.b32.xlu0 %v1438, 30
  %v1451 = vpop.permute.xlu0 %1450
  %1452 = vrot.lane.b32.xlu0 %v1439, 30
  %v1453 = vpop.permute.xlu0 %1452
  %vm1454 = vcmask 244736
  %v1455 = vsel %vm1454, %v1441, %v1443
  %v1456 = vsel %vm1454, %v1443, %v1445
  %v1457 = vsel %vm1454, %v1445, %v1447
  %v1458 = vsel %vm1454, %v1447, %v1449
  %v1459 = vsel %vm1454, %v1449, %v1451
  %v1460 = vsel %vm1454, %v1451, %v1453
  %v1467 = vsel %vm1420, %v1455, 0.0
  %v1468 = vsel %vm1421, %v1456, 0.0
  %v1469 = vsel %vm1422, %v1457, 0.0
  %v1470 = vsel %vm1423, %v1458, 0.0
  %v1471 = vsel %vm1424, %v1459, 0.0
  %v1472 = vsel %vm1425, %v1460, 0.0
  %v1473 = vpack.c.bf16 %v1468, %v1467
  %v1474 = vpack.c.bf16 %v1470, %v1469
  %v1475 = vpack.c.bf16 %v1472, %v1471
  %1476 = vst [vmem:[#allocation4 + $0x30] sm:$0x33] %v1473
  %1477 = vst [vmem:[#allocation4 + $0x38] sm:$0x33] %v1474
  %1478 = vst [vmem:[#allocation4 + $0x40] sm:$0x33] %v1475
  %v1479 = vld [vmem:[#allocation2] sm:$0xf0]
  %v1480 = vld [vmem:[#allocation2 + $0x8] sm:$0xf0]
  %v1481 = vld [vmem:[#allocation2 + $0x10] sm:$0xf0]
  %v1482 = vld [vmem:[#allocation2 + $0x18] sm:$0xf0]
  %v1483 = vld [vmem:[#allocation2 + $0x20] sm:$0xf0]
  %v1484 = vld [vmem:[#allocation2 + $0x28] sm:$0xf0]
  %v1485 = vld [vmem:[#allocation2 + $0x30] sm:$0xf0]
  %v1493 = vrot.slane %v1479, 4
  %v1494 = vrot.slane %v1480, 4
  %v1495 = vrot.slane %v1481, 4
  %v1496 = vrot.slane %v1482, 4
  %v1497 = vrot.slane %v1483, 4
  %v1498 = vrot.slane %v1484, 4
  %v1499 = vrot.slane %v1485, 4
  %1500 = vrot.lane.b32.xlu0 %v1493, 18
  %v1501 = vpop.permute.xlu0 %1500
  %1502 = vrot.lane.b32.xlu0 %v1494, 18
  %v1503 = vpop.permute.xlu0 %1502
  %1504 = vrot.lane.b32.xlu0 %v1495, 18
  %v1505 = vpop.permute.xlu0 %1504
  %1506 = vrot.lane.b32.xlu0 %v1496, 18
  %v1507 = vpop.permute.xlu0 %1506
  %1508 = vrot.lane.b32.xlu0 %v1497, 18
  %v1509 = vpop.permute.xlu0 %1508
  %1510 = vrot.lane.b32.xlu0 %v1498, 18
  %v1511 = vpop.permute.xlu0 %1510
  %1512 = vrot.lane.b32.xlu0 %v1499, 18
  %v1513 = vpop.permute.xlu0 %1512
  %vm1514 = vcmask 146432
  %v1515 = vsel %vm1514, %v1501, %v1503
  %v1516 = vsel %vm1514, %v1503, %v1505
  %v1517 = vsel %vm1514, %v1505, %v1507
  %v1518 = vsel %vm1514, %v1507, %v1509
  %v1519 = vsel %vm1514, %v1509, %v1511
  %v1520 = vsel %vm1514, %v1511, %v1513
  %v1527 = vsel %vm1156, %v1515, 0.0
  %v1528 = vsel %vm1157, %v1516, 0.0
  %v1529 = vsel %vm1158, %v1517, 0.0
  %v1530 = vsel %vm1159, %v1518, 0.0
  %v1531 = vsel %vm1160, %v1519, 0.0
  %v1532 = vsel %vm1161, %v1520, 0.0
  %v1533 = vpack.c.bf16 %v1528, %v1527
  %v1534 = vpack.c.bf16 %v1530, %v1529
  %v1535 = vpack.c.bf16 %v1532, %v1531
  %v1539 = vrot.slane %v1533, 6
  %v1540 = vrot.slane %v1534, 6
  %v1541 = vrot.slane %v1535, 6
  %1545 = vst [vmem:[#allocation4 + $0x30] sm:$0xcc] %v1539
  %1546 = vst [vmem:[#allocation4 + $0x38] sm:$0xcc] %v1540
  %1547 = vst [vmem:[#allocation4 + $0x40] sm:$0xcc] %v1541
  %v1548 = vld [vmem:[#allocation2] sm:$0xf0]
  %v1549 = vld [vmem:[#allocation2 + $0x8] sm:$0xf0]
  %v1550 = vld [vmem:[#allocation2 + $0x10] sm:$0xf0]
  %v1551 = vld [vmem:[#allocation2 + $0x18] sm:$0xf0]
  %v1552 = vld [vmem:[#allocation2 + $0x20] sm:$0xf0]
  %v1553 = vld [vmem:[#allocation2 + $0x28] sm:$0xf0]
  %v1554 = vld [vmem:[#allocation2 + $0x30] sm:$0xf0]
  %v1562 = vrot.slane %v1548, 4
  %v1563 = vrot.slane %v1549, 4
  %v1564 = vrot.slane %v1550, 4
  %v1565 = vrot.slane %v1551, 4
  %v1566 = vrot.slane %v1552, 4
  %v1567 = vrot.slane %v1553, 4
  %v1568 = vrot.slane %v1554, 4
  %1569 = vrot.lane.b32.xlu0 %v1562, 17
  %v1570 = vpop.permute.xlu0 %1569
  %1571 = vrot.lane.b32.xlu0 %v1563, 17
  %v1572 = vpop.permute.xlu0 %1571
  %1573 = vrot.lane.b32.xlu0 %v1564, 17
  %v1574 = vpop.permute.xlu0 %1573
  %1575 = vrot.lane.b32.xlu0 %v1565, 17
  %v1576 = vpop.permute.xlu0 %1575
  %1577 = vrot.lane.b32.xlu0 %v1566, 17
  %v1578 = vpop.permute.xlu0 %1577
  %1579 = vrot.lane.b32.xlu0 %v1567, 17
  %v1580 = vpop.permute.xlu0 %1579
  %1581 = vrot.lane.b32.xlu0 %v1568, 17
  %v1582 = vpop.permute.xlu0 %1581
  %v1583 = vsel %vm444, %v1570, %v1572
  %v1584 = vsel %vm444, %v1572, %v1574
  %v1585 = vsel %vm444, %v1574, %v1576
  %v1586 = vsel %vm444, %v1576, %v1578
  %v1587 = vsel %vm444, %v1578, %v1580
  %v1588 = vsel %vm444, %v1580, %v1582
  %v1595 = vsel %vm417, %v1583, 0.0
  %v1596 = vsel %vm418, %v1584, 0.0
  %v1597 = vsel %vm419, %v1585, 0.0
  %v1598 = vsel %vm420, %v1586, 0.0
  %v1599 = vsel %vm421, %v1587, 0.0
  %v1600 = vsel %vm422, %v1588, 0.0
  %v1601 = vpack.c.bf16 %v1596, %v1595
  %v1602 = vpack.c.bf16 %v1598, %v1597
  %v1603 = vpack.c.bf16 %v1600, %v1599
  %1604 = vst [vmem:[#allocation4 + $0x48] sm:$0x33] %v1601
  %1605 = vst [vmem:[#allocation4 + $0x50] sm:$0x33] %v1602
  %1606 = vst [vmem:[#allocation4 + $0x58] sm:$0x33] %v1603
  %v1607 = vld [vmem:[#allocation2] sm:$0xf0]
  %v1608 = vld [vmem:[#allocation2 + $0x8] sm:$0xf0]
  %v1609 = vld [vmem:[#allocation2 + $0x10] sm:$0xf0]
  %v1610 = vld [vmem:[#allocation2 + $0x18] sm:$0xf0]
  %v1611 = vld [vmem:[#allocation2 + $0x20] sm:$0xf0]
  %v1612 = vld [vmem:[#allocation2 + $0x28] sm:$0xf0]
  %v1613 = vld [vmem:[#allocation2 + $0x30] sm:$0xf0]
  %v1614 = vpack.c.bf16 %v1608, %v1607
  %v1615 = vpack.c.bf16 %v1610, %v1609
  %v1616 = vpack.c.bf16 %v1612, %v1611
  %v1617 = vpack.c.bf16 %v1613, %v1613
  %1622 = vrot.lane.b32.xlu0 %v1614, 16
  %v1623 = vpop.permute.xlu0 %1622
  %1624 = vrot.lane.b32.xlu0 %v1615, 16
  %v1625 = vpop.permute.xlu0 %1624
  %1626 = vrot.lane.b32.xlu0 %v1616, 16
  %v1627 = vpop.permute.xlu0 %1626
  %1628 = vrot.lane.b32.xlu0 %v1617, 16
  %v1629 = vpop.permute.xlu0 %1628
  %v1630 = vrot.slane %v1623, 4
  %v1631 = vrot.slane %v1625, 4
  %v1632 = vrot.slane %v1627, 4
  %v1633 = vrot.slane %v1629, 4
  %v1634 = vsel %vm500, %v1630, %v1631
  %v1635 = vsel %vm502, %v1623, %v1634
  %v1636 = vsel %vm500, %v1631, %v1632
  %v1637 = vsel %vm502, %v1625, %v1636
  %v1638 = vsel %vm500, %v1632, %v1633
  %v1639 = vsel %vm502, %v1627, %v1638
  %1643 = vst [vmem:[#allocation4 + $0x48] sm:$0xcc] %v1635
  %1644 = vst [vmem:[#allocation4 + $0x50] sm:$0xcc] %v1637
  %1645 = vst [vmem:[#allocation4 + $0x58] sm:$0xcc] %v1639
  %v1646 = vld [vmem:[#allocation2] sm:$0xf0]
  %v1647 = vld [vmem:[#allocation2 + $0x8] sm:$0xf0]
  %v1648 = vld [vmem:[#allocation2 + $0x10] sm:$0xf0]
  %v1649 = vld [vmem:[#allocation2 + $0x18] sm:$0xf0]
  %v1650 = vld [vmem:[#allocation2 + $0x20] sm:$0xf0]
  %v1651 = vld [vmem:[#allocation2 + $0x28] sm:$0xf0]
  %v1652 = vld [vmem:[#allocation2 + $0x30] sm:$0xf0]
  %v1660 = vrot.slane %v1646, 4
  %v1661 = vrot.slane %v1647, 4
  %v1662 = vrot.slane %v1648, 4
  %v1663 = vrot.slane %v1649, 4
  %v1664 = vrot.slane %v1650, 4
  %v1665 = vrot.slane %v1651, 4
  %v1666 = vrot.slane %v1652, 4
  %1667 = vrot.lane.b32.xlu0 %v1660, 15
  %v1668 = vpop.permute.xlu0 %1667
  %1669 = vrot.lane.b32.xlu0 %v1661, 15
  %v1670 = vpop.permute.xlu0 %1669
  %1671 = vrot.lane.b32.xlu0 %v1662, 15
  %v1672 = vpop.permute.xlu0 %1671
  %1673 = vrot.lane.b32.xlu0 %v1663, 15
  %v1674 = vpop.permute.xlu0 %1673
  %1675 = vrot.lane.b32.xlu0 %v1664, 15
  %v1676 = vpop.permute.xlu0 %1675
  %1677 = vrot.lane.b32.xlu0 %v1665, 15
  %v1678 = vpop.permute.xlu0 %1677
  %1679 = vrot.lane.b32.xlu0 %v1666, 15
  %v1680 = vpop.permute.xlu0 %1679
  %v1681 = vsel %vm560, %v1668, %v1670
  %v1682 = vsel %vm560, %v1670, %v1672
  %v1683 = vsel %vm560, %v1672, %v1674
  %v1684 = vsel %vm560, %v1674, %v1676
  %v1685 = vsel %vm560, %v1676, %v1678
  %v1686 = vsel %vm560, %v1678, %v1680
  %v1693 = vsel %vm533, %v1681, 0.0
  %v1694 = vsel %vm534, %v1682, 0.0
  %v1695 = vsel %vm535, %v1683, 0.0
  %v1696 = vsel %vm536, %v1684, 0.0
  %v1697 = vsel %vm537, %v1685, 0.0
  %v1698 = vsel %vm538, %v1686, 0.0
  %v1699 = vpack.c.bf16 %v1694, %v1693
  %v1700 = vpack.c.bf16 %v1696, %v1695
  %v1701 = vpack.c.bf16 %v1698, %v1697
  %1702 = vst [vmem:[#allocation4 + $0x60] sm:$0x33] %v1699
  %1703 = vst [vmem:[#allocation4 + $0x68] sm:$0x33] %v1700
  %1704 = vst [vmem:[#allocation4 + $0x70] sm:$0x33] %v1701
  %v1705 = vld [vmem:[#allocation2] sm:$0xf0]
  %v1706 = vld [vmem:[#allocation2 + $0x8] sm:$0xf0]
  %v1707 = vld [vmem:[#allocation2 + $0x10] sm:$0xf0]
  %v1708 = vld [vmem:[#allocation2 + $0x18] sm:$0xf0]
  %v1709 = vld [vmem:[#allocation2 + $0x20] sm:$0xf0]
  %v1710 = vld [vmem:[#allocation2 + $0x28] sm:$0xf0]
  %v1711 = vld [vmem:[#allocation2 + $0x30] sm:$0xf0]
  %v1719 = vrot.slane %v1705, 4
  %v1720 = vrot.slane %v1706, 4
  %v1721 = vrot.slane %v1707, 4
  %v1722 = vrot.slane %v1708, 4
  %v1723 = vrot.slane %v1709, 4
  %v1724 = vrot.slane %v1710, 4
  %v1725 = vrot.slane %v1711, 4
  %1726 = vrot.lane.b32.xlu0 %v1719, 14
  %v1727 = vpop.permute.xlu0 %1726
  %1728 = vrot.lane.b32.xlu0 %v1720, 14
  %v1729 = vpop.permute.xlu0 %1728
  %1730 = vrot.lane.b32.xlu0 %v1721, 14
  %v1731 = vpop.permute.xlu0 %1730
  %1732 = vrot.lane.b32.xlu0 %v1722, 14
  %v1733 = vpop.permute.xlu0 %1732
  %1734 = vrot.lane.b32.xlu0 %v1723, 14
  %v1735 = vpop.permute.xlu0 %1734
  %1736 = vrot.lane.b32.xlu0 %v1724, 14
  %v1737 = vpop.permute.xlu0 %1736
  %1738 = vrot.lane.b32.xlu0 %v1725, 14
  %v1739 = vpop.permute.xlu0 %1738
  %vm1740 = vcmask 113664
  %v1741 = vsel %vm1740, %v1727, %v1729
  %v1742 = vsel %vm1740, %v1729, %v1731
  %v1743 = vsel %vm1740, %v1731, %v1733
  %v1744 = vsel %vm1740, %v1733, %v1735
  %v1745 = vsel %vm1740, %v1735, %v1737
  %v1746 = vsel %vm1740, %v1737, %v1739
  %v1753 = vsel %vm1420, %v1741, 0.0
  %v1754 = vsel %vm1421, %v1742, 0.0
  %v1755 = vsel %vm1422, %v1743, 0.0
  %v1756 = vsel %vm1423, %v1744, 0.0
  %v1757 = vsel %vm1424, %v1745, 0.0
  %v1758 = vsel %vm1425, %v1746, 0.0
  %v1759 = vpack.c.bf16 %v1754, %v1753
  %v1760 = vpack.c.bf16 %v1756, %v1755
  %v1761 = vpack.c.bf16 %v1758, %v1757
  %v1765 = vrot.slane %v1759, 6
  %v1766 = vrot.slane %v1760, 6
  %v1767 = vrot.slane %v1761, 6
  %1771 = vst [vmem:[#allocation4 + $0x60] sm:$0xcc] %v1765
  %1772 = vst [vmem:[#allocation4 + $0x68] sm:$0xcc] %v1766
  %1773 = vst [vmem:[#allocation4 + $0x70] sm:$0xcc] %v1767
  %v1774 = vld [vmem:[#allocation2] sm:$0xf0]
  %v1775 = vld [vmem:[#allocation2 + $0x8] sm:$0xf0]
  %v1776 = vld [vmem:[#allocation2 + $0x10] sm:$0xf0]
  %v1777 = vld [vmem:[#allocation2 + $0x18] sm:$0xf0]
  %v1778 = vld [vmem:[#allocation2 + $0x20] sm:$0xf0]
  %v1779 = vld [vmem:[#allocation2 + $0x28] sm:$0xf0]
  %v1780 = vld [vmem:[#allocation2 + $0x30] sm:$0xf0]
  %v1788 = vrot.slane %v1774, 4
  %v1789 = vrot.slane %v1775, 4
  %v1790 = vrot.slane %v1776, 4
  %v1791 = vrot.slane %v1777, 4
  %v1792 = vrot.slane %v1778, 4
  %v1793 = vrot.slane %v1779, 4
  %v1794 = vrot.slane %v1780, 4
  %1795 = vrot.lane.b32.xlu0 %v1788, 2
  %v1796 = vpop.permute.xlu0 %1795
  %1797 = vrot.lane.b32.xlu0 %v1789, 2
  %v1798 = vpop.permute.xlu0 %1797
  %1799 = vrot.lane.b32.xlu0 %v1790, 2
  %v1800 = vpop.permute.xlu0 %1799
  %1801 = vrot.lane.b32.xlu0 %v1791, 2
  %v1802 = vpop.permute.xlu0 %1801
  %1803 = vrot.lane.b32.xlu0 %v1792, 2
  %v1804 = vpop.permute.xlu0 %1803
  %1805 = vrot.lane.b32.xlu0 %v1793, 2
  %v1806 = vpop.permute.xlu0 %1805
  %1807 = vrot.lane.b32.xlu0 %v1794, 2
  %v1808 = vpop.permute.xlu0 %1807
  %vm1809 = vcmask 15360
  %v1810 = vsel %vm1809, %v1796, %v1798
  %v1811 = vsel %vm1809, %v1798, %v1800
  %v1812 = vsel %vm1809, %v1800, %v1802
  %v1813 = vsel %vm1809, %v1802, %v1804
  %v1814 = vsel %vm1809, %v1804, %v1806
  %v1815 = vsel %vm1809, %v1806, %v1808
  %v1822 = vsel %vm1156, %v1810, 0.0
  %v1823 = vsel %vm1157, %v1811, 0.0
  %v1824 = vsel %vm1158, %v1812, 0.0
  %v1825 = vsel %vm1159, %v1813, 0.0
  %v1826 = vsel %vm1160, %v1814, 0.0
  %v1827 = vsel %vm1161, %v1815, 0.0
  %v1828 = vpack.c.bf16 %v1823, %v1822
  %v1829 = vpack.c.bf16 %v1825, %v1824
  %v1830 = vpack.c.bf16 %v1827, %v1826
  %1831 = vst [vmem:[#allocation4 + $0x78] sm:$0x33] %v1828
  %1832 = vst [vmem:[#allocation4 + $0x80] sm:$0x33] %v1829
  %1833 = vst [vmem:[#allocation4 + $0x88] sm:$0x33] %v1830
  %v1834 = vld [vmem:[#allocation2] sm:$0xf0]
  %v1835 = vld [vmem:[#allocation2 + $0x8] sm:$0xf0]
  %v1836 = vld [vmem:[#allocation2 + $0x10] sm:$0xf0]
  %v1837 = vld [vmem:[#allocation2 + $0x18] sm:$0xf0]
  %v1838 = vld [vmem:[#allocation2 + $0x20] sm:$0xf0]
  %v1839 = vld [vmem:[#allocation2 + $0x28] sm:$0xf0]
  %v1840 = vld [vmem:[#allocation2 + $0x30] sm:$0xf0]
  %v1848 = vrot.slane %v1834, 4
  %v1849 = vrot.slane %v1835, 4
  %v1850 = vrot.slane %v1836, 4
  %v1851 = vrot.slane %v1837, 4
  %v1852 = vrot.slane %v1838, 4
  %v1853 = vrot.slane %v1839, 4
  %v1854 = vrot.slane %v1840, 4
  %1855 = vrot.lane.b32.xlu0 %v1848, 1
  %v1856 = vpop.permute.xlu0 %1855
  %1857 = vrot.lane.b32.xlu0 %v1849, 1
  %v1858 = vpop.permute.xlu0 %1857
  %1859 = vrot.lane.b32.xlu0 %v1850, 1
  %v1860 = vpop.permute.xlu0 %1859
  %1861 = vrot.lane.b32.xlu0 %v1851, 1
  %v1862 = vpop.permute.xlu0 %1861
  %1863 = vrot.lane.b32.xlu0 %v1852, 1
  %v1864 = vpop.permute.xlu0 %1863
  %1865 = vrot.lane.b32.xlu0 %v1853, 1
  %v1866 = vpop.permute.xlu0 %1865
  %1867 = vrot.lane.b32.xlu0 %v1854, 1
  %v1868 = vpop.permute.xlu0 %1867
  %v1869 = vsel %vm613, %v1856, %v1858
  %v1870 = vsel %vm613, %v1858, %v1860
  %v1871 = vsel %vm613, %v1860, %v1862
  %v1872 = vsel %vm613, %v1862, %v1864
  %v1873 = vsel %vm613, %v1864, %v1866
  %v1874 = vsel %vm613, %v1866, %v1868
  %v1881 = vsel %vm417, %v1869, 0.0
  %v1882 = vsel %vm418, %v1870, 0.0
  %v1883 = vsel %vm419, %v1871, 0.0
  %v1884 = vsel %vm420, %v1872, 0.0
  %v1885 = vsel %vm421, %v1873, 0.0
  %v1886 = vsel %vm422, %v1874, 0.0
  %v1887 = vpack.c.bf16 %v1882, %v1881
  %v1888 = vpack.c.bf16 %v1884, %v1883
  %v1889 = vpack.c.bf16 %v1886, %v1885
  %v1893 = vrot.slane %v1887, 6
  %v1894 = vrot.slane %v1888, 6
  %v1895 = vrot.slane %v1889, 6
  %1899 = vst [vmem:[#allocation4 + $0x78] sm:$0xcc] %v1893
  %1900 = vst [vmem:[#allocation4 + $0x80] sm:$0xcc] %v1894
  %1901 = vst [vmem:[#allocation4 + $0x88] sm:$0xcc] %v1895
  %v1902 = vld [vmem:[#allocation2 + $0x8] sm:$0xf0]
  %v1903 = vld [vmem:[#allocation2 + $0x10] sm:$0xf0]
  %v1904 = vld [vmem:[#allocation2 + $0x18] sm:$0xf0]
  %v1905 = vld [vmem:[#allocation2 + $0x20] sm:$0xf0]
  %v1906 = vld [vmem:[#allocation2 + $0x28] sm:$0xf0]
  %v1907 = vld [vmem:[#allocation2 + $0x30] sm:$0xf0]
  %v1908 = vpack.c.bf16 %v1903, %v1902
  %v1909 = vpack.c.bf16 %v1905, %v1904
  %v1910 = vpack.c.bf16 %v1907, %v1906
  %v1914 = vrot.slane %v1908, 6
  %v1915 = vrot.slane %v1914, 4
  %v1916 = vrot.slane %v1909, 6
  %v1917 = vrot.slane %v1916, 4
  %v1918 = vrot.slane %v1910, 6
  %v1919 = vrot.slane %v1918, 4
  %1923 = vst [vmem:[#allocation4 + $0x90] sm:$0x33] %v1915
  %1924 = vst [vmem:[#allocation4 + $0x98] sm:$0x33] %v1917
  %1925 = vst [vmem:[#allocation4 + $0xa0] sm:$0x33] %v1919
  %v1926 = vld [vmem:[#allocation2 + $0x8] sm:$0xf0]
  %v1927 = vld [vmem:[#allocation2 + $0x10] sm:$0xf0]
  %v1928 = vld [vmem:[#allocation2 + $0x18] sm:$0xf0]
  %v1929 = vld [vmem:[#allocation2 + $0x20] sm:$0xf0]
  %v1930 = vld [vmem:[#allocation2 + $0x28] sm:$0xf0]
  %v1931 = vld [vmem:[#allocation2 + $0x30] sm:$0xf0]
  %v1932 = vld [vmem:[#allocation2 + $0x38] sm:$0xf0]
  %v1940 = vrot.slane %v1926, 4
  %v1941 = vrot.slane %v1927, 4
  %v1942 = vrot.slane %v1928, 4
  %v1943 = vrot.slane %v1929, 4
  %v1944 = vrot.slane %v1930, 4
  %v1945 = vrot.slane %v1931, 4
  %v1946 = vrot.slane %v1932, 4
  %1947 = vrot.lane.b32.xlu0 %v1940, 127
  %v1948 = vpop.permute.xlu0 %1947
  %1949 = vrot.lane.b32.xlu0 %v1941, 127
  %v1950 = vpop.permute.xlu0 %1949
  %1951 = vrot.lane.b32.xlu0 %v1942, 127
  %v1952 = vpop.permute.xlu0 %1951
  %1953 = vrot.lane.b32.xlu0 %v1943, 127
  %v1954 = vpop.permute.xlu0 %1953
  %1955 = vrot.lane.b32.xlu0 %v1944, 127
  %v1956 = vpop.permute.xlu0 %1955
  %1957 = vrot.lane.b32.xlu0 %v1945, 127
  %v1958 = vpop.permute.xlu0 %1957
  %1959 = vrot.lane.b32.xlu0 %v1946, 127
  %v1960 = vpop.permute.xlu0 %1959
  %v1961 = vsel %vm687, %v1948, %v1950
  %v1962 = vsel %vm687, %v1950, %v1952
  %v1963 = vsel %vm687, %v1952, %v1954
  %v1964 = vsel %vm687, %v1954, %v1956
  %v1965 = vsel %vm687, %v1956, %v1958
  %v1966 = vsel %vm687, %v1958, %v1960
  %v1973 = vsel %vm533, %v1961, 0.0
  %v1974 = vsel %vm534, %v1962, 0.0
  %v1975 = vsel %vm535, %v1963, 0.0
  %v1976 = vsel %vm536, %v1964, 0.0
  %v1977 = vsel %vm537, %v1965, 0.0
  %v1978 = vsel %vm538, %v1966, 0.0
  %v1979 = vpack.c.bf16 %v1974, %v1973
  %v1980 = vpack.c.bf16 %v1976, %v1975
  %v1981 = vpack.c.bf16 %v1978, %v1977
  %v1985 = vrot.slane %v1979, 6
  %v1986 = vrot.slane %v1980, 6
  %v1987 = vrot.slane %v1981, 6
  %1991 = vst [vmem:[#allocation4 + $0x90] sm:$0xcc] %v1985
  %1992 = vst [vmem:[#allocation4 + $0x98] sm:$0xcc] %v1986
  %1993 = vst [vmem:[#allocation4 + $0xa0] sm:$0xcc] %v1987
  %v1994 = vld [vmem:[#allocation2 + $0x8] sm:$0xf0]
  %v1995 = vld [vmem:[#allocation2 + $0x10] sm:$0xf0]
  %v1996 = vld [vmem:[#allocation2 + $0x18] sm:$0xf0]
  %v1997 = vld [vmem:[#allocation2 + $0x20] sm:$0xf0]
  %v1998 = vld [vmem:[#allocation2 + $0x28] sm:$0xf0]
  %v1999 = vld [vmem:[#allocation2 + $0x30] sm:$0xf0]
  %v2000 = vld [vmem:[#allocation2 + $0x38] sm:$0xf0]
  %v2008 = vrot.slane %v1994, 4
  %v2009 = vrot.slane %v1995, 4
  %v2010 = vrot.slane %v1996, 4
  %v2011 = vrot.slane %v1997, 4
  %v2012 = vrot.slane %v1998, 4
  %v2013 = vrot.slane %v1999, 4
  %v2014 = vrot.slane %v2000, 4
  %2015 = vrot.lane.b32.xlu0 %v2008, 126
  %v2016 = vpop.permute.xlu0 %2015
  %2017 = vrot.lane.b32.xlu0 %v2009, 126
  %v2018 = vpop.permute.xlu0 %2017
  %2019 = vrot.lane.b32.xlu0 %v2010, 126
  %v2020 = vpop.permute.xlu0 %2019
  %2021 = vrot.lane.b32.xlu0 %v2011, 126
  %v2022 = vpop.permute.xlu0 %2021
  %2023 = vrot.lane.b32.xlu0 %v2012, 126
  %v2024 = vpop.permute.xlu0 %2023
  %2025 = vrot.lane.b32.xlu0 %v2013, 126
  %v2026 = vpop.permute.xlu0 %2025
  %2027 = vrot.lane.b32.xlu0 %v2014, 126
  %v2028 = vpop.permute.xlu0 %2027
  %vm2029 = vcmask 1031168
  %v2030 = vsel %vm2029, %v2016, %v2018
  %v2031 = vsel %vm2029, %v2018, %v2020
  %v2032 = vsel %vm2029, %v2020, %v2022
  %v2033 = vsel %vm2029, %v2022, %v2024
  %v2034 = vsel %vm2029, %v2024, %v2026
  %v2035 = vsel %vm2029, %v2026, %v2028
  %v2042 = vsel %vm1420, %v2030, 0.0
  %v2043 = vsel %vm1421, %v2031, 0.0
  %v2044 = vsel %vm1422, %v2032, 0.0
  %v2045 = vsel %vm1423, %v2033, 0.0
  %v2046 = vsel %vm1424, %v2034, 0.0
  %v2047 = vsel %vm1425, %v2035, 0.0
  %v2048 = vpack.c.bf16 %v2043, %v2042
  %v2049 = vpack.c.bf16 %v2045, %v2044
  %v2050 = vpack.c.bf16 %v2047, %v2046
  %2051 = vst [vmem:[#allocation4 + $0xa8] sm:$0x33] %v2048
  %2052 = vst [vmem:[#allocation4 + $0xb0] sm:$0x33] %v2049
  %2053 = vst [vmem:[#allocation4 + $0xb8] sm:$0x33] %v2050
  %v2054 = vld [vmem:[#allocation2 + $0x8] sm:$0xf0]
  %v2055 = vld [vmem:[#allocation2 + $0x10] sm:$0xf0]
  %v2056 = vld [vmem:[#allocation2 + $0x18] sm:$0xf0]
  %v2057 = vld [vmem:[#allocation2 + $0x20] sm:$0xf0]
  %v2058 = vld [vmem:[#allocation2 + $0x28] sm:$0xf0]
  %v2059 = vld [vmem:[#allocation2 + $0x30] sm:$0xf0]
  %v2060 = vld [vmem:[#allocation2 + $0x38] sm:$0xf0]
  %v2068 = vrot.slane %v2054, 4
  %v2069 = vrot.slane %v2055, 4
  %v2070 = vrot.slane %v2056, 4
  %v2071 = vrot.slane %v2057, 4
  %v2072 = vrot.slane %v2058, 4
  %v2073 = vrot.slane %v2059, 4
  %v2074 = vrot.slane %v2060, 4
  %2075 = vrot.lane.b32.xlu0 %v2068, 114
  %v2076 = vpop.permute.xlu0 %2075
  %2077 = vrot.lane.b32.xlu0 %v2069, 114
  %v2078 = vpop.permute.xlu0 %2077
  %2079 = vrot.lane.b32.xlu0 %v2070, 114
  %v2080 = vpop.permute.xlu0 %2079
  %2081 = vrot.lane.b32.xlu0 %v2071, 114
  %v2082 = vpop.permute.xlu0 %2081
  %2083 = vrot.lane.b32.xlu0 %v2072, 114
  %v2084 = vpop.permute.xlu0 %2083
  %2085 = vrot.lane.b32.xlu0 %v2073, 114
  %v2086 = vpop.permute.xlu0 %2085
  %2087 = vrot.lane.b32.xlu0 %v2074, 114
  %v2088 = vpop.permute.xlu0 %2087
  %vm2089 = vcmask 932864
  %v2090 = vsel %vm2089, %v2076, %v2078
  %v2091 = vsel %vm2089, %v2078, %v2080
  %v2092 = vsel %vm2089, %v2080, %v2082
  %v2093 = vsel %vm2089, %v2082, %v2084
  %v2094 = vsel %vm2089, %v2084, %v2086
  %v2095 = vsel %vm2089, %v2086, %v2088
  %v2102 = vsel %vm1156, %v2090, 0.0
  %v2103 = vsel %vm1157, %v2091, 0.0
  %v2104 = vsel %vm1158, %v2092, 0.0
  %v2105 = vsel %vm1159, %v2093, 0.0
  %v2106 = vsel %vm1160, %v2094, 0.0
  %v2107 = vsel %vm1161, %v2095, 0.0
  %v2108 = vpack.c.bf16 %v2103, %v2102
  %v2109 = vpack.c.bf16 %v2105, %v2104
  %v2110 = vpack.c.bf16 %v2107, %v2106
  %v2114 = vrot.slane %v2108, 6
  %v2115 = vrot.slane %v2109, 6
  %v2116 = vrot.slane %v2110, 6
  %2120 = vst [vmem:[#allocation4 + $0xa8] sm:$0xcc] %v2114
  %2121 = vst [vmem:[#allocation4 + $0xb0] sm:$0xcc] %v2115
  %2122 = vst [vmem:[#allocation4 + $0xb8] sm:$0xcc] %v2116
  %v2123 = vld [vmem:[#allocation2 + $0x8] sm:$0xf0]
  %v2124 = vld [vmem:[#allocation2 + $0x10] sm:$0xf0]
  %v2125 = vld [vmem:[#allocation2 + $0x18] sm:$0xf0]
  %v2126 = vld [vmem:[#allocation2 + $0x20] sm:$0xf0]
  %v2127 = vld [vmem:[#allocation2 + $0x28] sm:$0xf0]
  %v2128 = vld [vmem:[#allocation2 + $0x30] sm:$0xf0]
  %v2129 = vld [vmem:[#allocation2 + $0x38] sm:$0xf0]
  %v2137 = vrot.slane %v2123, 4
  %v2138 = vrot.slane %v2124, 4
  %v2139 = vrot.slane %v2125, 4
  %v2140 = vrot.slane %v2126, 4
  %v2141 = vrot.slane %v2127, 4
  %v2142 = vrot.slane %v2128, 4
  %v2143 = vrot.slane %v2129, 4
  %2144 = vrot.lane.b32.xlu0 %v2137, 113
  %v2145 = vpop.permute.xlu0 %2144
  %2146 = vrot.lane.b32.xlu0 %v2138, 113
  %v2147 = vpop.permute.xlu0 %2146
  %2148 = vrot.lane.b32.xlu0 %v2139, 113
  %v2149 = vpop.permute.xlu0 %2148
  %2150 = vrot.lane.b32.xlu0 %v2140, 113
  %v2151 = vpop.permute.xlu0 %2150
  %2152 = vrot.lane.b32.xlu0 %v2141, 113
  %v2153 = vpop.permute.xlu0 %2152
  %2154 = vrot.lane.b32.xlu0 %v2142, 113
  %v2155 = vpop.permute.xlu0 %2154
  %2156 = vrot.lane.b32.xlu0 %v2143, 113
  %v2157 = vpop.permute.xlu0 %2156
  %v2158 = vsel %vm749, %v2145, %v2147
  %v2159 = vsel %vm749, %v2147, %v2149
  %v2160 = vsel %vm749, %v2149, %v2151
  %v2161 = vsel %vm749, %v2151, %v2153
  %v2162 = vsel %vm749, %v2153, %v2155
  %v2163 = vsel %vm749, %v2155, %v2157
  %v2170 = vsel %vm417, %v2158, 0.0
  %v2171 = vsel %vm418, %v2159, 0.0
  %v2172 = vsel %vm419, %v2160, 0.0
  %v2173 = vsel %vm420, %v2161, 0.0
  %v2174 = vsel %vm421, %v2162, 0.0
  %v2175 = vsel %vm422, %v2163, 0.0
  %v2176 = vpack.c.bf16 %v2171, %v2170
  %v2177 = vpack.c.bf16 %v2173, %v2172
  %v2178 = vpack.c.bf16 %v2175, %v2174
  %2179 = vst [vmem:[#allocation4 + $0xc0] sm:$0x33] %v2176
  %2180 = vst [vmem:[#allocation4 + $0xc8] sm:$0x33] %v2177
  %2181 = vst [vmem:[#allocation4 + $0xd0] sm:$0x33] %v2178
  %v2182 = vld [vmem:[#allocation2 + $0x8] sm:$0xf0]
  %v2183 = vld [vmem:[#allocation2 + $0x10] sm:$0xf0]
  %v2184 = vld [vmem:[#allocation2 + $0x18] sm:$0xf0]
  %v2185 = vld [vmem:[#allocation2 + $0x20] sm:$0xf0]
  %v2186 = vld [vmem:[#allocation2 + $0x28] sm:$0xf0]
  %v2187 = vld [vmem:[#allocation2 + $0x30] sm:$0xf0]
  %v2188 = vld [vmem:[#allocation2 + $0x38] sm:$0xf0]
  %v2189 = vpack.c.bf16 %v2183, %v2182
  %v2190 = vpack.c.bf16 %v2185, %v2184
  %v2191 = vpack.c.bf16 %v2187, %v2186
  %v2192 = vpack.c.bf16 %v2188, %v2188
  %2197 = vrot.lane.b32.xlu0 %v2189, 112
  %v2198 = vpop.permute.xlu0 %2197
  %2199 = vrot.lane.b32.xlu0 %v2190, 112
  %v2200 = vpop.permute.xlu0 %2199
  %2201 = vrot.lane.b32.xlu0 %v2191, 112
  %v2202 = vpop.permute.xlu0 %2201
  %2203 = vrot.lane.b32.xlu0 %v2192, 112
  %v2204 = vpop.permute.xlu0 %2203
  %v2205 = vrot.slane %v2198, 4
  %v2206 = vrot.slane %v2200, 4
  %v2207 = vrot.slane %v2202, 4
  %v2208 = vrot.slane %v2204, 4
  %v2209 = vsel %vm500, %v2205, %v2206
  %v2210 = vsel %vm806, %v2198, %v2209
  %v2211 = vsel %vm500, %v2206, %v2207
  %v2212 = vsel %vm806, %v2200, %v2211
  %v2213 = vsel %vm500, %v2207, %v2208
  %v2214 = vsel %vm806, %v2202, %v2213
  %2218 = vst [vmem:[#allocation4 + $0xc0] sm:$0xcc] %v2210
  %2219 = vst [vmem:[#allocation4 + $0xc8] sm:$0xcc] %v2212
  %2220 = vst [vmem:[#allocation4 + $0xd0] sm:$0xcc] %v2214
  %v2221 = vld [vmem:[#allocation2 + $0x8] sm:$0xf0]
  %v2222 = vld [vmem:[#allocation2 + $0x10] sm:$0xf0]
  %v2223 = vld [vmem:[#allocation2 + $0x18] sm:$0xf0]
  %v2224 = vld [vmem:[#allocation2 + $0x20] sm:$0xf0]
  %v2225 = vld [vmem:[#allocation2 + $0x28] sm:$0xf0]
  %v2226 = vld [vmem:[#allocation2 + $0x30] sm:$0xf0]
  %v2227 = vld [vmem:[#allocation2 + $0x38] sm:$0xf0]
  %v2235 = vrot.slane %v2221, 4
  %v2236 = vrot.slane %v2222, 4
  %v2237 = vrot.slane %v2223, 4
  %v2238 = vrot.slane %v2224, 4
  %v2239 = vrot.slane %v2225, 4
  %v2240 = vrot.slane %v2226, 4
  %v2241 = vrot.slane %v2227, 4
  %2242 = vrot.lane.b32.xlu0 %v2235, 111
  %v2243 = vpop.permute.xlu0 %2242
  %2244 = vrot.lane.b32.xlu0 %v2236, 111
  %v2245 = vpop.permute.xlu0 %2244
  %2246 = vrot.lane.b32.xlu0 %v2237, 111
  %v2247 = vpop.permute.xlu0 %2246
  %2248 = vrot.lane.b32.xlu0 %v2238, 111
  %v2249 = vpop.permute.xlu0 %2248
  %2250 = vrot.lane.b32.xlu0 %v2239, 111
  %v2251 = vpop.permute.xlu0 %2250
  %2252 = vrot.lane.b32.xlu0 %v2240, 111
  %v2253 = vpop.permute.xlu0 %2252
  %2254 = vrot.lane.b32.xlu0 %v2241, 111
  %v2255 = vpop.permute.xlu0 %2254
  %v2256 = vsel %vm846, %v2243, %v2245
  %v2257 = vsel %vm846, %v2245, %v2247
  %v2258 = vsel %vm846, %v2247, %v2249
  %v2259 = vsel %vm846, %v2249, %v2251
  %v2260 = vsel %vm846, %v2251, %v2253
  %v2261 = vsel %vm846, %v2253, %v2255
  %v2268 = vsel %vm533, %v2256, 0.0
  %v2269 = vsel %vm534, %v2257, 0.0
  %v2270 = vsel %vm535, %v2258, 0.0
  %v2271 = vsel %vm536, %v2259, 0.0
  %v2272 = vsel %vm537, %v2260, 0.0
  %v2273 = vsel %vm538, %v2261, 0.0
  %v2274 = vpack.c.bf16 %v2269, %v2268
  %v2275 = vpack.c.bf16 %v2271, %v2270
  %v2276 = vpack.c.bf16 %v2273, %v2272
  %2277 = vst [vmem:[#allocation4 + $0xd8] sm:$0x33] %v2274
  %2278 = vst [vmem:[#allocation4 + $0xe0] sm:$0x33] %v2275
  %2279 = vst [vmem:[#allocation4 + $0xe8] sm:$0x33] %v2276
  %v2280 = vld [vmem:[#allocation2 + $0x8] sm:$0xf0]
  %v2281 = vld [vmem:[#allocation2 + $0x10] sm:$0xf0]
  %v2282 = vld [vmem:[#allocation2 + $0x18] sm:$0xf0]
  %v2283 = vld [vmem:[#allocation2 + $0x20] sm:$0xf0]
  %v2284 = vld [vmem:[#allocation2 + $0x28] sm:$0xf0]
  %v2285 = vld [vmem:[#allocation2 + $0x30] sm:$0xf0]
  %v2286 = vld [vmem:[#allocation2 + $0x38] sm:$0xf0]
  %v2294 = vrot.slane %v2280, 4
  %v2295 = vrot.slane %v2281, 4
  %v2296 = vrot.slane %v2282, 4
  %v2297 = vrot.slane %v2283, 4
  %v2298 = vrot.slane %v2284, 4
  %v2299 = vrot.slane %v2285, 4
  %v2300 = vrot.slane %v2286, 4
  %2301 = vrot.lane.b32.xlu0 %v2294, 110
  %v2302 = vpop.permute.xlu0 %2301
  %2303 = vrot.lane.b32.xlu0 %v2295, 110
  %v2304 = vpop.permute.xlu0 %2303
  %2305 = vrot.lane.b32.xlu0 %v2296, 110
  %v2306 = vpop.permute.xlu0 %2305
  %2307 = vrot.lane.b32.xlu0 %v2297, 110
  %v2308 = vpop.permute.xlu0 %2307
  %2309 = vrot.lane.b32.xlu0 %v2298, 110
  %v2310 = vpop.permute.xlu0 %2309
  %2311 = vrot.lane.b32.xlu0 %v2299, 110
  %v2312 = vpop.permute.xlu0 %2311
  %2313 = vrot.lane.b32.xlu0 %v2300, 110
  %v2314 = vpop.permute.xlu0 %2313
  %vm2315 = vcmask 900096
  %v2316 = vsel %vm2315, %v2302, %v2304
  %v2317 = vsel %vm2315, %v2304, %v2306
  %v2318 = vsel %vm2315, %v2306, %v2308
  %v2319 = vsel %vm2315, %v2308, %v2310
  %v2320 = vsel %vm2315, %v2310, %v2312
  %v2321 = vsel %vm2315, %v2312, %v2314
  %v2328 = vsel %vm1420, %v2316, 0.0
  %v2329 = vsel %vm1421, %v2317, 0.0
  %v2330 = vsel %vm1422, %v2318, 0.0
  %v2331 = vsel %vm1423, %v2319, 0.0
  %v2332 = vsel %vm1424, %v2320, 0.0
  %v2333 = vsel %vm1425, %v2321, 0.0
  %v2334 = vpack.c.bf16 %v2329, %v2328
  %v2335 = vpack.c.bf16 %v2331, %v2330
  %v2336 = vpack.c.bf16 %v2333, %v2332
  %v2340 = vrot.slane %v2334, 6
  %v2341 = vrot.slane %v2335, 6
  %v2342 = vrot.slane %v2336, 6
  %2346 = vst [vmem:[#allocation4 + $0xd8] sm:$0xcc] %v2340
  %2347 = vst [vmem:[#allocation4 + $0xe0] sm:$0xcc] %v2341
  %2348 = vst [vmem:[#allocation4 + $0xe8] sm:$0xcc] %v2342
  %v2349 = vld [vmem:[#allocation2 + $0x8] sm:$0xf0]
  %v2350 = vld [vmem:[#allocation2 + $0x10] sm:$0xf0]
  %v2351 = vld [vmem:[#allocation2 + $0x18] sm:$0xf0]
  %v2352 = vld [vmem:[#allocation2 + $0x20] sm:$0xf0]
  %v2353 = vld [vmem:[#allocation2 + $0x28] sm:$0xf0]
  %v2354 = vld [vmem:[#allocation2 + $0x30] sm:$0xf0]
  %v2355 = vld [vmem:[#allocation2 + $0x38] sm:$0xf0]
  %v2363 = vrot.slane %v2349, 4
  %v2364 = vrot.slane %v2350, 4
  %v2365 = vrot.slane %v2351, 4
  %v2366 = vrot.slane %v2352, 4
  %v2367 = vrot.slane %v2353, 4
  %v2368 = vrot.slane %v2354, 4
  %v2369 = vrot.slane %v2355, 4
  %2370 = vrot.lane.b32.xlu0 %v2363, 98
  %v2371 = vpop.permute.xlu0 %2370
  %2372 = vrot.lane.b32.xlu0 %v2364, 98
  %v2373 = vpop.permute.xlu0 %2372
  %2374 = vrot.lane.b32.xlu0 %v2365, 98
  %v2375 = vpop.permute.xlu0 %2374
  %2376 = vrot.lane.b32.xlu0 %v2366, 98
  %v2377 = vpop.permute.xlu0 %2376
  %2378 = vrot.lane.b32.xlu0 %v2367, 98
  %v2379 = vpop.permute.xlu0 %2378
  %2380 = vrot.lane.b32.xlu0 %v2368, 98
  %v2381 = vpop.permute.xlu0 %2380
  %2382 = vrot.lane.b32.xlu0 %v2369, 98
  %v2383 = vpop.permute.xlu0 %2382
  %vm2384 = vcmask 801792
  %v2385 = vsel %vm2384, %v2371, %v2373
  %v2386 = vsel %vm2384, %v2373, %v2375
  %v2387 = vsel %vm2384, %v2375, %v2377
  %v2388 = vsel %vm2384, %v2377, %v2379
  %v2389 = vsel %vm2384, %v2379, %v2381
  %v2390 = vsel %vm2384, %v2381, %v2383
  %v2397 = vsel %vm1156, %v2385, 0.0
  %v2398 = vsel %vm1157, %v2386, 0.0
  %v2399 = vsel %vm1158, %v2387, 0.0
  %v2400 = vsel %vm1159, %v2388, 0.0
  %v2401 = vsel %vm1160, %v2389, 0.0
  %v2402 = vsel %vm1161, %v2390, 0.0
  %v2403 = vpack.c.bf16 %v2398, %v2397
  %v2404 = vpack.c.bf16 %v2400, %v2399
  %v2405 = vpack.c.bf16 %v2402, %v2401
  %2406 = vst [vmem:[#allocation4 + $0xf0] sm:$0x33] %v2403
  %2407 = vst [vmem:[#allocation4 + $0xf8] sm:$0x33] %v2404
  %2408 = vst [vmem:[#allocation4 + $0x100] sm:$0x33] %v2405
  %v2409 = vld [vmem:[#allocation2 + $0x8] sm:$0xf0]
  %v2410 = vld [vmem:[#allocation2 + $0x10] sm:$0xf0]
  %v2411 = vld [vmem:[#allocation2 + $0x18] sm:$0xf0]
  %v2412 = vld [vmem:[#allocation2 + $0x20] sm:$0xf0]
  %v2413 = vld [vmem:[#allocation2 + $0x28] sm:$0xf0]
  %v2414 = vld [vmem:[#allocation2 + $0x30] sm:$0xf0]
  %v2415 = vld [vmem:[#allocation2 + $0x38] sm:$0xf0]
  %v2423 = vrot.slane %v2409, 4
  %v2424 = vrot.slane %v2410, 4
  %v2425 = vrot.slane %v2411, 4
  %v2426 = vrot.slane %v2412, 4
  %v2427 = vrot.slane %v2413, 4
  %v2428 = vrot.slane %v2414, 4
  %v2429 = vrot.slane %v2415, 4
  %2430 = vrot.lane.b32.xlu0 %v2423, 97
  %v2431 = vpop.permute.xlu0 %2430
  %2432 = vrot.lane.b32.xlu0 %v2424, 97
  %v2433 = vpop.permute.xlu0 %2432
  %2434 = vrot.lane.b32.xlu0 %v2425, 97
  %v2435 = vpop.permute.xlu0 %2434
  %2436 = vrot.lane.b32.xlu0 %v2426, 97
  %v2437 = vpop.permute.xlu0 %2436
  %2438 = vrot.lane.b32.xlu0 %v2427, 97
  %v2439 = vpop.permute.xlu0 %2438
  %2440 = vrot.lane.b32.xlu0 %v2428, 97
  %v2441 = vpop.permute.xlu0 %2440
  %2442 = vrot.lane.b32.xlu0 %v2429, 97
  %v2443 = vpop.permute.xlu0 %2442
  %vm2444 = vcmask 793600
  %v2445 = vsel %vm2444, %v2431, %v2433
  %v2446 = vsel %vm2444, %v2433, %v2435
  %v2447 = vsel %vm2444, %v2435, %v2437
  %v2448 = vsel %vm2444, %v2437, %v2439
  %v2449 = vsel %vm2444, %v2439, %v2441
  %v2450 = vsel %vm2444, %v2441, %v2443
  %v2457 = vsel %vm417, %v2445, 0.0
  %v2458 = vsel %vm418, %v2446, 0.0
  %v2459 = vsel %vm419, %v2447, 0.0
  %v2460 = vsel %vm420, %v2448, 0.0
  %v2461 = vsel %vm421, %v2449, 0.0
  %v2462 = vsel %vm422, %v2450, 0.0
  %v2463 = vpack.c.bf16 %v2458, %v2457
  %v2464 = vpack.c.bf16 %v2460, %v2459
  %v2465 = vpack.c.bf16 %v2462, %v2461
  %v2469 = vrot.slane %v2463, 6
  %v2470 = vrot.slane %v2464, 6
  %v2471 = vrot.slane %v2465, 6
  %2475 = vst [vmem:[#allocation4 + $0xf0] sm:$0xcc] %v2469
  %2476 = vst [vmem:[#allocation4 + $0xf8] sm:$0xcc] %v2470
  %2477 = vst [vmem:[#allocation4 + $0x100] sm:$0xcc] %v2471
  %v2478 = vld [vmem:[#allocation2 + $0x8] sm:$0xf0]
  %v2479 = vld [vmem:[#allocation2 + $0x10] sm:$0xf0]
  %v2480 = vld [vmem:[#allocation2 + $0x18] sm:$0xf0]
  %v2481 = vld [vmem:[#allocation2 + $0x20] sm:$0xf0]
  %v2482 = vld [vmem:[#allocation2 + $0x28] sm:$0xf0]
  %v2483 = vld [vmem:[#allocation2 + $0x30] sm:$0xf0]
  %v2484 = vld [vmem:[#allocation2 + $0x38] sm:$0xf0]
  %v2485 = vpack.c.bf16 %v2479, %v2478
  %v2486 = vpack.c.bf16 %v2481, %v2480
  %v2487 = vpack.c.bf16 %v2483, %v2482
  %v2488 = vpack.c.bf16 %v2484, %v2484
  %v2493 = vrot.slane %v2485, 6
  %v2494 = vrot.slane %v2493, 4
  %v2495 = vrot.slane %v2486, 6
  %v2496 = vrot.slane %v2495, 4
  %v2497 = vrot.slane %v2487, 6
  %v2498 = vrot.slane %v2497, 4
  %v2499 = vrot.slane %v2488, 6
  %v2500 = vrot.slane %v2499, 4
  %2501 = vrot.lane.b32.xlu0 %v2494, 96
  %v2502 = vpop.permute.xlu0 %2501
  %2503 = vrot.lane.b32.xlu0 %v2496, 96
  %v2504 = vpop.permute.xlu0 %2503
  %2505 = vrot.lane.b32.xlu0 %v2498, 96
  %v2506 = vpop.permute.xlu0 %2505
  %2507 = vrot.lane.b32.xlu0 %v2500, 96
  %v2508 = vpop.permute.xlu0 %2507
  %v2509 = vrot.slane %v2502, 4
  %v2510 = vrot.slane %v2504, 4
  %v2511 = vrot.slane %v2506, 4
  %v2512 = vrot.slane %v2508, 4
  %v2513 = vsel %vm500, %v2509, %v2510
  %vm2514 = vcmask 785408
  %v2515 = vsel %vm2514, %v2502, %v2513
  %v2516 = vsel %vm500, %v2510, %v2511
  %v2517 = vsel %vm2514, %v2504, %v2516
  %v2518 = vsel %vm500, %v2511, %v2512
  %v2519 = vsel %vm2514, %v2506, %v2518
  %2523 = vst [vmem:[#allocation4 + $0x108] sm:$0x33] %v2515
  %2524 = vst [vmem:[#allocation4 + $0x110] sm:$0x33] %v2517
  %2525 = vst [vmem:[#allocation4 + $0x118] sm:$0x33] %v2519
  %v2526 = vld [vmem:[#allocation2 + $0x8] sm:$0xf0]
  %v2527 = vld [vmem:[#allocation2 + $0x10] sm:$0xf0]
  %v2528 = vld [vmem:[#allocation2 + $0x18] sm:$0xf0]
  %v2529 = vld [vmem:[#allocation2 + $0x20] sm:$0xf0]
  %v2530 = vld [vmem:[#allocation2 + $0x28] sm:$0xf0]
  %v2531 = vld [vmem:[#allocation2 + $0x30] sm:$0xf0]
  %v2532 = vld [vmem:[#allocation2 + $0x38] sm:$0xf0]
  %v2540 = vrot.slane %v2526, 4
  %v2541 = vrot.slane %v2527, 4
  %v2542 = vrot.slane %v2528, 4
  %v2543 = vrot.slane %v2529, 4
  %v2544 = vrot.slane %v2530, 4
  %v2545 = vrot.slane %v2531, 4
  %v2546 = vrot.slane %v2532, 4
  %2547 = vrot.lane.b32.xlu0 %v2540, 95
  %v2548 = vpop.permute.xlu0 %2547
  %2549 = vrot.lane.b32.xlu0 %v2541, 95
  %v2550 = vpop.permute.xlu0 %2549
  %2551 = vrot.lane.b32.xlu0 %v2542, 95
  %v2552 = vpop.permute.xlu0 %2551
  %2553 = vrot.lane.b32.xlu0 %v2543, 95
  %v2554 = vpop.permute.xlu0 %2553
  %2555 = vrot.lane.b32.xlu0 %v2544, 95
  %v2556 = vpop.permute.xlu0 %2555
  %2557 = vrot.lane.b32.xlu0 %v2545, 95
  %v2558 = vpop.permute.xlu0 %2557
  %2559 = vrot.lane.b32.xlu0 %v2546, 95
  %v2560 = vpop.permute.xlu0 %2559
  %vm2561 = vcmask 777216
  %v2562 = vsel %vm2561, %v2548, %v2550
  %v2563 = vsel %vm2561, %v2550, %v2552
  %v2564 = vsel %vm2561, %v2552, %v2554
  %v2565 = vsel %vm2561, %v2554, %v2556
  %v2566 = vsel %vm2561, %v2556, %v2558
  %v2567 = vsel %vm2561, %v2558, %v2560
  %v2574 = vsel %vm533, %v2562, 0.0
  %v2575 = vsel %vm534, %v2563, 0.0
  %v2576 = vsel %vm535, %v2564, 0.0
  %v2577 = vsel %vm536, %v2565, 0.0
  %v2578 = vsel %vm537, %v2566, 0.0
  %v2579 = vsel %vm538, %v2567, 0.0
  %v2580 = vpack.c.bf16 %v2575, %v2574
  %v2581 = vpack.c.bf16 %v2577, %v2576
  %v2582 = vpack.c.bf16 %v2579, %v2578
  %v2586 = vrot.slane %v2580, 6
  %v2587 = vrot.slane %v2581, 6
  %v2588 = vrot.slane %v2582, 6
  %2592 = vst [vmem:[#allocation4 + $0x108] sm:$0xcc] %v2586
  %2593 = vst [vmem:[#allocation4 + $0x110] sm:$0xcc] %v2587
  %2594 = vst [vmem:[#allocation4 + $0x118] sm:$0xcc] %v2588
  %v2595 = vld [vmem:[#allocation2 + $0x8] sm:$0xf0]
  %v2596 = vld [vmem:[#allocation2 + $0x10] sm:$0xf0]
  %v2597 = vld [vmem:[#allocation2 + $0x18] sm:$0xf0]
  %v2598 = vld [vmem:[#allocation2 + $0x20] sm:$0xf0]
  %v2599 = vld [vmem:[#allocation2 + $0x28] sm:$0xf0]
  %v2600 = vld [vmem:[#allocation2 + $0x30] sm:$0xf0]
  %v2601 = vld [vmem:[#allocation2 + $0x38] sm:$0xf0]
  %v2609 = vrot.slane %v2595, 4
  %v2610 = vrot.slane %v2596, 4
  %v2611 = vrot.slane %v2597, 4
  %v2612 = vrot.slane %v2598, 4
  %v2613 = vrot.slane %v2599, 4
  %v2614 = vrot.slane %v2600, 4
  %v2615 = vrot.slane %v2601, 4
  %2616 = vrot.lane.b32.xlu0 %v2609, 94
  %v2617 = vpop.permute.xlu0 %2616
  %2618 = vrot.lane.b32.xlu0 %v2610, 94
  %v2619 = vpop.permute.xlu0 %2618
  %2620 = vrot.lane.b32.xlu0 %v2611, 94
  %v2621 = vpop.permute.xlu0 %2620
  %2622 = vrot.lane.b32.xlu0 %v2612, 94
  %v2623 = vpop.permute.xlu0 %2622
  %2624 = vrot.lane.b32.xlu0 %v2613, 94
  %v2625 = vpop.permute.xlu0 %2624
  %2626 = vrot.lane.b32.xlu0 %v2614, 94
  %v2627 = vpop.permute.xlu0 %2626
  %2628 = vrot.lane.b32.xlu0 %v2615, 94
  %v2629 = vpop.permute.xlu0 %2628
  %vm2630 = vcmask 769024
  %v2631 = vsel %vm2630, %v2617, %v2619
  %v2632 = vsel %vm2630, %v2619, %v2621
  %v2633 = vsel %vm2630, %v2621, %v2623
  %v2634 = vsel %vm2630, %v2623, %v2625
  %v2635 = vsel %vm2630, %v2625, %v2627
  %v2636 = vsel %vm2630, %v2627, %v2629
  %v2643 = vsel %vm1420, %v2631, 0.0
  %v2644 = vsel %vm1421, %v2632, 0.0
  %v2645 = vsel %vm1422, %v2633, 0.0
  %v2646 = vsel %vm1423, %v2634, 0.0
  %v2647 = vsel %vm1424, %v2635, 0.0
  %v2648 = vsel %vm1425, %v2636, 0.0
  %v2649 = vpack.c.bf16 %v2644, %v2643
  %v2650 = vpack.c.bf16 %v2646, %v2645
  %v2651 = vpack.c.bf16 %v2648, %v2647
  %2652 = vst [vmem:[#allocation4 + $0x120] sm:$0x33] %v2649
  %2653 = vst [vmem:[#allocation4 + $0x128] sm:$0x33] %v2650
  %2654 = vst [vmem:[#allocation4 + $0x130] sm:$0x33] %v2651
  %v2655 = vld [vmem:[%s7] sm:$0xf]
  %v2656 = vld [vmem:[#allocation4] sm:$0xff]
  %v2657 = vld [vmem:[#allocation4 + $0x8] sm:$0xff]
  %v2658 = vld [vmem:[#allocation4 + $0x10] sm:$0xff]
  %v2659 = vld [vmem:[#allocation4 + $0x18] sm:$0xff]
  %v2660 = vld [vmem:[#allocation4 + $0x20] sm:$0xff]
  %v2661 = vld [vmem:[#allocation4 + $0x28] sm:$0xff]
  %v2662 = vld [vmem:[#allocation4 + $0x30] sm:$0xff]
  %v2663 = vld [vmem:[#allocation4 + $0x38] sm:$0xff]
  %v2664 = vld [vmem:[#allocation4 + $0x40] sm:$0xff]
  %v2665 = vld [vmem:[#allocation4 + $0x48] sm:$0xff]
  %v2666 = vld [vmem:[#allocation4 + $0x50] sm:$0xff]
  %v2667 = vld [vmem:[#allocation4 + $0x58] sm:$0xff]
  %v2668 = vld [vmem:[#allocation4 + $0x60] sm:$0xff]
  %v2669 = vld [vmem:[#allocation4 + $0x68] sm:$0xff]
  %v2670 = vld [vmem:[#allocation4 + $0x70] sm:$0xff]
  %v2671 = vld [vmem:[#allocation4 + $0x78] sm:$0xff]
  %v2672 = vld [vmem:[#allocation4 + $0x80] sm:$0xff]
  %v2673 = vld [vmem:[#allocation4 + $0x88] sm:$0xff]
  %v2674 = vld [vmem:[#allocation4 + $0x90] sm:$0xff]
  %v2675 = vld [vmem:[#allocation4 + $0x98] sm:$0xff]
  %v2676 = vld [vmem:[#allocation4 + $0xa0] sm:$0xff]
  %v2677 = vld [vmem:[#allocation4 + $0xa8] sm:$0xff]
  %v2678 = vld [vmem:[#allocation4 + $0xb0] sm:$0xff]
  %v2679 = vld [vmem:[#allocation4 + $0xb8] sm:$0xff]
  %v2680 = vld [vmem:[#allocation4 + $0xc0] sm:$0xff]
  %v2681 = vld [vmem:[#allocation4 + $0xc8] sm:$0xff]
  %v2682 = vld [vmem:[#allocation4 + $0xd0] sm:$0xff]
  %v2683 = vld [vmem:[#allocation4 + $0xd8] sm:$0xff]
  %v2684 = vld [vmem:[#allocation4 + $0xe0] sm:$0xff]
  %v2685 = vld [vmem:[#allocation4 + $0xe8] sm:$0xff]
  %v2686 = vld [vmem:[#allocation4 + $0xf0] sm:$0xff]
  %v2687 = vld [vmem:[#allocation4 + $0xf8] sm:$0xff]
  %v2688 = vld [vmem:[#allocation4 + $0x100] sm:$0xff]
  %v2689 = vld [vmem:[#allocation4 + $0x108] sm:$0xff]
  %v2690 = vld [vmem:[#allocation4 + $0x110] sm:$0xff]
  %v2691 = vld [vmem:[#allocation4 + $0x118] sm:$0xff]
  %v2692 = vld [vmem:[#allocation4 + $0x120] sm:$0x33]
  %v2693 = vld [vmem:[#allocation4 + $0x128] sm:$0x33]
  %v2694 = vld [vmem:[#allocation4 + $0x130] sm:$0x33]
  %v2734 = vunpack.c.l.b16 %v2656
  %v2735 = vunpack.c.h.b16 %v2656
  %v2736 = vunpack.c.l.b16 %v2657
  %v2737 = vunpack.c.h.b16 %v2657
  %v2738 = vunpack.c.l.b16 %v2658
  %v2739 = vunpack.c.h.b16 %v2658
  %v2740 = vunpack.c.l.b16 %v2659
  %v2741 = vunpack.c.h.b16 %v2659
  %v2742 = vunpack.c.l.b16 %v2660
  %v2743 = vunpack.c.h.b16 %v2660
  %v2744 = vunpack.c.l.b16 %v2661
  %v2745 = vunpack.c.h.b16 %v2661
  %v2746 = vunpack.c.l.b16 %v2662
  %v2747 = vunpack.c.h.b16 %v2662
  %v2748 = vunpack.c.l.b16 %v2663
  %v2749 = vunpack.c.h.b16 %v2663
  %v2750 = vunpack.c.l.b16 %v2664
  %v2751 = vunpack.c.h.b16 %v2664
  %v2752 = vunpack.c.l.b16 %v2665
  %v2753 = vunpack.c.h.b16 %v2665
  %v2754 = vunpack.c.l.b16 %v2666
  %v2755 = vunpack.c.h.b16 %v2666
  %v2756 = vunpack.c.l.b16 %v2667
  %v2757 = vunpack.c.h.b16 %v2667
  %v2758 = vunpack.c.l.b16 %v2668
  %v2759 = vunpack.c.h.b16 %v2668
  %v2760 = vunpack.c.l.b16 %v2669
  %v2761 = vunpack.c.h.b16 %v2669
  %v2762 = vunpack.c.l.b16 %v2670
  %v2763 = vunpack.c.h.b16 %v2670
  %v2764 = vunpack.c.l.b16 %v2671
  %v2765 = vunpack.c.h.b16 %v2671
  %v2766 = vunpack.c.l.b16 %v2672
  %v2767 = vunpack.c.h.b16 %v2672
  %v2768 = vunpack.c.l.b16 %v2673
  %v2769 = vunpack.c.h.b16 %v2673
  %v2770 = vunpack.c.l.b16 %v2674
  %v2771 = vunpack.c.h.b16 %v2674
  %v2772 = vunpack.c.l.b16 %v2675
  %v2773 = vunpack.c.h.b16 %v2675
  %v2774 = vunpack.c.l.b16 %v2676
  %v2775 = vunpack.c.h.b16 %v2676
  %v2776 = vunpack.c.l.b16 %v2677
  %v2777 = vunpack.c.h.b16 %v2677
  %v2778 = vunpack.c.l.b16 %v2678
  %v2779 = vunpack.c.h.b16 %v2678
  %v2780 = vunpack.c.l.b16 %v2679
  %v2781 = vunpack.c.h.b16 %v2679
  %v2782 = vunpack.c.l.b16 %v2680
  %v2783 = vunpack.c.h.b16 %v2680
  %v2784 = vunpack.c.l.b16 %v2681
  %v2785 = vunpack.c.h.b16 %v2681
  %v2786 = vunpack.c.l.b16 %v2682
  %v2787 = vunpack.c.h.b16 %v2682
  %v2788 = vunpack.c.l.b16 %v2683
  %v2789 = vunpack.c.h.b16 %v2683
  %v2790 = vunpack.c.l.b16 %v2684
  %v2791 = vunpack.c.h.b16 %v2684
  %v2792 = vunpack.c.l.b16 %v2685
  %v2793 = vunpack.c.h.b16 %v2685
  %v2794 = vunpack.c.l.b16 %v2686
  %v2795 = vunpack.c.h.b16 %v2686
  %v2796 = vunpack.c.l.b16 %v2687
  %v2797 = vunpack.c.h.b16 %v2687
  %v2798 = vunpack.c.l.b16 %v2688
  %v2799 = vunpack.c.h.b16 %v2688
  %v2800 = vunpack.c.l.b16 %v2689
  %v2801 = vunpack.c.h.b16 %v2689
  %v2802 = vunpack.c.l.b16 %v2690
  %v2803 = vunpack.c.h.b16 %v2690
  %v2804 = vunpack.c.l.b16 %v2691
  %v2805 = vunpack.c.h.b16 %v2691
  %v2806 = vunpack.c.l.b16 %v2692
  %v2807 = vunpack.c.h.b16 %v2692
  %v2808 = vunpack.c.l.b16 %v2693
  %v2809 = vunpack.c.h.b16 %v2693
  %v2810 = vunpack.c.l.b16 %v2694
  %v2811 = vunpack.c.h.b16 %v2694
  %v2812 = vpack.c.b16 %v2740, %v2734
  %v2813 = vpack.c.b16 %v2741, %v2735
  %v2814 = vpack.c.b16 %v2742, %v2736
  %v2815 = vpack.c.b16 %v2743, %v2737
  %v2816 = vpack.c.b16 %v2744, %v2738
  %v2817 = vpack.c.b16 %v2745, %v2739
  %v2818 = vpack.c.b16 %v2752, %v2746
  %v2819 = vpack.c.b16 %v2753, %v2747
  %v2820 = vpack.c.b16 %v2754, %v2748
  %v2821 = vpack.c.b16 %v2755, %v2749
  %v2822 = vpack.c.b16 %v2756, %v2750
  %v2823 = vpack.c.b16 %v2757, %v2751
  %v2824 = vpack.c.b16 %v2764, %v2758
  %v2825 = vpack.c.b16 %v2765, %v2759
  %v2826 = vpack.c.b16 %v2766, %v2760
  %v2827 = vpack.c.b16 %v2767, %v2761
  %v2828 = vpack.c.b16 %v2768, %v2762
  %v2829 = vpack.c.b16 %v2769, %v2763
  %v2830 = vpack.c.b16 %v2776, %v2770
  %v2831 = vpack.c.b16 %v2777, %v2771
  %v2832 = vpack.c.b16 %v2778, %v2772
  %v2833 = vpack.c.b16 %v2779, %v2773
  %v2834 = vpack.c.b16 %v2780, %v2774
  %v2835 = vpack.c.b16 %v2781, %v2775
  %v2836 = vpack.c.b16 %v2788, %v2782
  %v2837 = vpack.c.b16 %v2789, %v2783
  %v2838 = vpack.c.b16 %v2790, %v2784
  %v2839 = vpack.c.b16 %v2791, %v2785
  %v2840 = vpack.c.b16 %v2792, %v2786
  %v2841 = vpack.c.b16 %v2793, %v2787
  %v2842 = vpack.c.b16 %v2800, %v2794
  %v2843 = vpack.c.b16 %v2801, %v2795
  %v2844 = vpack.c.b16 %v2802, %v2796
  %v2845 = vpack.c.b16 %v2803, %v2797
  %v2846 = vpack.c.b16 %v2804, %v2798
  %v2847 = vpack.c.b16 %v2805, %v2799
  %v2848 = vpack.c.b16 %v2806, %v2806
  %v2849 = vpack.c.b16 %v2807, %v2807
  %v2850 = vpack.c.b16 %v2808, %v2808
  %v2851 = vpack.c.b16 %v2809, %v2809
  %v2852 = vpack.c.b16 %v2810, %v2810
  %v2853 = vpack.c.b16 %v2811, %v2811
  %vm2890 = vcmask 818176
  %v2892 = vsel %vm2890, %v2655, 0
  %v2895 = vsel %vm149, %v2848, 0
  %v2898 = vsel %vm149, %v2849, 0
  %v2901 = vsel %vm149, %v2850, 0
  %v2904 = vsel %vm149, %v2851, 0
  %v2907 = vsel %vm149, %v2852, 0
  %v2910 = vsel %vm149, %v2853, 0
  %2912 = vmatpush.bf16.msra.mxu0 0
  %2913 = vmatpush.bf16.msra.mxu0 %v2895
  %2914 = vmatpush.bf16.msra.mxu0 %v2842
  %2915 = vmatpush.bf16.msra.mxu0 %v2836
  %2916 = vmatpush.bf16.msra.mxu0 %v2830
  %2917 = vmatpush.bf16.msra.mxu0 %v2824
  %2918 = vmatpush.bf16.msra.mxu0 %v2818
  %2919 = vmatpush.bf16.msra.mxu0 %v2812
  %2920 = vmatmul.bf16.gmra.mxu0 %v2892
  %v2921 = vpop.f32.mrf.mxu0
  %v2922 = vadd.f32 0.0, %v2921
  %v2923 = vpop.f32.mrf.mxu0
  %2924 = vdwg.mxu0
  %2925 = vmatpush.bf16.msra.mxu0 0
  %2926 = vmatpush.bf16.msra.mxu0 %v2898
  %2927 = vmatpush.bf16.msra.mxu0 %v2843
  %2928 = vmatpush.bf16.msra.mxu0 %v2837
  %2929 = vmatpush.bf16.msra.mxu0 %v2831
  %2930 = vmatpush.bf16.msra.mxu0 %v2825
  %2931 = vmatpush.bf16.msra.mxu0 %v2819
  %2932 = vmatpush.bf16.msra.mxu0 %v2813
  %2933 = vmatmul.bf16.gmra.mxu0 %v2892
  %v2934 = vpop.f32.mrf.mxu0
  %v2935 = vadd.f32 0.0, %v2934
  %v2936 = vpop.f32.mrf.mxu0
  %2937 = vdwg.mxu0
  %2938 = vmatpush.bf16.msra.mxu0 0
  %2939 = vmatpush.bf16.msra.mxu0 %v2901
  %2940 = vmatpush.bf16.msra.mxu0 %v2844
  %2941 = vmatpush.bf16.msra.mxu0 %v2838
  %2942 = vmatpush.bf16.msra.mxu0 %v2832
  %2943 = vmatpush.bf16.msra.mxu0 %v2826
  %2944 = vmatpush.bf16.msra.mxu0 %v2820
  %2945 = vmatpush.bf16.msra.mxu0 %v2814
  %2946 = vmatmul.bf16.gmra.mxu0 %v2892
  %v2947 = vpop.f32.mrf.mxu0
  %v2948 = vadd.f32 0.0, %v2947
  %v2949 = vpop.f32.mrf.mxu0
  %2950 = vdwg.mxu0
  %2951 = vmatpush.bf16.msra.mxu0 0
  %2952 = vmatpush.bf16.msra.mxu0 %v2904
  %2953 = vmatpush.bf16.msra.mxu0 %v2845
  %2954 = vmatpush.bf16.msra.mxu0 %v2839
  %2955 = vmatpush.bf16.msra.mxu0 %v2833
  %2956 = vmatpush.bf16.msra.mxu0 %v2827
  %2957 = vmatpush.bf16.msra.mxu0 %v2821
  %2958 = vmatpush.bf16.msra.mxu0 %v2815
  %2959 = vmatmul.bf16.gmra.mxu0 %v2892
  %v2960 = vpop.f32.mrf.mxu0
  %v2961 = vadd.f32 0.0, %v2960
  %v2962 = vpop.f32.mrf.mxu0
  %2963 = vdwg.mxu0
  %2964 = vmatpush.bf16.msra.mxu0 0
  %2965 = vmatpush.bf16.msra.mxu0 %v2907
  %2966 = vmatpush.bf16.msra.mxu0 %v2846
  %2967 = vmatpush.bf16.msra.mxu0 %v2840
  %2968 = vmatpush.bf16.msra.mxu0 %v2834
  %2969 = vmatpush.bf16.msra.mxu0 %v2828
  %2970 = vmatpush.bf16.msra.mxu0 %v2822
  %2971 = vmatpush.bf16.msra.mxu0 %v2816
  %2972 = vmatmul.bf16.gmra.mxu0 %v2892
  %v2973 = vpop.f32.mrf.mxu0
  %v2974 = vadd.f32 0.0, %v2973
  %v2975 = vpop.f32.mrf.mxu0
  %2976 = vdwg.mxu0
  %2977 = vmatpush.bf16.msra.mxu0 0
  %2978 = vmatpush.bf16.msra.mxu0 %v2910
  %2979 = vmatpush.bf16.msra.mxu0 %v2847
  %2980 = vmatpush.bf16.msra.mxu0 %v2841
  %2981 = vmatpush.bf16.msra.mxu0 %v2835
  %2982 = vmatpush.bf16.msra.mxu0 %v2829
  %2983 = vmatpush.bf16.msra.mxu0 %v2823
  %2984 = vmatpush.bf16.msra.mxu0 %v2817
  %2985 = vmatmul.bf16.gmra.mxu0 %v2892
  %v2986 = vpop.f32.mrf.mxu0
  %v2987 = vadd.f32 0.0, %v2986
  %v2988 = vpop.f32.mrf.mxu0
  %2989 = vdwg.mxu0
  %v2990 = vsel %vm380, %v2922, 0.0
  %v2991 = vsel %vm381, %v2935, 0.0
  %v2992 = vsel %vm382, %v2948, 0.0
  %v2993 = vsel %vm383, %v2961, 0.0
  %v2994 = vsel %vm384, %v2974, 0.0
  %v2995 = vsel %vm385, %v2987, 0.0
  %v2996 = vld [vmem:[%s8] sm:$0xff]
  %v2997 = vld [vmem:[%s9] sm:$0xff]
  %v2998 = vadd.f32 %v2990, %v2991
  %v2999 = vadd.f32 %v2998, %v2992
  %v3000 = vadd.f32 %v2999, %v2993
  %v3001 = vadd.f32 %v3000, %v2994
  %v3002 = vadd.f32 %v3001, %v2995
  %3003 = vadd.xlane.f32.xlu0 %v3002
  %v3004 = vpop.xlane.xlu0 %3003
  %v3005 = vmul.f32 %v3004, 0.001953125
  %v3006 = vmul.f32 %v2990, %v2990
  %v3007 = vmul.f32 %v2991, %v2991
  %v3008 = vmul.f32 %v2992, %v2992
  %v3009 = vmul.f32 %v2993, %v2993
  %v3010 = vmul.f32 %v2994, %v2994
  %v3011 = vmul.f32 %v2995, %v2995
  %v3012 = vadd.f32 %v3006, %v3007
  %v3013 = vadd.f32 %v3012, %v3008
  %v3014 = vadd.f32 %v3013, %v3009
  %v3015 = vadd.f32 %v3014, %v3010
  %v3016 = vadd.f32 %v3015, %v3011
  %3017 = vadd.xlane.f32.xlu0 %v3016
  %v3018 = vpop.xlane.xlu0 %3017
  %v3019 = vmul.f32 %v3018, 0.001953125
  %v3020 = vmul.f32 %v3005, %v3005
  %v3021 = vsub.f32 %v3019, %v3020
  %v3022 = vmax.f32 %v3021, 0.0
  %v3023 = vsub.f32 %v2990, %v3005
  %v3024 = vsub.f32 %v2991, %v3005
  %v3025 = vsub.f32 %v2993, %v3005
  %v3026 = vsub.f32 %v2994, %v3005
  %v3027 = vadd.f32 %v3022, 1e-05
  %v3028 = vrsqrt.pop %v3027
  %v3029 = vmul.f32 %v3028, %v3027
  %v3030 = vmul.f32 %v3029, %v3028
  %v3031 = vmul.f32 0.5, %v3030
  %v3032 = vsub.f32 1.5, %v3031
  %v3033 = vmul.f32 %v3028, %v3032
  %vm3034 = vweird.f32 %v3027
  %vm3035 = vweird.f32 %v3028
  %vm3036 = vmor %vm3034, %vm3035
  %v3037 = vsel %vm3036, %v3028, %v3033
  %v3038 = vmul.f32 %v3037, %v2996
  %3040 = vset.pattern.permute.xlu0 0
  %3041 = vperm.xlu0 %3040, %v3038
  %v3042 = vpop.permute.xlu0 %3041
  %v3044 = vmul.f32 %v3023, %v3042
  %v3045 = vmul.f32 %v3024, %v3042
  %v3046 = vmul.f32 %v3025, %v3042
  %v3047 = vmul.f32 %v3026, %v3042
  %3049 = vset.pattern.permute.xlu0 0
  %3050 = vperm.xlu0 %3049, %v2997
  %v3051 = vpop.permute.xlu0 %3050
  %v3053 = vadd.f32 %v3044, %v3051
  %v3054 = vadd.f32 %v3045, %v3051
  %v3055 = vadd.f32 %v3046, %v3051
  %v3056 = vadd.f32 %v3047, %v3051
  %v3057 = vmax.f32 %v3053, 0.0
  %v3058 = vmax.f32 %v3054, 0.0
  %v3059 = vmax.f32 %v3055, 0.0
  %v3060 = vmax.f32 %v3056, 0.0
  %3061 = vst [vmem:[%s13 + $0x20] sm:$0xff] %v3057
  %3062 = vst [vmem:[%s13 + $0x28] sm:$0xff] %v3058
  %3063 = vst [vmem:[%s369 + $0x20] sm:$0xff] %v3059
  %3064 = vst [vmem:[%s369 + $0x28] sm:$0xff] %v3060
  %3065 = vst [vmem:[#allocation5] sm:$0xf] -1e+30
  %3066 = vst [vmem:[#allocation5 + $0x1c] sm:$0xf] -1e+30
  %v3067 = vld [vmem:[%s0] sm:$0xff]
  %3068 = vst [vmem:[#allocation5 + $0x4] sm:$0xff] %v3067
  %3069 = vst [vmem:[#allocation5 + $0xc] sm:$0xf] -1e+30
  %v3070 = vld [vmem:[%s119] sm:$0xff]
  %3071 = vst [vmem:[#allocation5 + $0x10] sm:$0xff] %v3070
  %3072 = vst [vmem:[#allocation5 + $0x18] sm:$0xf] -1e+30
  %v3073 = vld [vmem:[#allocation5] sm:$0xff]
  %v3074 = vld [vmem:[#allocation5 + $0x8] sm:$0xff]
  %v3075 = vld [vmem:[#allocation5 + $0x10] sm:$0xff]
  %v3076 = vld [vmem:[#allocation5 + $0x18] sm:$0xf]
  %3081 = vst [vmem:[#allocation1] ss:$2 sm:$0xff] %v3073
  %s3082 = scalar_lea.vmem [#allocation1], 16
  %3083 = vst [vmem:[%s3082] ss:$2 sm:$0xff] %v3074
  %s3084 = scalar_lea.vmem [#allocation1], 32
  %3085 = vst [vmem:[%s3084] ss:$2 sm:$0xff] %v3075
  %s3086 = scalar_lea.vmem [#allocation1], 48
  %3087 = vst [vmem:[%s3086] ss:$2 sm:$0xff] %v3076
  %v3088 = vld.sshfl [vmem:[#allocation1] sm:$0xff pattern:$0x75316420]
  %v3089 = vld.sshfl [vmem:[#allocation1 + $0x8] sm:$0xff pattern:$0x75316420]
  %v3090 = vld.sshfl [vmem:[#allocation1 + $0x10] sm:$0xff pattern:$0x75316420]
  %v3091 = vld.sshfl [vmem:[#allocation1 + $0x18] sm:$0xff pattern:$0x75316420]
  %v3092 = vld.sshfl [vmem:[#allocation1 + $0x20] sm:$0xff pattern:$0x75316420]
  %v3093 = vld.sshfl [vmem:[#allocation1 + $0x28] sm:$0xff pattern:$0x75316420]
  %v3094 = vld.sshfl [vmem:[#allocation1 + $0x30] sm:$0xff pattern:$0x75316420]
  %3095 = vrot.lane.b32.xlu0 %v3088, 17
  %v3096 = vpop.permute.xlu0 %3095
  %3097 = vrot.lane.b32.xlu0 %v3089, 17
  %v3098 = vpop.permute.xlu0 %3097
  %3099 = vrot.lane.b32.xlu0 %v3090, 17
  %v3100 = vpop.permute.xlu0 %3099
  %3101 = vrot.lane.b32.xlu0 %v3091, 17
  %v3102 = vpop.permute.xlu0 %3101
  %3103 = vrot.lane.b32.xlu0 %v3092, 17
  %v3104 = vpop.permute.xlu0 %3103
  %3105 = vrot.lane.b32.xlu0 %v3093, 17
  %v3106 = vpop.permute.xlu0 %3105
  %3107 = vrot.lane.b32.xlu0 %v3094, 17
  %v3108 = vpop.permute.xlu0 %3107
  %v3109 = vsel %vm444, %v3096, %v3098
  %v3110 = vsel %vm444, %v3098, %v3100
  %v3111 = vsel %vm444, %v3100, %v3102
  %v3112 = vsel %vm444, %v3102, %v3104
  %v3113 = vsel %vm444, %v3104, %v3106
  %v3114 = vsel %vm444, %v3106, %v3108
  %v3121 = vsel %vm417, %v3109, -1e+30
  %v3122 = vsel %vm418, %v3110, -1e+30
  %v3123 = vsel %vm419, %v3111, -1e+30
  %v3124 = vsel %vm420, %v3112, -1e+30
  %v3125 = vsel %vm421, %v3113, -1e+30
  %v3126 = vsel %vm422, %v3114, -1e+30
  %v3127 = vld [vmem:[#allocation5] sm:$0xff]
  %v3128 = vld [vmem:[#allocation5 + $0x8] sm:$0xff]
  %v3129 = vld [vmem:[#allocation5 + $0x10] sm:$0xff]
  %v3130 = vld [vmem:[#allocation5 + $0x18] sm:$0xf]
  %3135 = vst [vmem:[#allocation1] ss:$2 sm:$0xff] %v3127
  %s3136 = scalar_lea.vmem [#allocation1], 16
  %3137 = vst [vmem:[%s3136] ss:$2 sm:$0xff] %v3128
  %s3138 = scalar_lea.vmem [#allocation1], 32
  %3139 = vst [vmem:[%s3138] ss:$2 sm:$0xff] %v3129
  %s3140 = scalar_lea.vmem [#allocation1], 48
  %3141 = vst [vmem:[%s3140] ss:$2 sm:$0xff] %v3130
  %v3142 = vld.sshfl [vmem:[#allocation1] sm:$0xff pattern:$0x75316420]
  %v3143 = vld.sshfl [vmem:[#allocation1 + $0x8] sm:$0xff pattern:$0x75316420]
  %v3144 = vld.sshfl [vmem:[#allocation1 + $0x10] sm:$0xff pattern:$0x75316420]
  %v3145 = vld.sshfl [vmem:[#allocation1 + $0x18] sm:$0xff pattern:$0x75316420]
  %v3146 = vld.sshfl [vmem:[#allocation1 + $0x20] sm:$0xff pattern:$0x75316420]
  %v3147 = vld.sshfl [vmem:[#allocation1 + $0x28] sm:$0xff pattern:$0x75316420]
  %v3148 = vld.sshfl [vmem:[#allocation1 + $0x30] sm:$0xff pattern:$0x75316420]
  %3149 = vrot.lane.b32.xlu0 %v3142, 16
  %v3150 = vpop.permute.xlu0 %3149
  %3151 = vrot.lane.b32.xlu0 %v3143, 16
  %v3152 = vpop.permute.xlu0 %3151
  %3153 = vrot.lane.b32.xlu0 %v3144, 16
  %v3154 = vpop.permute.xlu0 %3153
  %3155 = vrot.lane.b32.xlu0 %v3145, 16
  %v3156 = vpop.permute.xlu0 %3155
  %3157 = vrot.lane.b32.xlu0 %v3146, 16
  %v3158 = vpop.permute.xlu0 %3157
  %3159 = vrot.lane.b32.xlu0 %v3147, 16
  %v3160 = vpop.permute.xlu0 %3159
  %3161 = vrot.lane.b32.xlu0 %v3148, 16
  %v3162 = vpop.permute.xlu0 %3161
  %vm3163 = vcmask 130048
  %v3164 = vsel %vm3163, %v3150, %v3152
  %v3165 = vsel %vm3163, %v3152, %v3154
  %v3166 = vsel %vm3163, %v3154, %v3156
  %v3167 = vsel %vm3163, %v3156, %v3158
  %v3168 = vsel %vm3163, %v3158, %v3160
  %v3169 = vsel %vm3163, %v3160, %v3162
  %v3176 = vmax.f32 %v3121, %v3164
  %v3177 = vmax.f32 %v3122, %v3165
  %v3178 = vmax.f32 %v3123, %v3166
  %v3179 = vmax.f32 %v3124, %v3167
  %v3180 = vmax.f32 %v3125, %v3168
  %v3181 = vmax.f32 %v3126, %v3169
  %v3182 = vld [vmem:[#allocation5] sm:$0xff]
  %v3183 = vld [vmem:[#allocation5 + $0x8] sm:$0xff]
  %v3184 = vld [vmem:[#allocation5 + $0x10] sm:$0xff]
  %v3185 = vld [vmem:[#allocation5 + $0x18] sm:$0xf]
  %3190 = vst [vmem:[#allocation1] ss:$2 sm:$0xff] %v3182
  %s3191 = scalar_lea.vmem [#allocation1], 16
  %3192 = vst [vmem:[%s3191] ss:$2 sm:$0xff] %v3183
  %s3193 = scalar_lea.vmem [#allocation1], 32
  %3194 = vst [vmem:[%s3193] ss:$2 sm:$0xff] %v3184
  %s3195 = scalar_lea.vmem [#allocation1], 48
  %3196 = vst [vmem:[%s3195] ss:$2 sm:$0xff] %v3185
  %v3197 = vld.sshfl [vmem:[#allocation1] sm:$0xff pattern:$0x75316420]
  %v3198 = vld.sshfl [vmem:[#allocation1 + $0x8] sm:$0xff pattern:$0x75316420]
  %v3199 = vld.sshfl [vmem:[#allocation1 + $0x10] sm:$0xff pattern:$0x75316420]
  %v3200 = vld.sshfl [vmem:[#allocation1 + $0x18] sm:$0xff pattern:$0x75316420]
  %v3201 = vld.sshfl [vmem:[#allocation1 + $0x20] sm:$0xff pattern:$0x75316420]
  %v3202 = vld.sshfl [vmem:[#allocation1 + $0x28] sm:$0xff pattern:$0x75316420]
  %v3203 = vld.sshfl [vmem:[#allocation1 + $0x30] sm:$0xff pattern:$0x75316420]
  %3204 = vrot.lane.b32.xlu0 %v3197, 15
  %v3205 = vpop.permute.xlu0 %3204
  %3206 = vrot.lane.b32.xlu0 %v3198, 15
  %v3207 = vpop.permute.xlu0 %3206
  %3208 = vrot.lane.b32.xlu0 %v3199, 15
  %v3209 = vpop.permute.xlu0 %3208
  %3210 = vrot.lane.b32.xlu0 %v3200, 15
  %v3211 = vpop.permute.xlu0 %3210
  %3212 = vrot.lane.b32.xlu0 %v3201, 15
  %v3213 = vpop.permute.xlu0 %3212
  %3214 = vrot.lane.b32.xlu0 %v3202, 15
  %v3215 = vpop.permute.xlu0 %3214
  %3216 = vrot.lane.b32.xlu0 %v3203, 15
  %v3217 = vpop.permute.xlu0 %3216
  %v3218 = vsel %vm560, %v3205, %v3207
  %v3219 = vsel %vm560, %v3207, %v3209
  %v3220 = vsel %vm560, %v3209, %v3211
  %v3221 = vsel %vm560, %v3211, %v3213
  %v3222 = vsel %vm560, %v3213, %v3215
  %v3223 = vsel %vm560, %v3215, %v3217
  %v3230 = vsel %vm533, %v3218, -1e+30
  %v3231 = vsel %vm534, %v3219, -1e+30
  %v3232 = vsel %vm535, %v3220, -1e+30
  %v3233 = vsel %vm536, %v3221, -1e+30
  %v3234 = vsel %vm537, %v3222, -1e+30
  %v3235 = vsel %vm538, %v3223, -1e+30
  %v3236 = vmax.f32 %v3176, %v3230
  %v3237 = vmax.f32 %v3177, %v3231
  %v3238 = vmax.f32 %v3178, %v3232
  %v3239 = vmax.f32 %v3179, %v3233
  %v3240 = vmax.f32 %v3180, %v3234
  %v3241 = vmax.f32 %v3181, %v3235
  %v3242 = vld [vmem:[#allocation5] sm:$0xff]
  %v3243 = vld [vmem:[#allocation5 + $0x8] sm:$0xff]
  %v3244 = vld [vmem:[#allocation5 + $0x10] sm:$0xff]
  %v3245 = vld [vmem:[#allocation5 + $0x18] sm:$0xf]
  %3250 = vst [vmem:[#allocation1] ss:$2 sm:$0xff] %v3242
  %s3251 = scalar_lea.vmem [#allocation1], 16
  %3252 = vst [vmem:[%s3251] ss:$2 sm:$0xff] %v3243
  %s3253 = scalar_lea.vmem [#allocation1], 32
  %3254 = vst [vmem:[%s3253] ss:$2 sm:$0xff] %v3244
  %s3255 = scalar_lea.vmem [#allocation1], 48
  %3256 = vst [vmem:[%s3255] ss:$2 sm:$0xff] %v3245
  %v3257 = vld.sshfl [vmem:[#allocation1] sm:$0xff pattern:$0x75316420]
  %v3258 = vld.sshfl [vmem:[#allocation1 + $0x8] sm:$0xff pattern:$0x75316420]
  %v3259 = vld.sshfl [vmem:[#allocation1 + $0x10] sm:$0xff pattern:$0x75316420]
  %v3260 = vld.sshfl [vmem:[#allocation1 + $0x18] sm:$0xff pattern:$0x75316420]
  %v3261 = vld.sshfl [vmem:[#allocation1 + $0x20] sm:$0xff pattern:$0x75316420]
  %v3262 = vld.sshfl [vmem:[#allocation1 + $0x28] sm:$0xff pattern:$0x75316420]
  %v3263 = vld.sshfl [vmem:[#allocation1 + $0x30] sm:$0xff pattern:$0x75316420]
  %3264 = vrot.lane.b32.xlu0 %v3257, 1
  %v3265 = vpop.permute.xlu0 %3264
  %3266 = vrot.lane.b32.xlu0 %v3258, 1
  %v3267 = vpop.permute.xlu0 %3266
  %3268 = vrot.lane.b32.xlu0 %v3259, 1
  %v3269 = vpop.permute.xlu0 %3268
  %3270 = vrot.lane.b32.xlu0 %v3260, 1
  %v3271 = vpop.permute.xlu0 %3270
  %3272 = vrot.lane.b32.xlu0 %v3261, 1
  %v3273 = vpop.permute.xlu0 %3272
  %3274 = vrot.lane.b32.xlu0 %v3262, 1
  %v3275 = vpop.permute.xlu0 %3274
  %3276 = vrot.lane.b32.xlu0 %v3263, 1
  %v3277 = vpop.permute.xlu0 %3276
  %v3278 = vsel %vm613, %v3265, %v3267
  %v3279 = vsel %vm613, %v3267, %v3269
  %v3280 = vsel %vm613, %v3269, %v3271
  %v3281 = vsel %vm613, %v3271, %v3273
  %v3282 = vsel %vm613, %v3273, %v3275
  %v3283 = vsel %vm613, %v3275, %v3277
  %v3290 = vsel %vm417, %v3278, -1e+30
  %v3291 = vsel %vm418, %v3279, -1e+30
  %v3292 = vsel %vm419, %v3280, -1e+30
  %v3293 = vsel %vm420, %v3281, -1e+30
  %v3294 = vsel %vm421, %v3282, -1e+30
  %v3295 = vsel %vm422, %v3283, -1e+30
  %v3296 = vmax.f32 %v3236, %v3290
  %v3297 = vmax.f32 %v3237, %v3291
  %v3298 = vmax.f32 %v3238, %v3292
  %v3299 = vmax.f32 %v3239, %v3293
  %v3300 = vmax.f32 %v3240, %v3294
  %v3301 = vmax.f32 %v3241, %v3295
  %v3302 = vld [vmem:[#allocation5 + $0x4] sm:$0xff]
  %v3303 = vld [vmem:[#allocation5 + $0xc] sm:$0xff]
  %v3304 = vld [vmem:[#allocation5 + $0x14] sm:$0xff]
  %3308 = vst [vmem:[#allocation1] ss:$2 sm:$0xff] %v3302
  %s3309 = scalar_lea.vmem [#allocation1], 16
  %3310 = vst [vmem:[%s3309] ss:$2 sm:$0xff] %v3303
  %s3311 = scalar_lea.vmem [#allocation1], 32
  %3312 = vst [vmem:[%s3311] ss:$2 sm:$0xff] %v3304
  %v3313 = vld.sshfl [vmem:[#allocation1] sm:$0xff pattern:$0x75316420]
  %v3314 = vld.sshfl [vmem:[#allocation1 + $0x8] sm:$0xff pattern:$0x75316420]
  %v3315 = vld.sshfl [vmem:[#allocation1 + $0x10] sm:$0xff pattern:$0x75316420]
  %v3316 = vld.sshfl [vmem:[#allocation1 + $0x18] sm:$0xff pattern:$0x75316420]
  %v3317 = vld.sshfl [vmem:[#allocation1 + $0x20] sm:$0xff pattern:$0x75316420]
  %v3318 = vld.sshfl [vmem:[#allocation1 + $0x28] sm:$0xff pattern:$0x75316420]
  %v3325 = vmax.f32 %v3296, %v3313
  %v3326 = vmax.f32 %v3297, %v3314
  %v3327 = vmax.f32 %v3298, %v3315
  %v3328 = vmax.f32 %v3299, %v3316
  %v3329 = vmax.f32 %v3300, %v3317
  %v3330 = vmax.f32 %v3301, %v3318
  %v3331 = vld [vmem:[#allocation5 + $0x4] sm:$0xff]
  %v3332 = vld [vmem:[#allocation5 + $0xc] sm:$0xff]
  %v3333 = vld [vmem:[#allocation5 + $0x14] sm:$0xff]
  %v3334 = vld [vmem:[#allocation5 + $0x1c] sm:$0xf]
  %3339 = vst [vmem:[#allocation1] ss:$2 sm:$0xff] %v3331
  %s3340 = scalar_lea.vmem [#allocation1], 16
  %3341 = vst [vmem:[%s3340] ss:$2 sm:$0xff] %v3332
  %s3342 = scalar_lea.vmem [#allocation1], 32
  %3343 = vst [vmem:[%s3342] ss:$2 sm:$0xff] %v3333
  %s3344 = scalar_lea.vmem [#allocation1], 48
  %3345 = vst [vmem:[%s3344] ss:$2 sm:$0xff] %v3334
  %v3346 = vld.sshfl [vmem:[#allocation1] sm:$0xff pattern:$0x75316420]
  %v3347 = vld.sshfl [vmem:[#allocation1 + $0x8] sm:$0xff pattern:$0x75316420]
  %v3348 = vld.sshfl [vmem:[#allocation1 + $0x10] sm:$0xff pattern:$0x75316420]
  %v3349 = vld.sshfl [vmem:[#allocation1 + $0x18] sm:$0xff pattern:$0x75316420]
  %v3350 = vld.sshfl [vmem:[#allocation1 + $0x20] sm:$0xff pattern:$0x75316420]
  %v3351 = vld.sshfl [vmem:[#allocation1 + $0x28] sm:$0xff pattern:$0x75316420]
  %v3352 = vld.sshfl [vmem:[#allocation1 + $0x30] sm:$0xff pattern:$0x75316420]
  %3353 = vrot.lane.b32.xlu0 %v3346, 127
  %v3354 = vpop.permute.xlu0 %3353
  %3355 = vrot.lane.b32.xlu0 %v3347, 127
  %v3356 = vpop.permute.xlu0 %3355
  %3357 = vrot.lane.b32.xlu0 %v3348, 127
  %v3358 = vpop.permute.xlu0 %3357
  %3359 = vrot.lane.b32.xlu0 %v3349, 127
  %v3360 = vpop.permute.xlu0 %3359
  %3361 = vrot.lane.b32.xlu0 %v3350, 127
  %v3362 = vpop.permute.xlu0 %3361
  %3363 = vrot.lane.b32.xlu0 %v3351, 127
  %v3364 = vpop.permute.xlu0 %3363
  %3365 = vrot.lane.b32.xlu0 %v3352, 127
  %v3366 = vpop.permute.xlu0 %3365
  %v3367 = vsel %vm687, %v3354, %v3356
  %v3368 = vsel %vm687, %v3356, %v3358
  %v3369 = vsel %vm687, %v3358, %v3360
  %v3370 = vsel %vm687, %v3360, %v3362
  %v3371 = vsel %vm687, %v3362, %v3364
  %v3372 = vsel %vm687, %v3364, %v3366
  %v3379 = vsel %vm533, %v3367, -1e+30
  %v3380 = vsel %vm534, %v3368, -1e+30
  %v3381 = vsel %vm535, %v3369, -1e+30
  %v3382 = vsel %vm536, %v3370, -1e+30
  %v3383 = vsel %vm537, %v3371, -1e+30
  %v3384 = vsel %vm538, %v3372, -1e+30
  %v3385 = vmax.f32 %v3325, %v3379
  %v3386 = vmax.f32 %v3326, %v3380
  %v3387 = vmax.f32 %v3327, %v3381
  %v3388 = vmax.f32 %v3328, %v3382
  %v3389 = vmax.f32 %v3329, %v3383
  %v3390 = vmax.f32 %v3330, %v3384
  %v3391 = vld [vmem:[#allocation5 + $0x4] sm:$0xff]
  %v3392 = vld [vmem:[#allocation5 + $0xc] sm:$0xff]
  %v3393 = vld [vmem:[#allocation5 + $0x14] sm:$0xff]
  %v3394 = vld [vmem:[#allocation5 + $0x1c] sm:$0xf]
  %3399 = vst [vmem:[#allocation1] ss:$2 sm:$0xff] %v3391
  %s3400 = scalar_lea.vmem [#allocation1], 16
  %3401 = vst [vmem:[%s3400] ss:$2 sm:$0xff] %v3392
  %s3402 = scalar_lea.vmem [#allocation1], 32
  %3403 = vst [vmem:[%s3402] ss:$2 sm:$0xff] %v3393
  %s3404 = scalar_lea.vmem [#allocation1], 48
  %3405 = vst [vmem:[%s3404] ss:$2 sm:$0xff] %v3394
  %v3406 = vld.sshfl [vmem:[#allocation1] sm:$0xff pattern:$0x75316420]
  %v3407 = vld.sshfl [vmem:[#allocation1 + $0x8] sm:$0xff pattern:$0x75316420]
  %v3408 = vld.sshfl [vmem:[#allocation1 + $0x10] sm:$0xff pattern:$0x75316420]
  %v3409 = vld.sshfl [vmem:[#allocation1 + $0x18] sm:$0xff pattern:$0x75316420]
  %v3410 = vld.sshfl [vmem:[#allocation1 + $0x20] sm:$0xff pattern:$0x75316420]
  %v3411 = vld.sshfl [vmem:[#allocation1 + $0x28] sm:$0xff pattern:$0x75316420]
  %v3412 = vld.sshfl [vmem:[#allocation1 + $0x30] sm:$0xff pattern:$0x75316420]
  %3413 = vrot.lane.b32.xlu0 %v3406, 113
  %v3414 = vpop.permute.xlu0 %3413
  %3415 = vrot.lane.b32.xlu0 %v3407, 113
  %v3416 = vpop.permute.xlu0 %3415
  %3417 = vrot.lane.b32.xlu0 %v3408, 113
  %v3418 = vpop.permute.xlu0 %3417
  %3419 = vrot.lane.b32.xlu0 %v3409, 113
  %v3420 = vpop.permute.xlu0 %3419
  %3421 = vrot.lane.b32.xlu0 %v3410, 113
  %v3422 = vpop.permute.xlu0 %3421
  %3423 = vrot.lane.b32.xlu0 %v3411, 113
  %v3424 = vpop.permute.xlu0 %3423
  %3425 = vrot.lane.b32.xlu0 %v3412, 113
  %v3426 = vpop.permute.xlu0 %3425
  %v3427 = vsel %vm749, %v3414, %v3416
  %v3428 = vsel %vm749, %v3416, %v3418
  %v3429 = vsel %vm749, %v3418, %v3420
  %v3430 = vsel %vm749, %v3420, %v3422
  %v3431 = vsel %vm749, %v3422, %v3424
  %v3432 = vsel %vm749, %v3424, %v3426
  %v3439 = vsel %vm417, %v3427, -1e+30
  %v3440 = vsel %vm418, %v3428, -1e+30
  %v3441 = vsel %vm419, %v3429, -1e+30
  %v3442 = vsel %vm420, %v3430, -1e+30
  %v3443 = vsel %vm421, %v3431, -1e+30
  %v3444 = vsel %vm422, %v3432, -1e+30
  %v3445 = vmax.f32 %v3385, %v3439
  %v3446 = vmax.f32 %v3386, %v3440
  %v3447 = vmax.f32 %v3387, %v3441
  %v3448 = vmax.f32 %v3388, %v3442
  %v3449 = vmax.f32 %v3389, %v3443
  %v3450 = vmax.f32 %v3390, %v3444
  %v3451 = vld [vmem:[#allocation5 + $0x4] sm:$0xff]
  %v3452 = vld [vmem:[#allocation5 + $0xc] sm:$0xff]
  %v3453 = vld [vmem:[#allocation5 + $0x14] sm:$0xff]
  %v3454 = vld [vmem:[#allocation5 + $0x1c] sm:$0xf]
  %3459 = vst [vmem:[#allocation1] ss:$2 sm:$0xff] %v3451
  %s3460 = scalar_lea.vmem [#allocation1], 16
  %3461 = vst [vmem:[%s3460] ss:$2 sm:$0xff] %v3452
  %s3462 = scalar_lea.vmem [#allocation1], 32
  %3463 = vst [vmem:[%s3462] ss:$2 sm:$0xff] %v3453
  %s3464 = scalar_lea.vmem [#allocation1], 48
  %3465 = vst [vmem:[%s3464] ss:$2 sm:$0xff] %v3454
  %v3466 = vld.sshfl [vmem:[#allocation1] sm:$0xff pattern:$0x75316420]
  %v3467 = vld.sshfl [vmem:[#allocation1 + $0x8] sm:$0xff pattern:$0x75316420]
  %v3468 = vld.sshfl [vmem:[#allocation1 + $0x10] sm:$0xff pattern:$0x75316420]
  %v3469 = vld.sshfl [vmem:[#allocation1 + $0x18] sm:$0xff pattern:$0x75316420]
  %v3470 = vld.sshfl [vmem:[#allocation1 + $0x20] sm:$0xff pattern:$0x75316420]
  %v3471 = vld.sshfl [vmem:[#allocation1 + $0x28] sm:$0xff pattern:$0x75316420]
  %v3472 = vld.sshfl [vmem:[#allocation1 + $0x30] sm:$0xff pattern:$0x75316420]
  %3473 = vrot.lane.b32.xlu0 %v3466, 112
  %v3474 = vpop.permute.xlu0 %3473
  %3475 = vrot.lane.b32.xlu0 %v3467, 112
  %v3476 = vpop.permute.xlu0 %3475
  %3477 = vrot.lane.b32.xlu0 %v3468, 112
  %v3478 = vpop.permute.xlu0 %3477
  %3479 = vrot.lane.b32.xlu0 %v3469, 112
  %v3480 = vpop.permute.xlu0 %3479
  %3481 = vrot.lane.b32.xlu0 %v3470, 112
  %v3482 = vpop.permute.xlu0 %3481
  %3483 = vrot.lane.b32.xlu0 %v3471, 112
  %v3484 = vpop.permute.xlu0 %3483
  %3485 = vrot.lane.b32.xlu0 %v3472, 112
  %v3486 = vpop.permute.xlu0 %3485
  %vm3487 = vcmask 916480
  %v3488 = vsel %vm3487, %v3474, %v3476
  %v3489 = vsel %vm3487, %v3476, %v3478
  %v3490 = vsel %vm3487, %v3478, %v3480
  %v3491 = vsel %vm3487, %v3480, %v3482
  %v3492 = vsel %vm3487, %v3482, %v3484
  %v3493 = vsel %vm3487, %v3484, %v3486
  %v3500 = vmax.f32 %v3445, %v3488
  %v3501 = vmax.f32 %v3446, %v3489
  %v3502 = vmax.f32 %v3447, %v3490
  %v3503 = vmax.f32 %v3448, %v3491
  %v3504 = vmax.f32 %v3449, %v3492
  %v3505 = vmax.f32 %v3450, %v3493
  %v3506 = vld [vmem:[#allocation5 + $0x4] sm:$0xff]
  %v3507 = vld [vmem:[#allocation5 + $0xc] sm:$0xff]
  %v3508 = vld [vmem:[#allocation5 + $0x14] sm:$0xff]
  %v3509 = vld [vmem:[#allocation5 + $0x1c] sm:$0xf]
  %3514 = vst [vmem:[#allocation1] ss:$2 sm:$0xff] %v3506
  %s3515 = scalar_lea.vmem [#allocation1], 16
  %3516 = vst [vmem:[%s3515] ss:$2 sm:$0xff] %v3507
  %s3517 = scalar_lea.vmem [#allocation1], 32
  %3518 = vst [vmem:[%s3517] ss:$2 sm:$0xff] %v3508
  %s3519 = scalar_lea.vmem [#allocation1], 48
  %3520 = vst [vmem:[%s3519] ss:$2 sm:$0xff] %v3509
  %v3521 = vld.sshfl [vmem:[#allocation1] sm:$0xff pattern:$0x75316420]
  %v3522 = vld.sshfl [vmem:[#allocation1 + $0x8] sm:$0xff pattern:$0x75316420]
  %v3523 = vld.sshfl [vmem:[#allocation1 + $0x10] sm:$0xff pattern:$0x75316420]
  %v3524 = vld.sshfl [vmem:[#allocation1 + $0x18] sm:$0xff pattern:$0x75316420]
  %v3525 = vld.sshfl [vmem:[#allocation1 + $0x20] sm:$0xff pattern:$0x75316420]
  %v3526 = vld.sshfl [vmem:[#allocation1 + $0x28] sm:$0xff pattern:$0x75316420]
  %v3527 = vld.sshfl [vmem:[#allocation1 + $0x30] sm:$0xff pattern:$0x75316420]
  %3528 = vrot.lane.b32.xlu0 %v3521, 111
  %v3529 = vpop.permute.xlu0 %3528
  %3530 = vrot.lane.b32.xlu0 %v3522, 111
  %v3531 = vpop.permute.xlu0 %3530
  %3532 = vrot.lane.b32.xlu0 %v3523, 111
  %v3533 = vpop.permute.xlu0 %3532
  %3534 = vrot.lane.b32.xlu0 %v3524, 111
  %v3535 = vpop.permute.xlu0 %3534
  %3536 = vrot.lane.b32.xlu0 %v3525, 111
  %v3537 = vpop.permute.xlu0 %3536
  %3538 = vrot.lane.b32.xlu0 %v3526, 111
  %v3539 = vpop.permute.xlu0 %3538
  %3540 = vrot.lane.b32.xlu0 %v3527, 111
  %v3541 = vpop.permute.xlu0 %3540
  %v3542 = vsel %vm846, %v3529, %v3531
  %v3543 = vsel %vm846, %v3531, %v3533
  %v3544 = vsel %vm846, %v3533, %v3535
  %v3545 = vsel %vm846, %v3535, %v3537
  %v3546 = vsel %vm846, %v3537, %v3539
  %v3547 = vsel %vm846, %v3539, %v3541
  %v3554 = vsel %vm533, %v3542, -1e+30
  %v3555 = vsel %vm534, %v3543, -1e+30
  %v3556 = vsel %vm535, %v3544, -1e+30
  %v3557 = vsel %vm536, %v3545, -1e+30
  %v3558 = vsel %vm537, %v3546, -1e+30
  %v3559 = vsel %vm538, %v3547, -1e+30
  %v3560 = vmax.f32 %v3500, %v3554
  %v3561 = vmax.f32 %v3501, %v3555
  %v3562 = vmax.f32 %v3502, %v3556
  %v3563 = vmax.f32 %v3503, %v3557
  %v3564 = vmax.f32 %v3504, %v3558
  %v3565 = vmax.f32 %v3505, %v3559
  %v3566 = vsel %vm380, %v3560, 0.0
  %v3567 = vsel %vm381, %v3561, 0.0
  %v3568 = vsel %vm382, %v3562, 0.0
  %v3569 = vsel %vm383, %v3563, 0.0
  %v3570 = vsel %vm384, %v3564, 0.0
  %v3571 = vsel %vm385, %v3565, 0.0
  %v3572 = vld [vmem:[%s10] sm:$0xf]
  %v3573 = vpack.c.bf16 %v3566, %v3566
  %v3574 = vpack.c.bf16 %v3567, %v3567
  %v3575 = vpack.c.bf16 %v3568, %v3568
  %v3576 = vpack.c.bf16 %v3569, %v3569
  %v3577 = vpack.c.bf16 %v3570, %v3570
  %v3578 = vpack.c.bf16 %v3571, %v3571
  %v3580 = vsel %vm145, %v3572, 0
  %v3583 = vsel %vm149, %v3573, 0
  %v3586 = vsel %vm149, %v3574, 0
  %v3589 = vsel %vm149, %v3575, 0
  %v3592 = vsel %vm149, %v3576, 0
  %v3595 = vsel %vm149, %v3577, 0
  %v3598 = vsel %vm149, %v3578, 0
  %3600 = vmatpush.bf16.msra.mxu0 0
  %3601 = vmatpush.bf16.msra.mxu0 0
  %3602 = vmatpush.bf16.msra.mxu0 0
  %3603 = vmatpush.bf16.msra.mxu0 0
  %3604 = vmatpush.bf16.msra.mxu0 0
  %3605 = vmatpush.bf16.msra.mxu0 0
  %3606 = vmatpush.bf16.msra.mxu0 0
  %3607 = vmatpush.bf16.msra.mxu0 %v3583
  %3608 = vmatmul.bf16.gmra.mxu0 %v3580
  %v3609 = vpop.f32.mrf.mxu0
  %v3610 = vadd.f32 0.0, %v3609
  %v3611 = vpop.f32.mrf.mxu0
  %3612 = vdwg.mxu0
  %3613 = vmatpush.bf16.msra.mxu0 0
  %3614 = vmatpush.bf16.msra.mxu0 0
  %3615 = vmatpush.bf16.msra.mxu0 0
  %3616 = vmatpush.bf16.msra.mxu0 0
  %3617 = vmatpush.bf16.msra.mxu0 0
  %3618 = vmatpush.bf16.msra.mxu0 0
  %3619 = vmatpush.bf16.msra.mxu0 0
  %3620 = vmatpush.bf16.msra.mxu0 %v3586
  %3621 = vmatmul.bf16.gmra.mxu0 %v3580
  %v3622 = vpop.f32.mrf.mxu0
  %v3623 = vadd.f32 0.0, %v3622
  %v3624 = vpop.f32.mrf.mxu0
  %3625 = vdwg.mxu0
  %3626 = vmatpush.bf16.msra.mxu0 0
  %3627 = vmatpush.bf16.msra.mxu0 0
  %3628 = vmatpush.bf16.msra.mxu0 0
  %3629 = vmatpush.bf16.msra.mxu0 0
  %3630 = vmatpush.bf16.msra.mxu0 0
  %3631 = vmatpush.bf16.msra.mxu0 0
  %3632 = vmatpush.bf16.msra.mxu0 0
  %3633 = vmatpush.bf16.msra.mxu0 %v3589
  %3634 = vmatmul.bf16.gmra.mxu0 %v3580
  %v3635 = vpop.f32.mrf.mxu0
  %v3636 = vadd.f32 0.0, %v3635
  %v3637 = vpop.f32.mrf.mxu0
  %3638 = vdwg.mxu0
  %3639 = vmatpush.bf16.msra.mxu0 0
  %3640 = vmatpush.bf16.msra.mxu0 0
  %3641 = vmatpush.bf16.msra.mxu0 0
  %3642 = vmatpush.bf16.msra.mxu0 0
  %3643 = vmatpush.bf16.msra.mxu0 0
  %3644 = vmatpush.bf16.msra.mxu0 0
  %3645 = vmatpush.bf16.msra.mxu0 0
  %3646 = vmatpush.bf16.msra.mxu0 %v3592
  %3647 = vmatmul.bf16.gmra.mxu0 %v3580
  %v3648 = vpop.f32.mrf.mxu0
  %v3649 = vadd.f32 0.0, %v3648
  %v3650 = vpop.f32.mrf.mxu0
  %3651 = vdwg.mxu0
  %3652 = vmatpush.bf16.msra.mxu0 0
  %3653 = vmatpush.bf16.msra.mxu0 0
  %3654 = vmatpush.bf16.msra.mxu0 0
  %3655 = vmatpush.bf16.msra.mxu0 0
  %3656 = vmatpush.bf16.msra.mxu0 0
  %3657 = vmatpush.bf16.msra.mxu0 0
  %3658 = vmatpush.bf16.msra.mxu0 0
  %3659 = vmatpush.bf16.msra.mxu0 %v3595
  %3660 = vmatmul.bf16.gmra.mxu0 %v3580
  %v3661 = vpop.f32.mrf.mxu0
  %v3662 = vadd.f32 0.0, %v3661
  %v3663 = vpop.f32.mrf.mxu0
  %3664 = vdwg.mxu0
  %3665 = vmatpush.bf16.msra.mxu0 0
  %3666 = vmatpush.bf16.msra.mxu0 0
  %3667 = vmatpush.bf16.msra.mxu0 0
  %3668 = vmatpush.bf16.msra.mxu0 0
  %3669 = vmatpush.bf16.msra.mxu0 0
  %3670 = vmatpush.bf16.msra.mxu0 0
  %3671 = vmatpush.bf16.msra.mxu0 0
  %3672 = vmatpush.bf16.msra.mxu0 %v3598
  %3673 = vmatmul.bf16.gmra.mxu0 %v3580
  %v3674 = vpop.f32.mrf.mxu0
  %v3675 = vadd.f32 0.0, %v3674
  %v3676 = vpop.f32.mrf.mxu0
  %3677 = vdwg.mxu0
  %v3678 = vld [vmem:[%s11] sm:$0xff]
  %v3679 = vld [vmem:[%s12] sm:$0xff]
  %v3680 = vadd.f32 %v3610, %v3623
  %v3681 = vadd.f32 %v3680, %v3636
  %v3682 = vadd.f32 %v3681, %v3649
  %v3683 = vadd.f32 %v3682, %v3662
  %v3684 = vadd.f32 %v3683, %v3675
  %3685 = vadd.xlane.f32.xlu0 %v3684
  %v3686 = vpop.xlane.xlu0 %3685
  %v3687 = vmul.f32 %v3686, 0.001953125
  %v3688 = vmul.f32 %v3610, %v3610
  %v3689 = vmul.f32 %v3623, %v3623
  %v3690 = vmul.f32 %v3636, %v3636
  %v3691 = vmul.f32 %v3649, %v3649
  %v3692 = vmul.f32 %v3662, %v3662
  %v3693 = vmul.f32 %v3675, %v3675
  %v3694 = vadd.f32 %v3688, %v3689
  %v3695 = vadd.f32 %v3694, %v3690
  %v3696 = vadd.f32 %v3695, %v3691
  %v3697 = vadd.f32 %v3696, %v3692
  %v3698 = vadd.f32 %v3697, %v3693
  %3699 = vadd.xlane.f32.xlu0 %v3698
  %v3700 = vpop.xlane.xlu0 %3699
  %v3701 = vmul.f32 %v3700, 0.001953125
  %v3702 = vmul.f32 %v3687, %v3687
  %v3703 = vsub.f32 %v3701, %v3702
  %v3704 = vmax.f32 %v3703, 0.0
  %v3705 = vsub.f32 %v3610, %v3687
  %v3706 = vsub.f32 %v3623, %v3687
  %v3707 = vsub.f32 %v3649, %v3687
  %v3708 = vsub.f32 %v3662, %v3687
  %v3709 = vadd.f32 %v3704, 1e-05
  %v3710 = vrsqrt.pop %v3709
  %v3711 = vmul.f32 %v3710, %v3709
  %v3712 = vmul.f32 %v3711, %v3710
  %v3713 = vmul.f32 0.5, %v3712
  %v3714 = vsub.f32 1.5, %v3713
  %v3715 = vmul.f32 %v3710, %v3714
  %vm3716 = vweird.f32 %v3709
  %vm3717 = vweird.f32 %v3710
  %vm3718 = vmor %vm3716, %vm3717
  %v3719 = vsel %vm3718, %v3710, %v3715
  %v3720 = vmul.f32 %v3719, %v3678
  %3722 = vset.pattern.permute.xlu0 0
  %3723 = vperm.xlu0 %3722, %v3720
  %v3724 = vpop.permute.xlu0 %3723
  %v3726 = vmul.f32 %v3705, %v3724
  %v3727 = vmul.f32 %v3706, %v3724
  %v3728 = vmul.f32 %v3707, %v3724
  %v3729 = vmul.f32 %v3708, %v3724
  %3731 = vset.pattern.permute.xlu0 0
  %3732 = vperm.xlu0 %3731, %v3679
  %v3733 = vpop.permute.xlu0 %3732
  %v3735 = vadd.f32 %v3726, %v3733
  %v3736 = vadd.f32 %v3727, %v3733
  %v3737 = vadd.f32 %v3728, %v3733
  %v3738 = vadd.f32 %v3729, %v3733
  %v3739 = vmax.f32 %v3735, 0.0
  %v3740 = vmax.f32 %v3736, 0.0
  %v3741 = vmax.f32 %v3737, 0.0
  %v3742 = vmax.f32 %v3738, 0.0
  %3743 = vst [vmem:[%s13 + $0x30] sm:$0xff] %v3739
  %3744 = vst [vmem:[%s13 + $0x38] sm:$0xff] %v3740
  %3745 = vst [vmem:[%s369 + $0x30] sm:$0xff] %v3741
  %3746 = vst [vmem:[%s369 + $0x38] sm:$0xff] %v3742
  // Predicated region
  $region54: #{inception_v1_forward.1} parent=0 // pred_check
    _
  $region55: #{inception_v1_forward.1} parent=0 // pred_check_branch
    %3748 = sbr.rel (0) target = $region57
  $region56: #{inception_v1_forward.1} parent=0 // pred_region
    _
  $region57: #{inception_v1_forward.1} parent=0 // pred_fallthru
    _
  // Predicated region
  $region58: #{inception_v1_forward.1} parent=0 // pred_check
    _
  $region59: #{inception_v1_forward.1} parent=0 // pred_check_branch
    %3750 = sbr.rel (0) target = $region61
  $region60: #{inception_v1_forward.1} parent=0 // pred_region
    _
  $region61: #{inception_v1_forward.1} parent=0 // pred_fallthru
    _

</llo_original>
